<compile_context>
chip_gen: v7x
topology: tpu7x:2x2x1
jax: 0.10.0
libtpu: 0.0.40
codegen_flags: <defaults>
</compile_context>

<pallas_src>
import functools

import jax
import jax.numpy as jnp
import numpy as np
from jax.experimental import pallas as pl
from jax.experimental.pallas import tpu as pltpu


def lstm_kernel(x_ref, wih_ref, whh_ref, b_ref, wout_hbm, bout_ref,
                out_ref, gx_sc, hall_sc, wout_sc, wout_sem,
                *, seq_len, batch):
    """Single-invocation LSTM forward.

    x_ref    : (S*B, E)   embedded inputs, all timesteps (VMEM)
    wih_ref  : (E, 4H)    W_ih^T (VMEM)
    whh_ref  : (H, 4H)    W_hh^T (VMEM)
    b_ref    : (1, 4H)    b_ih + b_hh (VMEM)
    wout_hbm : (H, V)     W_out^T (ANY/HBM; DMA'd manually)
    bout_ref : (1, V)     b_out (VMEM)
    out_ref  : (S*B, V)   logits (VMEM)
    gx_sc    : (S*B, 4H)  scratch: precomputed input-projection gates
    hall_sc  : (S*B, H)   scratch: h_t for every timestep
    wout_sc  : (H, V)     scratch: VMEM landing buffer for W_out^T
    wout_sem : DMA semaphore for the W_out^T copy
    """
    H = whh_ref.shape[0]
    B = batch

    # 0) Kick off the W_out^T DMA now.  It is not needed until after the
    #    S-step serial recurrence, so its transfer is fully hidden.
    wout_cp = pltpu.make_async_copy(wout_hbm, wout_sc, wout_sem)
    wout_cp.start()

    # 1) Dense, time-independent input projection for ALL timesteps at once
    #    (M = S*B rows -> good MXU row utilization), bias folded in here so it
    #    never touches the serial recurrence path.
    gx_sc[...] = (
        jnp.dot(x_ref[...], wih_ref[...], preferred_element_type=jnp.float32)
        + b_ref[...])

    def sigmoid_via_tanh(v):
        # 1 EUP push (tanh) + cheap VALU instead of exp + reciprocal.
        return 0.5 * (jnp.tanh(0.5 * v) + 1.0)

    # 2) Serial recurrence, fully unrolled (S is small and fixed).  Only
    #    h @ W_hh^T + precomputed gates + elementwise gate math per step.
    def step(t, carry):
        h, c = carry
        row = pl.multiple_of(t * B, B)
        # NOTE: whh_ref is read inside the step (next to its matmul) rather
        # than hoisted -- a (H,4H) f32 value kept live across all unrolled
        # steps would occupy the whole vreg file and force spills.
        gates = gx_sc[pl.ds(row, B), :] + jnp.dot(
            h, whh_ref[...], preferred_element_type=jnp.float32)   # (B, 4H)

        # PyTorch gate order: i, f, g, o (slices land on 128-lane boundaries
        # since H is a multiple of 128).
        i = sigmoid_via_tanh(gates[:, 0 * H:1 * H])
        f = sigmoid_via_tanh(gates[:, 1 * H:2 * H])
        g = jnp.tanh(gates[:, 2 * H:3 * H])
        o = sigmoid_via_tanh(gates[:, 3 * H:4 * H])

        c = f * c + i * g
        h = o * jnp.tanh(c)
        hall_sc[pl.ds(row, B), :] = h
        return (h, c)

    h0 = jnp.zeros((B, H), jnp.float32)     # torch.nn.LSTM default h0 = 0
    c0 = jnp.zeros((B, H), jnp.float32)     # torch.nn.LSTM default c0 = 0
    jax.lax.fori_loop(0, seq_len, step, (h0, c0), unroll=True)

    # 3) Output projection as ONE dense (S*B, H) x (H, V) matmul, off the
    #    recurrent path; bias added once; lane-dense output store.
    wout_cp.wait()
    out_ref[...] = (
        jnp.dot(hall_sc[...], wout_sc[...], preferred_element_type=jnp.float32)
        + bout_ref[...])


def lstm_seq_forward(tokens, emb_table, w_ih, w_hh, b_ih, b_hh, w_out, b_out):
    """tokens: (S, B) int32  ->  logits (S, B, V) float32."""
    S, B = tokens.shape
    V, E = emb_table.shape
    H = w_hh.shape[1]

    # Embedding lookup (gather) as plain-JAX glue, flattened to (S*B, E).
    x = jnp.take(emb_table, tokens, axis=0).reshape(S * B, E)

    wih_t = jnp.transpose(w_ih)                      # (E, 4H)
    whh_t = jnp.transpose(w_hh)                      # (H, 4H)
    bias = (b_ih + b_hh).reshape(1, 4 * H)           # (1, 4H)
    wout_t = jnp.transpose(w_out)                    # (H, V)
    bout = b_out.reshape(1, V)                       # (1, V)

    kernel = functools.partial(lstm_kernel, seq_len=S, batch=B)

    # No grid: a single invocation with every operand resident in VMEM except
    # W_out^T, which is DMA'd in manually so its transfer overlaps the
    # recurrence.
    logits_flat = pl.pallas_call(
        kernel,
        out_shape=jax.ShapeDtypeStruct((S * B, V), jnp.float32),
        in_specs=[
            pl.BlockSpec(memory_space=pltpu.MemorySpace.VMEM),  # x      (S*B, E)
            pl.BlockSpec(memory_space=pltpu.MemorySpace.VMEM),  # W_ih^T (E, 4H)
            pl.BlockSpec(memory_space=pltpu.MemorySpace.VMEM),  # W_hh^T (H, 4H)
            pl.BlockSpec(memory_space=pltpu.MemorySpace.VMEM),  # bias   (1, 4H)
            pl.BlockSpec(memory_space=pl.ANY),                  # W_out^T(H, V), manual DMA
            pl.BlockSpec(memory_space=pltpu.MemorySpace.VMEM),  # b_out  (1, V)
        ],
        out_specs=pl.BlockSpec(memory_space=pltpu.MemorySpace.VMEM),
        scratch_shapes=[
            pltpu.VMEM((S * B, 4 * H), jnp.float32),   # gates_x
            pltpu.VMEM((S * B, H), jnp.float32),       # h_t for all t
            pltpu.VMEM((H, V), jnp.float32),           # W_out^T landing buffer
            pltpu.SemaphoreType.DMA(()),               # W_out^T DMA semaphore
        ],
        compiler_params=pltpu.CompilerParams(
            vmem_limit_bytes=48 * 1024 * 1024),
    )(x, wih_t, whh_t, bias, wout_t, bout)

    return logits_flat.reshape(S, B, V)


def reference_forward(tokens, emb_table, w_ih, w_hh, b_ih, b_hh, w_out, b_out):
    """Pure-JAX reference matching torch.nn.LSTM semantics (h0 = c0 = 0)."""
    x = jnp.take(emb_table, tokens, axis=0)          # (S, B, E)
    B = tokens.shape[1]
    H = w_hh.shape[1]

    def step(carry, xt):
        h, c = carry
        gates = xt @ w_ih.T + h @ w_hh.T + b_ih + b_hh
        i, f, g, o = jnp.split(gates, 4, axis=-1)
        i = jax.nn.sigmoid(i)
        f = jax.nn.sigmoid(f)
        g = jnp.tanh(g)
        o = jax.nn.sigmoid(o)
        c = f * c + i * g
        h = o * jnp.tanh(c)
        return (h, c), h

    h0 = jnp.zeros((B, H), jnp.float32)
    c0 = jnp.zeros((B, H), jnp.float32)
    _, hs = jax.lax.scan(step, (h0, c0), x)
    return hs @ w_out.T + b_out


if __name__ == "__main__":
    # Small shapes consistent with the module's forward.
    VOCAB = 256
    EMBED = 128
    HIDDEN = 128
    SEQ = 8
    BATCH = 8

    key = jax.random.PRNGKey(0)
    keys = jax.random.split(key, 8)
    bound = 1.0 / np.sqrt(HIDDEN)

    emb_table = jax.random.normal(keys[0], (VOCAB, EMBED), jnp.float32)
    w_ih = jax.random.uniform(keys[1], (4 * HIDDEN, EMBED), jnp.float32, -bound, bound)
    w_hh = jax.random.uniform(keys[2], (4 * HIDDEN, HIDDEN), jnp.float32, -bound, bound)
    b_ih = jax.random.uniform(keys[3], (4 * HIDDEN,), jnp.float32, -bound, bound)
    b_hh = jax.random.uniform(keys[4], (4 * HIDDEN,), jnp.float32, -bound, bound)
    w_out = jax.random.uniform(keys[5], (VOCAB, HIDDEN), jnp.float32, -bound, bound)
    b_out = jax.random.uniform(keys[6], (VOCAB,), jnp.float32, -bound, bound)

    tokens = jax.random.randint(keys[7], (SEQ, BATCH), 0, VOCAB, dtype=jnp.int32)

    logits = lstm_seq_forward(tokens, emb_table, w_ih, w_hh, b_ih, b_hh, w_out, b_out)
    logits = jax.block_until_ready(logits)

    ref = jax.block_until_ready(
        reference_forward(tokens, emb_table, w_ih, w_hh, b_ih, b_hh, w_out, b_out))

    assert logits.shape == (SEQ, BATCH, VOCAB), logits.shape
    np.testing.assert_allclose(np.asarray(logits), np.asarray(ref),
                               rtol=2e-3, atol=2e-3)
    print("KERNEL_OK")
</pallas_src>

<mosaic_0001>
module attributes {stable_mosaic.version = 11 : i64} {
  func.func @lstm_kernel(%arg0: memref<64x128xf32, #tpu.memory_space<vmem>>, %arg1: memref<128x512xf32, #tpu.memory_space<vmem>>, %arg2: memref<128x512xf32, #tpu.memory_space<vmem>>, %arg3: memref<1x512xf32, #tpu.memory_space<vmem>>, %arg4: memref<128x256xf32, #tpu.memory_space<any>>, %arg5: memref<1x256xf32, #tpu.memory_space<vmem>>, %arg6: memref<64x256xf32, #tpu.memory_space<vmem>>, %arg7: memref<64x512xf32, #tpu.memory_space<vmem>>, %arg8: memref<64x128xf32, #tpu.memory_space<vmem>>, %arg9: memref<128x256xf32, #tpu.memory_space<vmem>>, %arg10: memref<!tpu.dma_semaphore, #tpu.memory_space<semaphore_mem>>) attributes {dimension_semantics = [], scalar_prefetch = 0 : i64, scratch_operands = 4 : i64, tpu.core_type = #tpu.core_type<tc>} {
    tpu.enqueue_dma source(%arg4 : memref<128x256xf32, #tpu.memory_space<any>>) target(%arg9 : memref<128x256xf32, #tpu.memory_space<vmem>>) target_semaphore(%arg10 : memref<!tpu.dma_semaphore, #tpu.memory_space<semaphore_mem>>)
    %c0 = arith.constant 0 : index
    %c0_0 = arith.constant 0 : index
    %0 = vector.load %arg0[%c0, %c0_0] : memref<64x128xf32, #tpu.memory_space<vmem>>, vector<64x128xf32>
    %c0_1 = arith.constant 0 : index
    %c0_2 = arith.constant 0 : index
    %1 = vector.load %arg1[%c0_1, %c0_2] : memref<128x512xf32, #tpu.memory_space<vmem>>, vector<128x512xf32>
    %cst = arith.constant dense<0.000000e+00> : vector<64x512xf32>
    %2 = tpu.matmul %0, %1, %cst {dimension_numbers = #tpu.dot_dimension_numbers<[1], [0], [0], [1], [0, 0, 1, 1], [], []>} : vector<64x128xf32>, vector<128x512xf32>, vector<64x512xf32> -> vector<64x512xf32>
    %c0_3 = arith.constant 0 : index
    %c0_4 = arith.constant 0 : index
    %3 = vector.load %arg3[%c0_3, %c0_4] : memref<1x512xf32, #tpu.memory_space<vmem>>, vector<1x512xf32>
    %4 = vector.broadcast %3 : vector<1x512xf32> to vector<64x512xf32>
    %5 = arith.addf %2, %4 : vector<64x512xf32>
    %c0_5 = arith.constant 0 : index
    %c0_6 = arith.constant 0 : index
    %6 = vector.load %arg7[%c0_5, %c0_6] : memref<64x512xf32, #tpu.memory_space<vmem>>, vector<64x512xf32>
    tpu.vector_store %arg7[%c0_5, %c0_6], %5 {strides = array<i32>} : memref<64x512xf32, #tpu.memory_space<vmem>>, vector<64x512xf32>,
    %cst_7 = arith.constant 0.000000e+00 : f32
    %7 = vector.broadcast %cst_7 : f32 to vector<8x128xf32>
    %cst_8 = arith.constant 0.000000e+00 : f32
    %8 = vector.broadcast %cst_8 : f32 to vector<8x128xf32>
    %c0_i32 = arith.constant 0 : i32
    %c8_i32 = arith.constant 8 : i32
    %9 = arith.muli %c0_i32, %c8_i32 : i32
    %10 = tpu.assume_multiple %9, 8 : i32
    %11 = arith.index_cast %10 : i32 to index
    %c0_9 = arith.constant 0 : index
    %12 = vector.load %arg7[%11, %c0_9] : memref<64x512xf32, #tpu.memory_space<vmem>>, vector<8x512xf32>
    %c0_10 = arith.constant 0 : index
    %c0_11 = arith.constant 0 : index
    %13 = vector.load %arg2[%c0_10, %c0_11] : memref<128x512xf32, #tpu.memory_space<vmem>>, vector<128x512xf32>
    %cst_12 = arith.constant dense<0.000000e+00> : vector<8x512xf32>
    %14 = tpu.matmul %7, %13, %cst_12 {dimension_numbers = #tpu.dot_dimension_numbers<[1], [0], [0], [1], [0, 0, 1, 1], [], []>} : vector<8x128xf32>, vector<128x512xf32>, vector<8x512xf32> -> vector<8x512xf32>
    %15 = arith.addf %12, %14 : vector<8x512xf32>
    %16 = vector.extract_strided_slice %15 {offsets = [0, 0], sizes = [8, 128], strides = [1, 1]} : vector<8x512xf32> to vector<8x128xf32>
    %cst_13 = arith.constant 5.000000e-01 : f32
    %17 = vector.broadcast %cst_13 : f32 to vector<8x128xf32>
    %18 = arith.mulf %17, %16 : vector<8x128xf32>
    %19 = math.tanh %18 : vector<8x128xf32>
    %cst_14 = arith.constant 1.000000e+00 : f32
    %20 = vector.broadcast %cst_14 : f32 to vector<8x128xf32>
    %21 = arith.addf %19, %20 : vector<8x128xf32>
    %cst_15 = arith.constant 5.000000e-01 : f32
    %22 = vector.broadcast %cst_15 : f32 to vector<8x128xf32>
    %23 = arith.mulf %22, %21 : vector<8x128xf32>
    %24 = vector.extract_strided_slice %15 {offsets = [0, 128], sizes = [8, 128], strides = [1, 1]} : vector<8x512xf32> to vector<8x128xf32>
    %cst_16 = arith.constant 5.000000e-01 : f32
    %25 = vector.broadcast %cst_16 : f32 to vector<8x128xf32>
    %26 = arith.mulf %25, %24 : vector<8x128xf32>
    %27 = math.tanh %26 : vector<8x128xf32>
    %cst_17 = arith.constant 1.000000e+00 : f32
    %28 = vector.broadcast %cst_17 : f32 to vector<8x128xf32>
    %29 = arith.addf %27, %28 : vector<8x128xf32>
    %cst_18 = arith.constant 5.000000e-01 : f32
    %30 = vector.broadcast %cst_18 : f32 to vector<8x128xf32>
    %31 = arith.mulf %30, %29 : vector<8x128xf32>
    %32 = vector.extract_strided_slice %15 {offsets = [0, 256], sizes = [8, 128], strides = [1, 1]} : vector<8x512xf32> to vector<8x128xf32>
    %33 = math.tanh %32 : vector<8x128xf32>
    %34 = vector.extract_strided_slice %15 {offsets = [0, 384], sizes = [8, 128], strides = [1, 1]} : vector<8x512xf32> to vector<8x128xf32>
    %cst_19 = arith.constant 5.000000e-01 : f32
    %35 = vector.broadcast %cst_19 : f32 to vector<8x128xf32>
    %36 = arith.mulf %35, %34 : vector<8x128xf32>
    %37 = math.tanh %36 : vector<8x128xf32>
    %cst_20 = arith.constant 1.000000e+00 : f32
    %38 = vector.broadcast %cst_20 : f32 to vector<8x128xf32>
    %39 = arith.addf %37, %38 : vector<8x128xf32>
    %cst_21 = arith.constant 5.000000e-01 : f32
    %40 = vector.broadcast %cst_21 : f32 to vector<8x128xf32>
    %41 = arith.mulf %40, %39 : vector<8x128xf32>
    %42 = arith.mulf %31, %8 : vector<8x128xf32>
    %43 = arith.mulf %23, %33 : vector<8x128xf32>
    %44 = arith.addf %42, %43 : vector<8x128xf32>
    %45 = math.tanh %44 : vector<8x128xf32>
    %46 = arith.mulf %41, %45 : vector<8x128xf32>
    %47 = arith.index_cast %10 : i32 to index
    %c0_22 = arith.constant 0 : index
    %48 = vector.load %arg8[%47, %c0_22] : memref<64x128xf32, #tpu.memory_space<vmem>>, vector<8x128xf32>
    tpu.vector_store %arg8[%47, %c0_22], %46 {strides = array<i32>} : memref<64x128xf32, #tpu.memory_space<vmem>>, vector<8x128xf32>,
    %c1_i32 = arith.constant 1 : i32
    %c8_i32_23 = arith.constant 8 : i32
    %49 = arith.muli %c1_i32, %c8_i32_23 : i32
    %50 = tpu.assume_multiple %49, 8 : i32
    %51 = arith.index_cast %50 : i32 to index
    %c0_24 = arith.constant 0 : index
    %52 = vector.load %arg7[%51, %c0_24] : memref<64x512xf32, #tpu.memory_space<vmem>>, vector<8x512xf32>
    %c0_25 = arith.constant 0 : index
    %c0_26 = arith.constant 0 : index
    %53 = vector.load %arg2[%c0_25, %c0_26] : memref<128x512xf32, #tpu.memory_space<vmem>>, vector<128x512xf32>
    %cst_27 = arith.constant dense<0.000000e+00> : vector<8x512xf32>
    %54 = tpu.matmul %46, %53, %cst_27 {dimension_numbers = #tpu.dot_dimension_numbers<[1], [0], [0], [1], [0, 0, 1, 1], [], []>} : vector<8x128xf32>, vector<128x512xf32>, vector<8x512xf32> -> vector<8x512xf32>
    %55 = arith.addf %52, %54 : vector<8x512xf32>
    %56 = vector.extract_strided_slice %55 {offsets = [0, 0], sizes = [8, 128], strides = [1, 1]} : vector<8x512xf32> to vector<8x128xf32>
    %cst_28 = arith.constant 5.000000e-01 : f32
    %57 = vector.broadcast %cst_28 : f32 to vector<8x128xf32>
    %58 = arith.mulf %57, %56 : vector<8x128xf32>
    %59 = math.tanh %58 : vector<8x128xf32>
    %cst_29 = arith.constant 1.000000e+00 : f32
    %60 = vector.broadcast %cst_29 : f32 to vector<8x128xf32>
    %61 = arith.addf %59, %60 : vector<8x128xf32>
    %cst_30 = arith.constant 5.000000e-01 : f32
    %62 = vector.broadcast %cst_30 : f32 to vector<8x128xf32>
    %63 = arith.mulf %62, %61 : vector<8x128xf32>
    %64 = vector.extract_strided_slice %55 {offsets = [0, 128], sizes = [8, 128], strides = [1, 1]} : vector<8x512xf32> to vector<8x128xf32>
    %cst_31 = arith.constant 5.000000e-01 : f32
    %65 = vector.broadcast %cst_31 : f32 to vector<8x128xf32>
    %66 = arith.mulf %65, %64 : vector<8x128xf32>
    %67 = math.tanh %66 : vector<8x128xf32>
    %cst_32 = arith.constant 1.000000e+00 : f32
    %68 = vector.broadcast %cst_32 : f32 to vector<8x128xf32>
    %69 = arith.addf %67, %68 : vector<8x128xf32>
    %cst_33 = arith.constant 5.000000e-01 : f32
    %70 = vector.broadcast %cst_33 : f32 to vector<8x128xf32>
    %71 = arith.mulf %70, %69 : vector<8x128xf32>
    %72 = vector.extract_strided_slice %55 {offsets = [0, 256], sizes = [8, 128], strides = [1, 1]} : vector<8x512xf32> to vector<8x128xf32>
    %73 = math.tanh %72 : vector<8x128xf32>
    %74 = vector.extract_strided_slice %55 {offsets = [0, 384], sizes = [8, 128], strides = [1, 1]} : vector<8x512xf32> to vector<8x128xf32>
    %cst_34 = arith.constant 5.000000e-01 : f32
    %75 = vector.broadcast %cst_34 : f32 to vector<8x128xf32>
    %76 = arith.mulf %75, %74 : vector<8x128xf32>
    %77 = math.tanh %76 : vector<8x128xf32>
    %cst_35 = arith.constant 1.000000e+00 : f32
    %78 = vector.broadcast %cst_35 : f32 to vector<8x128xf32>
    %79 = arith.addf %77, %78 : vector<8x128xf32>
    %cst_36 = arith.constant 5.000000e-01 : f32
    %80 = vector.broadcast %cst_36 : f32 to vector<8x128xf32>
    %81 = arith.mulf %80, %79 : vector<8x128xf32>
    %82 = arith.mulf %71, %44 : vector<8x128xf32>
    %83 = arith.mulf %63, %73 : vector<8x128xf32>
    %84 = arith.addf %82, %83 : vector<8x128xf32>
    %85 = math.tanh %84 : vector<8x128xf32>
    %86 = arith.mulf %81, %85 : vector<8x128xf32>
    %87 = arith.index_cast %50 : i32 to index
    %c0_37 = arith.constant 0 : index
    %88 = vector.load %arg8[%87, %c0_37] : memref<64x128xf32, #tpu.memory_space<vmem>>, vector<8x128xf32>
    tpu.vector_store %arg8[%87, %c0_37], %86 {strides = array<i32>} : memref<64x128xf32, #tpu.memory_space<vmem>>, vector<8x128xf32>,
    %c2_i32 = arith.constant 2 : i32
    %c8_i32_38 = arith.constant 8 : i32
    %89 = arith.muli %c2_i32, %c8_i32_38 : i32
    %90 = tpu.assume_multiple %89, 8 : i32
    %91 = arith.index_cast %90 : i32 to index
    %c0_39 = arith.constant 0 : index
    %92 = vector.load %arg7[%91, %c0_39] : memref<64x512xf32, #tpu.memory_space<vmem>>, vector<8x512xf32>
    %c0_40 = arith.constant 0 : index
    %c0_41 = arith.constant 0 : index
    %93 = vector.load %arg2[%c0_40, %c0_41] : memref<128x512xf32, #tpu.memory_space<vmem>>, vector<128x512xf32>
    %cst_42 = arith.constant dense<0.000000e+00> : vector<8x512xf32>
    %94 = tpu.matmul %86, %93, %cst_42 {dimension_numbers = #tpu.dot_dimension_numbers<[1], [0], [0], [1], [0, 0, 1, 1], [], []>} : vector<8x128xf32>, vector<128x512xf32>, vector<8x512xf32> -> vector<8x512xf32>
    %95 = arith.addf %92, %94 : vector<8x512xf32>
    %96 = vector.extract_strided_slice %95 {offsets = [0, 0], sizes = [8, 128], strides = [1, 1]} : vector<8x512xf32> to vector<8x128xf32>
    %cst_43 = arith.constant 5.000000e-01 : f32
    %97 = vector.broadcast %cst_43 : f32 to vector<8x128xf32>
    %98 = arith.mulf %97, %96 : vector<8x128xf32>
    %99 = math.tanh %98 : vector<8x128xf32>
    %cst_44 = arith.constant 1.000000e+00 : f32
    %100 = vector.broadcast %cst_44 : f32 to vector<8x128xf32>
    %101 = arith.addf %99, %100 : vector<8x128xf32>
    %cst_45 = arith.constant 5.000000e-01 : f32
    %102 = vector.broadcast %cst_45 : f32 to vector<8x128xf32>
    %103 = arith.mulf %102, %101 : vector<8x128xf32>
    %104 = vector.extract_strided_slice %95 {offsets = [0, 128], sizes = [8, 128], strides = [1, 1]} : vector<8x512xf32> to vector<8x128xf32>
    %cst_46 = arith.constant 5.000000e-01 : f32
    %105 = vector.broadcast %cst_46 : f32 to vector<8x128xf32>
    %106 = arith.mulf %105, %104 : vector<8x128xf32>
    %107 = math.tanh %106 : vector<8x128xf32>
    %cst_47 = arith.constant 1.000000e+00 : f32
    %108 = vector.broadcast %cst_47 : f32 to vector<8x128xf32>
    %109 = arith.addf %107, %108 : vector<8x128xf32>
    %cst_48 = arith.constant 5.000000e-01 : f32
    %110 = vector.broadcast %cst_48 : f32 to vector<8x128xf32>
    %111 = arith.mulf %110, %109 : vector<8x128xf32>
    %112 = vector.extract_strided_slice %95 {offsets = [0, 256], sizes = [8, 128], strides = [1, 1]} : vector<8x512xf32> to vector<8x128xf32>
    %113 = math.tanh %112 : vector<8x128xf32>
    %114 = vector.extract_strided_slice %95 {offsets = [0, 384], sizes = [8, 128], strides = [1, 1]} : vector<8x512xf32> to vector<8x128xf32>
    %cst_49 = arith.constant 5.000000e-01 : f32
    %115 = vector.broadcast %cst_49 : f32 to vector<8x128xf32>
    %116 = arith.mulf %115, %114 : vector<8x128xf32>
    %117 = math.tanh %116 : vector<8x128xf32>
    %cst_50 = arith.constant 1.000000e+00 : f32
    %118 = vector.broadcast %cst_50 : f32 to vector<8x128xf32>
    %119 = arith.addf %117, %118 : vector<8x128xf32>
    %cst_51 = arith.constant 5.000000e-01 : f32
    %120 = vector.broadcast %cst_51 : f32 to vector<8x128xf32>
    %121 = arith.mulf %120, %119 : vector<8x128xf32>
    %122 = arith.mulf %111, %84 : vector<8x128xf32>
    %123 = arith.mulf %103, %113 : vector<8x128xf32>
    %124 = arith.addf %122, %123 : vector<8x128xf32>
    %125 = math.tanh %124 : vector<8x128xf32>
    %126 = arith.mulf %121, %125 : vector<8x128xf32>
    %127 = arith.index_cast %90 : i32 to index
    %c0_52 = arith.constant 0 : index
    %128 = vector.load %arg8[%127, %c0_52] : memref<64x128xf32, #tpu.memory_space<vmem>>, vector<8x128xf32>
    tpu.vector_store %arg8[%127, %c0_52], %126 {strides = array<i32>} : memref<64x128xf32, #tpu.memory_space<vmem>>, vector<8x128xf32>,
    %c3_i32 = arith.constant 3 : i32
    %c8_i32_53 = arith.constant 8 : i32
    %129 = arith.muli %c3_i32, %c8_i32_53 : i32
    %130 = tpu.assume_multiple %129, 8 : i32
    %131 = arith.index_cast %130 : i32 to index
    %c0_54 = arith.constant 0 : index
    %132 = vector.load %arg7[%131, %c0_54] : memref<64x512xf32, #tpu.memory_space<vmem>>, vector<8x512xf32>
    %c0_55 = arith.constant 0 : index
    %c0_56 = arith.constant 0 : index
    %133 = vector.load %arg2[%c0_55, %c0_56] : memref<128x512xf32, #tpu.memory_space<vmem>>, vector<128x512xf32>
    %cst_57 = arith.constant dense<0.000000e+00> : vector<8x512xf32>
    %134 = tpu.matmul %126, %133, %cst_57 {dimension_numbers = #tpu.dot_dimension_numbers<[1], [0], [0], [1], [0, 0, 1, 1], [], []>} : vector<8x128xf32>, vector<128x512xf32>, vector<8x512xf32> -> vector<8x512xf32>
    %135 = arith.addf %132, %134 : vector<8x512xf32>
    %136 = vector.extract_strided_slice %135 {offsets = [0, 0], sizes = [8, 128], strides = [1, 1]} : vector<8x512xf32> to vector<8x128xf32>
    %cst_58 = arith.constant 5.000000e-01 : f32
    %137 = vector.broadcast %cst_58 : f32 to vector<8x128xf32>
    %138 = arith.mulf %137, %136 : vector<8x128xf32>
    %139 = math.tanh %138 : vector<8x128xf32>
    %cst_59 = arith.constant 1.000000e+00 : f32
    %140 = vector.broadcast %cst_59 : f32 to vector<8x128xf32>
    %141 = arith.addf %139, %140 : vector<8x128xf32>
    %cst_60 = arith.constant 5.000000e-01 : f32
    %142 = vector.broadcast %cst_60 : f32 to vector<8x128xf32>
    %143 = arith.mulf %142, %141 : vector<8x128xf32>
    %144 = vector.extract_strided_slice %135 {offsets = [0, 128], sizes = [8, 128], strides = [1, 1]} : vector<8x512xf32> to vector<8x128xf32>
    %cst_61 = arith.constant 5.000000e-01 : f32
    %145 = vector.broadcast %cst_61 : f32 to vector<8x128xf32>
    %146 = arith.mulf %145, %144 : vector<8x128xf32>
    %147 = math.tanh %146 : vector<8x128xf32>
    %cst_62 = arith.constant 1.000000e+00 : f32
    %148 = vector.broadcast %cst_62 : f32 to vector<8x128xf32>
    %149 = arith.addf %147, %148 : vector<8x128xf32>
    %cst_63 = arith.constant 5.000000e-01 : f32
    %150 = vector.broadcast %cst_63 : f32 to vector<8x128xf32>
    %151 = arith.mulf %150, %149 : vector<8x128xf32>
    %152 = vector.extract_strided_slice %135 {offsets = [0, 256], sizes = [8, 128], strides = [1, 1]} : vector<8x512xf32> to vector<8x128xf32>
    %153 = math.tanh %152 : vector<8x128xf32>
    %154 = vector.extract_strided_slice %135 {offsets = [0, 384], sizes = [8, 128], strides = [1, 1]} : vector<8x512xf32> to vector<8x128xf32>
    %cst_64 = arith.constant 5.000000e-01 : f32
    %155 = vector.broadcast %cst_64 : f32 to vector<8x128xf32>
    %156 = arith.mulf %155, %154 : vector<8x128xf32>
    %157 = math.tanh %156 : vector<8x128xf32>
    %cst_65 = arith.constant 1.000000e+00 : f32
    %158 = vector.broadcast %cst_65 : f32 to vector<8x128xf32>
    %159 = arith.addf %157, %158 : vector<8x128xf32>
    %cst_66 = arith.constant 5.000000e-01 : f32
    %160 = vector.broadcast %cst_66 : f32 to vector<8x128xf32>
    %161 = arith.mulf %160, %159 : vector<8x128xf32>
    %162 = arith.mulf %151, %124 : vector<8x128xf32>
    %163 = arith.mulf %143, %153 : vector<8x128xf32>
    %164 = arith.addf %162, %163 : vector<8x128xf32>
    %165 = math.tanh %164 : vector<8x128xf32>
    %166 = arith.mulf %161, %165 : vector<8x128xf32>
    %167 = arith.index_cast %130 : i32 to index
    %c0_67 = arith.constant 0 : index
    %168 = vector.load %arg8[%167, %c0_67] : memref<64x128xf32, #tpu.memory_space<vmem>>, vector<8x128xf32>
    tpu.vector_store %arg8[%167, %c0_67], %166 {strides = array<i32>} : memref<64x128xf32, #tpu.memory_space<vmem>>, vector<8x128xf32>,
    %c4_i32 = arith.constant 4 : i32
    %c8_i32_68 = arith.constant 8 : i32
    %169 = arith.muli %c4_i32, %c8_i32_68 : i32
    %170 = tpu.assume_multiple %169, 8 : i32
    %171 = arith.index_cast %170 : i32 to index
    %c0_69 = arith.constant 0 : index
    %172 = vector.load %arg7[%171, %c0_69] : memref<64x512xf32, #tpu.memory_space<vmem>>, vector<8x512xf32>
    %c0_70 = arith.constant 0 : index
    %c0_71 = arith.constant 0 : index
    %173 = vector.load %arg2[%c0_70, %c0_71] : memref<128x512xf32, #tpu.memory_space<vmem>>, vector<128x512xf32>
    %cst_72 = arith.constant dense<0.000000e+00> : vector<8x512xf32>
    %174 = tpu.matmul %166, %173, %cst_72 {dimension_numbers = #tpu.dot_dimension_numbers<[1], [0], [0], [1], [0, 0, 1, 1], [], []>} : vector<8x128xf32>, vector<128x512xf32>, vector<8x512xf32> -> vector<8x512xf32>
    %175 = arith.addf %172, %174 : vector<8x512xf32>
    %176 = vector.extract_strided_slice %175 {offsets = [0, 0], sizes = [8, 128], strides = [1, 1]} : vector<8x512xf32> to vector<8x128xf32>
    %cst_73 = arith.constant 5.000000e-01 : f32
    %177 = vector.broadcast %cst_73 : f32 to vector<8x128xf32>
    %178 = arith.mulf %177, %176 : vector<8x128xf32>
    %179 = math.tanh %178 : vector<8x128xf32>
    %cst_74 = arith.constant 1.000000e+00 : f32
    %180 = vector.broadcast %cst_74 : f32 to vector<8x128xf32>
    %181 = arith.addf %179, %180 : vector<8x128xf32>
    %cst_75 = arith.constant 5.000000e-01 : f32
    %182 = vector.broadcast %cst_75 : f32 to vector<8x128xf32>
    %183 = arith.mulf %182, %181 : vector<8x128xf32>
    %184 = vector.extract_strided_slice %175 {offsets = [0, 128], sizes = [8, 128], strides = [1, 1]} : vector<8x512xf32> to vector<8x128xf32>
    %cst_76 = arith.constant 5.000000e-01 : f32
    %185 = vector.broadcast %cst_76 : f32 to vector<8x128xf32>
    %186 = arith.mulf %185, %184 : vector<8x128xf32>
    %187 = math.tanh %186 : vector<8x128xf32>
    %cst_77 = arith.constant 1.000000e+00 : f32
    %188 = vector.broadcast %cst_77 : f32 to vector<8x128xf32>
    %189 = arith.addf %187, %188 : vector<8x128xf32>
    %cst_78 = arith.constant 5.000000e-01 : f32
    %190 = vector.broadcast %cst_78 : f32 to vector<8x128xf32>
    %191 = arith.mulf %190, %189 : vector<8x128xf32>
    %192 = vector.extract_strided_slice %175 {offsets = [0, 256], sizes = [8, 128], strides = [1, 1]} : vector<8x512xf32> to vector<8x128xf32>
    %193 = math.tanh %192 : vector<8x128xf32>
    %194 = vector.extract_strided_slice %175 {offsets = [0, 384], sizes = [8, 128], strides = [1, 1]} : vector<8x512xf32> to vector<8x128xf32>
    %cst_79 = arith.constant 5.000000e-01 : f32
    %195 = vector.broadcast %cst_79 : f32 to vector<8x128xf32>
    %196 = arith.mulf %195, %194 : vector<8x128xf32>
    %197 = math.tanh %196 : vector<8x128xf32>
    %cst_80 = arith.constant 1.000000e+00 : f32
    %198 = vector.broadcast %cst_80 : f32 to vector<8x128xf32>
    %199 = arith.addf %197, %198 : vector<8x128xf32>
    %cst_81 = arith.constant 5.000000e-01 : f32
    %200 = vector.broadcast %cst_81 : f32 to vector<8x128xf32>
    %201 = arith.mulf %200, %199 : vector<8x128xf32>
    %202 = arith.mulf %191, %164 : vector<8x128xf32>
    %203 = arith.mulf %183, %193 : vector<8x128xf32>
    %204 = arith.addf %202, %203 : vector<8x128xf32>
    %205 = math.tanh %204 : vector<8x128xf32>
    %206 = arith.mulf %201, %205 : vector<8x128xf32>
    %207 = arith.index_cast %170 : i32 to index
    %c0_82 = arith.constant 0 : index
    %208 = vector.load %arg8[%207, %c0_82] : memref<64x128xf32, #tpu.memory_space<vmem>>, vector<8x128xf32>
    tpu.vector_store %arg8[%207, %c0_82], %206 {strides = array<i32>} : memref<64x128xf32, #tpu.memory_space<vmem>>, vector<8x128xf32>,
    %c5_i32 = arith.constant 5 : i32
    %c8_i32_83 = arith.constant 8 : i32
    %209 = arith.muli %c5_i32, %c8_i32_83 : i32
    %210 = tpu.assume_multiple %209, 8 : i32
    %211 = arith.index_cast %210 : i32 to index
    %c0_84 = arith.constant 0 : index
    %212 = vector.load %arg7[%211, %c0_84] : memref<64x512xf32, #tpu.memory_space<vmem>>, vector<8x512xf32>
    %c0_85 = arith.constant 0 : index
    %c0_86 = arith.constant 0 : index
    %213 = vector.load %arg2[%c0_85, %c0_86] : memref<128x512xf32, #tpu.memory_space<vmem>>, vector<128x512xf32>
    %cst_87 = arith.constant dense<0.000000e+00> : vector<8x512xf32>
    %214 = tpu.matmul %206, %213, %cst_87 {dimension_numbers = #tpu.dot_dimension_numbers<[1], [0], [0], [1], [0, 0, 1, 1], [], []>} : vector<8x128xf32>, vector<128x512xf32>, vector<8x512xf32> -> vector<8x512xf32>
    %215 = arith.addf %212, %214 : vector<8x512xf32>
    %216 = vector.extract_strided_slice %215 {offsets = [0, 0], sizes = [8, 128], strides = [1, 1]} : vector<8x512xf32> to vector<8x128xf32>
    %cst_88 = arith.constant 5.000000e-01 : f32
    %217 = vector.broadcast %cst_88 : f32 to vector<8x128xf32>
    %218 = arith.mulf %217, %216 : vector<8x128xf32>
    %219 = math.tanh %218 : vector<8x128xf32>
    %cst_89 = arith.constant 1.000000e+00 : f32
    %220 = vector.broadcast %cst_89 : f32 to vector<8x128xf32>
    %221 = arith.addf %219, %220 : vector<8x128xf32>
    %cst_90 = arith.constant 5.000000e-01 : f32
    %222 = vector.broadcast %cst_90 : f32 to vector<8x128xf32>
    %223 = arith.mulf %222, %221 : vector<8x128xf32>
    %224 = vector.extract_strided_slice %215 {offsets = [0, 128], sizes = [8, 128], strides = [1, 1]} : vector<8x512xf32> to vector<8x128xf32>
    %cst_91 = arith.constant 5.000000e-01 : f32
    %225 = vector.broadcast %cst_91 : f32 to vector<8x128xf32>
    %226 = arith.mulf %225, %224 : vector<8x128xf32>
    %227 = math.tanh %226 : vector<8x128xf32>
    %cst_92 = arith.constant 1.000000e+00 : f32
    %228 = vector.broadcast %cst_92 : f32 to vector<8x128xf32>
    %229 = arith.addf %227, %228 : vector<8x128xf32>
    %cst_93 = arith.constant 5.000000e-01 : f32
    %230 = vector.broadcast %cst_93 : f32 to vector<8x128xf32>
    %231 = arith.mulf %230, %229 : vector<8x128xf32>
    %232 = vector.extract_strided_slice %215 {offsets = [0, 256], sizes = [8, 128], strides = [1, 1]} : vector<8x512xf32> to vector<8x128xf32>
    %233 = math.tanh %232 : vector<8x128xf32>
    %234 = vector.extract_strided_slice %215 {offsets = [0, 384], sizes = [8, 128], strides = [1, 1]} : vector<8x512xf32> to vector<8x128xf32>
    %cst_94 = arith.constant 5.000000e-01 : f32
    %235 = vector.broadcast %cst_94 : f32 to vector<8x128xf32>
    %236 = arith.mulf %235, %234 : vector<8x128xf32>
    %237 = math.tanh %236 : vector<8x128xf32>
    %cst_95 = arith.constant 1.000000e+00 : f32
    %238 = vector.broadcast %cst_95 : f32 to vector<8x128xf32>
    %239 = arith.addf %237, %238 : vector<8x128xf32>
    %cst_96 = arith.constant 5.000000e-01 : f32
    %240 = vector.broadcast %cst_96 : f32 to vector<8x128xf32>
    %241 = arith.mulf %240, %239 : vector<8x128xf32>
    %242 = arith.mulf %231, %204 : vector<8x128xf32>
    %243 = arith.mulf %223, %233 : vector<8x128xf32>
    %244 = arith.addf %242, %243 : vector<8x128xf32>
    %245 = math.tanh %244 : vector<8x128xf32>
    %246 = arith.mulf %241, %245 : vector<8x128xf32>
    %247 = arith.index_cast %210 : i32 to index
    %c0_97 = arith.constant 0 : index
    %248 = vector.load %arg8[%247, %c0_97] : memref<64x128xf32, #tpu.memory_space<vmem>>, vector<8x128xf32>
    tpu.vector_store %arg8[%247, %c0_97], %246 {strides = array<i32>} : memref<64x128xf32, #tpu.memory_space<vmem>>, vector<8x128xf32>,
    %c6_i32 = arith.constant 6 : i32
    %c8_i32_98 = arith.constant 8 : i32
    %249 = arith.muli %c6_i32, %c8_i32_98 : i32
    %250 = tpu.assume_multiple %249, 8 : i32
    %251 = arith.index_cast %250 : i32 to index
    %c0_99 = arith.constant 0 : index
    %252 = vector.load %arg7[%251, %c0_99] : memref<64x512xf32, #tpu.memory_space<vmem>>, vector<8x512xf32>
    %c0_100 = arith.constant 0 : index
    %c0_101 = arith.constant 0 : index
    %253 = vector.load %arg2[%c0_100, %c0_101] : memref<128x512xf32, #tpu.memory_space<vmem>>, vector<128x512xf32>
    %cst_102 = arith.constant dense<0.000000e+00> : vector<8x512xf32>
    %254 = tpu.matmul %246, %253, %cst_102 {dimension_numbers = #tpu.dot_dimension_numbers<[1], [0], [0], [1], [0, 0, 1, 1], [], []>} : vector<8x128xf32>, vector<128x512xf32>, vector<8x512xf32> -> vector<8x512xf32>
    %255 = arith.addf %252, %254 : vector<8x512xf32>
    %256 = vector.extract_strided_slice %255 {offsets = [0, 0], sizes = [8, 128], strides = [1, 1]} : vector<8x512xf32> to vector<8x128xf32>
    %cst_103 = arith.constant 5.000000e-01 : f32
    %257 = vector.broadcast %cst_103 : f32 to vector<8x128xf32>
    %258 = arith.mulf %257, %256 : vector<8x128xf32>
    %259 = math.tanh %258 : vector<8x128xf32>
    %cst_104 = arith.constant 1.000000e+00 : f32
    %260 = vector.broadcast %cst_104 : f32 to vector<8x128xf32>
    %261 = arith.addf %259, %260 : vector<8x128xf32>
    %cst_105 = arith.constant 5.000000e-01 : f32
    %262 = vector.broadcast %cst_105 : f32 to vector<8x128xf32>
    %263 = arith.mulf %262, %261 : vector<8x128xf32>
    %264 = vector.extract_strided_slice %255 {offsets = [0, 128], sizes = [8, 128], strides = [1, 1]} : vector<8x512xf32> to vector<8x128xf32>
    %cst_106 = arith.constant 5.000000e-01 : f32
    %265 = vector.broadcast %cst_106 : f32 to vector<8x128xf32>
    %266 = arith.mulf %265, %264 : vector<8x128xf32>
    %267 = math.tanh %266 : vector<8x128xf32>
    %cst_107 = arith.constant 1.000000e+00 : f32
    %268 = vector.broadcast %cst_107 : f32 to vector<8x128xf32>
    %269 = arith.addf %267, %268 : vector<8x128xf32>
    %cst_108 = arith.constant 5.000000e-01 : f32
    %270 = vector.broadcast %cst_108 : f32 to vector<8x128xf32>
    %271 = arith.mulf %270, %269 : vector<8x128xf32>
    %272 = vector.extract_strided_slice %255 {offsets = [0, 256], sizes = [8, 128], strides = [1, 1]} : vector<8x512xf32> to vector<8x128xf32>
    %273 = math.tanh %272 : vector<8x128xf32>
    %274 = vector.extract_strided_slice %255 {offsets = [0, 384], sizes = [8, 128], strides = [1, 1]} : vector<8x512xf32> to vector<8x128xf32>
    %cst_109 = arith.constant 5.000000e-01 : f32
    %275 = vector.broadcast %cst_109 : f32 to vector<8x128xf32>
    %276 = arith.mulf %275, %274 : vector<8x128xf32>
    %277 = math.tanh %276 : vector<8x128xf32>
    %cst_110 = arith.constant 1.000000e+00 : f32
    %278 = vector.broadcast %cst_110 : f32 to vector<8x128xf32>
    %279 = arith.addf %277, %278 : vector<8x128xf32>
    %cst_111 = arith.constant 5.000000e-01 : f32
    %280 = vector.broadcast %cst_111 : f32 to vector<8x128xf32>
    %281 = arith.mulf %280, %279 : vector<8x128xf32>
    %282 = arith.mulf %271, %244 : vector<8x128xf32>
    %283 = arith.mulf %263, %273 : vector<8x128xf32>
    %284 = arith.addf %282, %283 : vector<8x128xf32>
    %285 = math.tanh %284 : vector<8x128xf32>
    %286 = arith.mulf %281, %285 : vector<8x128xf32>
    %287 = arith.index_cast %250 : i32 to index
    %c0_112 = arith.constant 0 : index
    %288 = vector.load %arg8[%287, %c0_112] : memref<64x128xf32, #tpu.memory_space<vmem>>, vector<8x128xf32>
    tpu.vector_store %arg8[%287, %c0_112], %286 {strides = array<i32>} : memref<64x128xf32, #tpu.memory_space<vmem>>, vector<8x128xf32>,
    %c7_i32 = arith.constant 7 : i32
    %c8_i32_113 = arith.constant 8 : i32
    %289 = arith.muli %c7_i32, %c8_i32_113 : i32
    %290 = tpu.assume_multiple %289, 8 : i32
    %291 = arith.index_cast %290 : i32 to index
    %c0_114 = arith.constant 0 : index
    %292 = vector.load %arg7[%291, %c0_114] : memref<64x512xf32, #tpu.memory_space<vmem>>, vector<8x512xf32>
    %c0_115 = arith.constant 0 : index
    %c0_116 = arith.constant 0 : index
    %293 = vector.load %arg2[%c0_115, %c0_116] : memref<128x512xf32, #tpu.memory_space<vmem>>, vector<128x512xf32>
    %cst_117 = arith.constant dense<0.000000e+00> : vector<8x512xf32>
    %294 = tpu.matmul %286, %293, %cst_117 {dimension_numbers = #tpu.dot_dimension_numbers<[1], [0], [0], [1], [0, 0, 1, 1], [], []>} : vector<8x128xf32>, vector<128x512xf32>, vector<8x512xf32> -> vector<8x512xf32>
    %295 = arith.addf %292, %294 : vector<8x512xf32>
    %296 = vector.extract_strided_slice %295 {offsets = [0, 0], sizes = [8, 128], strides = [1, 1]} : vector<8x512xf32> to vector<8x128xf32>
    %cst_118 = arith.constant 5.000000e-01 : f32
    %297 = vector.broadcast %cst_118 : f32 to vector<8x128xf32>
    %298 = arith.mulf %297, %296 : vector<8x128xf32>
    %299 = math.tanh %298 : vector<8x128xf32>
    %cst_119 = arith.constant 1.000000e+00 : f32
    %300 = vector.broadcast %cst_119 : f32 to vector<8x128xf32>
    %301 = arith.addf %299, %300 : vector<8x128xf32>
    %cst_120 = arith.constant 5.000000e-01 : f32
    %302 = vector.broadcast %cst_120 : f32 to vector<8x128xf32>
    %303 = arith.mulf %302, %301 : vector<8x128xf32>
    %304 = vector.extract_strided_slice %295 {offsets = [0, 128], sizes = [8, 128], strides = [1, 1]} : vector<8x512xf32> to vector<8x128xf32>
    %cst_121 = arith.constant 5.000000e-01 : f32
    %305 = vector.broadcast %cst_121 : f32 to vector<8x128xf32>
    %306 = arith.mulf %305, %304 : vector<8x128xf32>
    %307 = math.tanh %306 : vector<8x128xf32>
    %cst_122 = arith.constant 1.000000e+00 : f32
    %308 = vector.broadcast %cst_122 : f32 to vector<8x128xf32>
    %309 = arith.addf %307, %308 : vector<8x128xf32>
    %cst_123 = arith.constant 5.000000e-01 : f32
    %310 = vector.broadcast %cst_123 : f32 to vector<8x128xf32>
    %311 = arith.mulf %310, %309 : vector<8x128xf32>
    %312 = vector.extract_strided_slice %295 {offsets = [0, 256], sizes = [8, 128], strides = [1, 1]} : vector<8x512xf32> to vector<8x128xf32>
    %313 = math.tanh %312 : vector<8x128xf32>
    %314 = vector.extract_strided_slice %295 {offsets = [0, 384], sizes = [8, 128], strides = [1, 1]} : vector<8x512xf32> to vector<8x128xf32>
    %cst_124 = arith.constant 5.000000e-01 : f32
    %315 = vector.broadcast %cst_124 : f32 to vector<8x128xf32>
    %316 = arith.mulf %315, %314 : vector<8x128xf32>
    %317 = math.tanh %316 : vector<8x128xf32>
    %cst_125 = arith.constant 1.000000e+00 : f32
    %318 = vector.broadcast %cst_125 : f32 to vector<8x128xf32>
    %319 = arith.addf %317, %318 : vector<8x128xf32>
    %cst_126 = arith.constant 5.000000e-01 : f32
    %320 = vector.broadcast %cst_126 : f32 to vector<8x128xf32>
    %321 = arith.mulf %320, %319 : vector<8x128xf32>
    %322 = arith.mulf %311, %284 : vector<8x128xf32>
    %323 = arith.mulf %303, %313 : vector<8x128xf32>
    %324 = arith.addf %322, %323 : vector<8x128xf32>
    %325 = math.tanh %324 : vector<8x128xf32>
    %326 = arith.mulf %321, %325 : vector<8x128xf32>
    %327 = arith.index_cast %290 : i32 to index
    %c0_127 = arith.constant 0 : index
    %328 = vector.load %arg8[%327, %c0_127] : memref<64x128xf32, #tpu.memory_space<vmem>>, vector<8x128xf32>
    tpu.vector_store %arg8[%327, %c0_127], %326 {strides = array<i32>} : memref<64x128xf32, #tpu.memory_space<vmem>>, vector<8x128xf32>,
    %c8_i32_128 = arith.constant 8 : i32
    tpu.wait_dma2 semaphore(%arg10 : memref<!tpu.dma_semaphore, #tpu.memory_space<semaphore_mem>>) src(%arg4 : memref<128x256xf32, #tpu.memory_space<any>>) dst(%arg9 : memref<128x256xf32, #tpu.memory_space<vmem>>)
    %c0_129 = arith.constant 0 : index
    %c0_130 = arith.constant 0 : index
    %329 = vector.load %arg8[%c0_129, %c0_130] : memref<64x128xf32, #tpu.memory_space<vmem>>, vector<64x128xf32>
    %c0_131 = arith.constant 0 : index
    %c0_132 = arith.constant 0 : index
    %330 = vector.load %arg9[%c0_131, %c0_132] : memref<128x256xf32, #tpu.memory_space<vmem>>, vector<128x256xf32>
    %cst_133 = arith.constant dense<0.000000e+00> : vector<64x256xf32>
    %331 = tpu.matmul %329, %330, %cst_133 {dimension_numbers = #tpu.dot_dimension_numbers<[1], [0], [0], [1], [0, 0, 1, 1], [], []>} : vector<64x128xf32>, vector<128x256xf32>, vector<64x256xf32> -> vector<64x256xf32>
    %c0_134 = arith.constant 0 : index
    %c0_135 = arith.constant 0 : index
    %332 = vector.load %arg5[%c0_134, %c0_135] : memref<1x256xf32, #tpu.memory_space<vmem>>, vector<1x256xf32>
    %333 = vector.broadcast %332 : vector<1x256xf32> to vector<64x256xf32>
    %334 = arith.addf %331, %333 : vector<64x256xf32>
    %c0_136 = arith.constant 0 : index
    %c0_137 = arith.constant 0 : index
    %335 = vector.load %arg6[%c0_136, %c0_137] : memref<64x256xf32, #tpu.memory_space<vmem>>, vector<64x256xf32>
    tpu.vector_store %arg6[%c0_136, %c0_137], %334 {strides = array<i32>} : memref<64x256xf32, #tpu.memory_space<vmem>>, vector<64x256xf32>,
    return
  }
}

</mosaic_0001>

<llo_original>
// kernel: tpu_custom_call.1
$region0: #{tpu_custom_call.1}
  #allocation0 [shape = 'u32[]', space=smem, size = 0x4, offset = 0x4, fixed_abs, tag = 'smem constant byte address 0x4 - core index']
  #allocation1 [shape = 'u32[144,128]{1,0:T(1,128)}', space=vmem, size = 0x12000, scoped, tag = 'internal scratch']
  #allocation2 [shape = 'f32[64,512]{1,0:T(8,128)}', space=vmem, size = 0x20000, scoped, tag = 'scratch operand']
  #allocation3 [shape = 'f32[64,128]{1,0:T(8,128)}', space=vmem, size = 0x8000, scoped, tag = 'scratch operand']
  #allocation4 [shape = 'f32[128,256]{1,0:T(8,128)}', space=vmem, size = 0x20000, scoped, tag = 'scratch operand']
  #allocation5 [shape = 's32[1]{0}', space=sflag, size = 0x4, scoped, tag = 'scratch operand']
  #allocation13 [shape = 's32[]', space=sflag, size = 0x4, offset = 0, fixed_abs, tag = 'sflag constant byte address 0x0 - dummy sync flag']
  #allocation14 [shape = 's32[]', space=sflag, size = 0x4, offset = 0, fixed_abs, tag = 'sflag constant byte address 0x0 - dummy sync flag']
  #allocation15 [shape = 'u32[]', space=smem, size = 0x4, offset = 0x44, fixed_abs, tag = 'smem constant byte address 0x44 - assertion arg 0']
  #allocation16 [shape = 'u32[]', space=smem, size = 0x4, offset = 0x48, fixed_abs, tag = 'smem constant byte address 0x48 - assertion arg 1']
  %s0 = inlined_call_operand.hbm [shape: f32[64,128], index: 0, kind: input, shape index: {}]
  %s1 = inlined_call_operand.hbm [shape: f32[128,512], index: 1, kind: input, shape index: {}]
  %s2 = inlined_call_operand.hbm [shape: f32[128,512], index: 2, kind: input, shape index: {}]
  %s3 = inlined_call_operand.vmem [shape: f32[1,512], index: 3, kind: input, shape index: {}]
  %s4 = inlined_call_operand.hbm [shape: f32[128,256], index: 4, kind: input, shape index: {}]
  %s5 = inlined_call_operand.vmem [shape: f32[1,256], index: 5, kind: input, shape index: {}]
  %s6 = inlined_call_operand.hbm [shape: f32[64,256], index: 6, kind: output, shape index: {}]
  %s7 = sld [smem:[#allocation0]]
  $region46: #{tpu_custom_call.1} parent=0
    _
  %s9 = ssub.s32 1, %s7
  %s10 = scalar_select 0, %s9, %s7
  $region1: #{tpu_custom_call.1} parent=0
    #allocation6 [shape = 'u8[32768]{0}', space=vmem, size = 0x8000, scoped, tag = 'input window, operand 0, single buffered']
    #allocation7 [shape = 's32[1]{0}', space=sflag, size = 0x4, scoped, tag = 'scoped memory for tpu_custom_call.1']
    #allocation8 [shape = 's32[1]{0}', space=sflag, size = 0x4, scoped, tag = 'scoped memory for tpu_custom_call.1']
    #allocation9 [shape = 'u8[262144]{0}', space=vmem, size = 0x40000, scoped, tag = 'input window, operand 1, single buffered']
    #allocation10 [shape = 's32[1]{0}', space=sflag, size = 0x4, scoped, tag = 'scoped memory for tpu_custom_call.1']
    #allocation11 [shape = 'u8[262144]{0}', space=vmem, size = 0x40000, scoped, tag = 'input window, operand 2, single buffered']
    #allocation12 [shape = 'u8[65536]{0}', space=vmem, size = 0x10000, scoped, tag = 'output window, operand 0, single buffered']
    %11 = vsyncpa [#allocation7], 0
    %12 = vsyncpa [#allocation10], 0
    %13 = vsyncpa [#allocation8], 0
    // Predicated region
    $region2: #{tpu_custom_call.1} parent=1 // pred_check
      _
    $region3: #{tpu_custom_call.1} parent=1 // pred_check_branch
      %15 = sbr.rel (0) target = $region5
    $region4: #{tpu_custom_call.1} parent=1 // pred_region
      %s17 = ssub.s32 1024, 1024
      %18 = vsyncadd [#allocation7], %s17
      %s19 = sshll.u32 [#allocation6], 4
      %s20 = int_to_ptr.vmem [resolvable:$true] %s19
      %25 = dma.hbm_to_vmem [thread:$0]  %s0, 1024, %s20, [#allocation7], 128, 128, 8
    $region5: #{tpu_custom_call.1} parent=1 // pred_fallthru
      _
    // Predicated region
    $region6: #{tpu_custom_call.1} parent=1 // pred_check
      _
    $region7: #{tpu_custom_call.1} parent=1 // pred_check_branch
      %27 = sbr.rel (0) target = $region9
    $region8: #{tpu_custom_call.1} parent=1 // pred_region
      %s29 = ssub.s32 8192, 8192
      %30 = vsyncadd [#allocation10], %s29
      %s31 = sshll.u32 [#allocation9], 4
      %s32 = int_to_ptr.vmem [resolvable:$true] %s31
      %37 = dma.hbm_to_vmem [thread:$0]  %s1, 8192, %s32, [#allocation10], 512, 512, 32
    $region9: #{tpu_custom_call.1} parent=1 // pred_fallthru
      _
    // Predicated region
    $region10: #{tpu_custom_call.1} parent=1 // pred_check
      _
    $region11: #{tpu_custom_call.1} parent=1 // pred_check_branch
      %39 = sbr.rel (0) target = $region13
    $region12: #{tpu_custom_call.1} parent=1 // pred_region
      %s41 = ssub.s32 8192, 8192
      %42 = vsyncadd [#allocation10], %s41
      %s43 = sshll.u32 [#allocation11], 4
      %s44 = int_to_ptr.vmem [resolvable:$true] %s43
      %49 = dma.hbm_to_vmem [thread:$0]  %s2, 8192, %s44, [#allocation10], 512, 512, 32
    $region13: #{tpu_custom_call.1} parent=1 // pred_fallthru
      _
    // Predicated region
    $region14: #{tpu_custom_call.1} parent=1 // pred_check
      _
    $region15: #{tpu_custom_call.1} parent=1 // pred_check_branch
      %51 = sbr.rel (0) target = $region17
    $region16: #{tpu_custom_call.1} parent=1 // pred_region
      _
    $region17: #{tpu_custom_call.1} parent=1 // pred_fallthru
      _
    // Predicated region
    $region18: #{tpu_custom_call.1} parent=1 // pred_check
      _
    $region19: #{tpu_custom_call.1} parent=1 // pred_check_branch
      %53 = sbr.rel (0) target = $region21
    $region20: #{tpu_custom_call.1} parent=1 // pred_region
      _
    $region21: #{tpu_custom_call.1} parent=1 // pred_fallthru
      _
    // Predicated region
    $region22: #{tpu_custom_call.1} parent=1 // pred_check
      _
    $region23: #{tpu_custom_call.1} parent=1 // pred_check_branch
      %55 = sbr.rel (0) target = $region25
    $region24: #{tpu_custom_call.1} parent=1 // pred_region
      %56 = dma.done [#allocation7], 1024
    $region25: #{tpu_custom_call.1} parent=1 // pred_fallthru
      _
    // Predicated region
    $region26: #{tpu_custom_call.1} parent=1 // pred_check
      _
    $region27: #{tpu_custom_call.1} parent=1 // pred_check_branch
      %58 = sbr.rel (0) target = $region29
    $region28: #{tpu_custom_call.1} parent=1 // pred_region
      %59 = dma.done [#allocation10], 8192
    $region29: #{tpu_custom_call.1} parent=1 // pred_fallthru
      _
    // Predicated region
    $region30: #{tpu_custom_call.1} parent=1 // pred_check
      _
    $region31: #{tpu_custom_call.1} parent=1 // pred_check_branch
      %61 = sbr.rel (0) target = $region33
    $region32: #{tpu_custom_call.1} parent=1 // pred_region
      %62 = dma.done [#allocation10], 8192
    $region33: #{tpu_custom_call.1} parent=1 // pred_fallthru
      _
    // Predicated region
    $region34: #{tpu_custom_call.1} parent=1 // pred_check
      _
    $region35: #{tpu_custom_call.1} parent=1 // pred_check_branch
      %64 = sbr.rel target = $region37
    $region36: #{tpu_custom_call.1} parent=1 // pred_region
      %65 = sst [smem:[#allocation15]] [#allocation14]
      %66 = sst [smem:[#allocation16]] [#allocation13]
    $region37: #{tpu_custom_call.1} parent=1 // pred_fallthru
      _
    %68 = shalt.err (0)
    %s70 = sshll.u32 [#allocation4], 4
    %s71 = int_to_ptr.vmem [resolvable:$true] %s70
    %73 = dma.hbm_to_vmem [thread:$0]  %s4, 4096, %s71, [#allocation5]
    %v74 = vld [vmem:[#allocation6] sm:$0xff]
    %v75 = vld [vmem:[#allocation6 + $0x8] sm:$0xff]
    %v76 = vld [vmem:[#allocation6 + $0x10] sm:$0xff]
    %v77 = vld [vmem:[#allocation6 + $0x18] sm:$0xff]
    %v78 = vld [vmem:[#allocation6 + $0x20] sm:$0xff]
    %v79 = vld [vmem:[#allocation6 + $0x28] sm:$0xff]
    %v80 = vld [vmem:[#allocation6 + $0x30] sm:$0xff]
    %v81 = vld [vmem:[#allocation6 + $0x38] sm:$0xff]
    %v82 = vld [vmem:[#allocation9] sm:$0xff]
    %v83 = vld [vmem:[#allocation9 + $0x8] sm:$0xff]
    %v84 = vld [vmem:[#allocation9 + $0x10] sm:$0xff]
    %v85 = vld [vmem:[#allocation9 + $0x18] sm:$0xff]
    %v86 = vld [vmem:[#allocation9 + $0x20] sm:$0xff]
    %v87 = vld [vmem:[#allocation9 + $0x28] sm:$0xff]
    %v88 = vld [vmem:[#allocation9 + $0x30] sm:$0xff]
    %v89 = vld [vmem:[#allocation9 + $0x38] sm:$0xff]
    %v90 = vld [vmem:[#allocation9 + $0x40] sm:$0xff]
    %v91 = vld [vmem:[#allocation9 + $0x48] sm:$0xff]
    %v92 = vld [vmem:[#allocation9 + $0x50] sm:$0xff]
    %v93 = vld [vmem:[#allocation9 + $0x58] sm:$0xff]
    %v94 = vld [vmem:[#allocation9 + $0x60] sm:$0xff]
    %v95 = vld [vmem:[#allocation9 + $0x68] sm:$0xff]
    %v96 = vld [vmem:[#allocation9 + $0x70] sm:$0xff]
    %v97 = vld [vmem:[#allocation9 + $0x78] sm:$0xff]
    %v98 = vld [vmem:[#allocation9 + $0x80] sm:$0xff]
    %v99 = vld [vmem:[#allocation9 + $0x88] sm:$0xff]
    %v100 = vld [vmem:[#allocation9 + $0x90] sm:$0xff]
    %v101 = vld [vmem:[#allocation9 + $0x98] sm:$0xff]
    %v102 = vld [vmem:[#allocation9 + $0xa0] sm:$0xff]
    %v103 = vld [vmem:[#allocation9 + $0xa8] sm:$0xff]
    %v104 = vld [vmem:[#allocation9 + $0xb0] sm:$0xff]
    %v105 = vld [vmem:[#allocation9 + $0xb8] sm:$0xff]
    %v106 = vld [vmem:[#allocation9 + $0xc0] sm:$0xff]
    %v107 = vld [vmem:[#allocation9 + $0xc8] sm:$0xff]
    %v108 = vld [vmem:[#allocation9 + $0xd0] sm:$0xff]
    %v109 = vld [vmem:[#allocation9 + $0xd8] sm:$0xff]
    %v110 = vld [vmem:[#allocation9 + $0xe0] sm:$0xff]
    %v111 = vld [vmem:[#allocation9 + $0xe8] sm:$0xff]
    %v112 = vld [vmem:[#allocation9 + $0xf0] sm:$0xff]
    %v113 = vld [vmem:[#allocation9 + $0xf8] sm:$0xff]
    %v114 = vld [vmem:[#allocation9 + $0x100] sm:$0xff]
    %v115 = vld [vmem:[#allocation9 + $0x108] sm:$0xff]
    %v116 = vld [vmem:[#allocation9 + $0x110] sm:$0xff]
    %v117 = vld [vmem:[#allocation9 + $0x118] sm:$0xff]
    %v118 = vld [vmem:[#allocation9 + $0x120] sm:$0xff]
    %v119 = vld [vmem:[#allocation9 + $0x128] sm:$0xff]
    %v120 = vld [vmem:[#allocation9 + $0x130] sm:$0xff]
    %v121 = vld [vmem:[#allocation9 + $0x138] sm:$0xff]
    %v122 = vld [vmem:[#allocation9 + $0x140] sm:$0xff]
    %v123 = vld [vmem:[#allocation9 + $0x148] sm:$0xff]
    %v124 = vld [vmem:[#allocation9 + $0x150] sm:$0xff]
    %v125 = vld [vmem:[#allocation9 + $0x158] sm:$0xff]
    %v126 = vld [vmem:[#allocation9 + $0x160] sm:$0xff]
    %v127 = vld [vmem:[#allocation9 + $0x168] sm:$0xff]
    %v128 = vld [vmem:[#allocation9 + $0x170] sm:$0xff]
    %v129 = vld [vmem:[#allocation9 + $0x178] sm:$0xff]
    %v130 = vld [vmem:[#allocation9 + $0x180] sm:$0xff]
    %v131 = vld [vmem:[#allocation9 + $0x188] sm:$0xff]
    %v132 = vld [vmem:[#allocation9 + $0x190] sm:$0xff]
    %v133 = vld [vmem:[#allocation9 + $0x198] sm:$0xff]
    %v134 = vld [vmem:[#allocation9 + $0x1a0] sm:$0xff]
    %v135 = vld [vmem:[#allocation9 + $0x1a8] sm:$0xff]
    %v136 = vld [vmem:[#allocation9 + $0x1b0] sm:$0xff]
    %v137 = vld [vmem:[#allocation9 + $0x1b8] sm:$0xff]
    %v138 = vld [vmem:[#allocation9 + $0x1c0] sm:$0xff]
    %v139 = vld [vmem:[#allocation9 + $0x1c8] sm:$0xff]
    %v140 = vld [vmem:[#allocation9 + $0x1d0] sm:$0xff]
    %v141 = vld [vmem:[#allocation9 + $0x1d8] sm:$0xff]
    %v142 = vld [vmem:[#allocation9 + $0x1e0] sm:$0xff]
    %v143 = vld [vmem:[#allocation9 + $0x1e8] sm:$0xff]
    %v144 = vld [vmem:[#allocation9 + $0x1f0] sm:$0xff]
    %v145 = vld [vmem:[#allocation9 + $0x1f8] sm:$0xff]
    %v146 = vld [vmem:[%s3] sm:$0xf]
    %v148 = vlaneseq
    %v149 = vshrl.u32 %v148, 7
    %v150 = vsub.s32 0, %v149
    %v151 = vrot.slane %v146, %v150
    %v152 = vlaneseq
    %v153 = vshrl.u32 %v152, 7
    %v154 = vsub.s32 1, %v153
    %v155 = vrot.slane %v146, %v154
    %v156 = vlaneseq
    %v157 = vshrl.u32 %v156, 7
    %v158 = vsub.s32 2, %v157
    %v159 = vrot.slane %v146, %v158
    %v160 = vlaneseq
    %v161 = vshrl.u32 %v160, 7
    %v162 = vsub.s32 3, %v161
    %v163 = vrot.slane %v146, %v162
    %168 = vmatprep.subr.mxu0 %v83
    %169 = vmatpush1.msra.mxu0 %v82
    %170 = vmatprep.subr.mxu0 %v87
    %171 = vmatpush1.msra.mxu0 %v86
    %172 = vmatprep.subr.mxu0 %v91
    %173 = vmatpush1.msra.mxu0 %v90
    %174 = vmatprep.subr.mxu0 %v95
    %175 = vmatpush1.msra.mxu0 %v94
    %176 = vmatprep.subr.mxu0 %v99
    %177 = vmatpush1.msra.mxu0 %v98
    %178 = vmatprep.subr.mxu0 %v103
    %179 = vmatpush1.msra.mxu0 %v102
    %180 = vmatprep.subr.mxu0 %v107
    %181 = vmatpush1.msra.mxu0 %v106
    %182 = vmatprep.subr.mxu0 %v111
    %183 = vmatpush1.msra.mxu0 %v110
    %184 = vmatprep.subr.mxu0 %v115
    %185 = vmatpush1.msra.mxu0 %v114
    %186 = vmatprep.subr.mxu0 %v119
    %187 = vmatpush1.msra.mxu0 %v118
    %188 = vmatprep.subr.mxu0 %v123
    %189 = vmatpush1.msra.mxu0 %v122
    %190 = vmatprep.subr.mxu0 %v127
    %191 = vmatpush1.msra.mxu0 %v126
    %192 = vmatprep.subr.mxu0 %v131
    %193 = vmatpush1.msra.mxu0 %v130
    %194 = vmatprep.subr.mxu0 %v135
    %195 = vmatpush1.msra.mxu0 %v134
    %196 = vmatprep.subr.mxu0 %v139
    %197 = vmatpush1.msra.mxu0 %v138
    %198 = vmatprep.subr.mxu0 %v143
    %199 = vmatpush1.msra.mxu0 %v142
    %200 = vmatprep.subr.mxu0 0.0
    %201 = vmatpush1.msra.mxu0 0.0
    %202 = vmatprep.subr.mxu0 0.0
    %203 = vmatpush1.msra.mxu0 0.0
    %204 = vmatprep.subr.mxu0 0.0
    %205 = vmatpush1.msra.mxu0 0.0
    %206 = vmatprep.subr.mxu0 0.0
    %207 = vmatpush1.msra.mxu0 0.0
    %208 = vmatprep.subr.mxu0 0.0
    %209 = vmatpush1.msra.mxu0 0.0
    %210 = vmatprep.subr.mxu0 0.0
    %211 = vmatpush1.msra.mxu0 0.0
    %212 = vmatprep.subr.mxu0 0.0
    %213 = vmatpush1.msra.mxu0 0.0
    %214 = vmatprep.subr.mxu0 0.0
    %215 = vmatpush1.msra.mxu0 0.0
    %216 = vmatprep.subr.mxu0 0.0
    %217 = vmatpush1.msra.mxu0 0.0
    %218 = vmatprep.subr.mxu0 0.0
    %219 = vmatpush1.msra.mxu0 0.0
    %220 = vmatprep.subr.mxu0 0.0
    %221 = vmatpush1.msra.mxu0 0.0
    %222 = vmatprep.subr.mxu0 0.0
    %223 = vmatpush1.msra.mxu0 0.0
    %224 = vmatprep.subr.mxu0 0.0
    %225 = vmatpush1.msra.mxu0 0.0
    %226 = vmatprep.subr.mxu0 0.0
    %227 = vmatpush1.msra.mxu0 0.0
    %228 = vmatprep.subr.mxu0 0.0
    %229 = vmatpush1.msra.mxu0 0.0
    %230 = vmatprep.subr.mxu0 0.0
    %231 = vmatpush1.msra.mxu0 0.0
    %232 = vmatprep.mubr.f32.mxu0 0.0
    %233 = vmatmul.mubr.f32.gmra.mrb[0].mxu0 %v74
    %v234 = vpop.f32.mrb[0].mxu0
    %v235 = vadd.f32 %v151, %v234
    %v236 = vpop.f32.mrb[0].mxu0
    %v237 = vadd.f32 %v155, %v236
    %238 = vmatprep.mubr.f32.mxu0 0.0
    %239 = vmatmul.mubr.f32.gmra.mrb[0].mxu0 %v75
    %v240 = vpop.f32.mrb[0].mxu0
    %v241 = vadd.f32 %v151, %v240
    %v242 = vpop.f32.mrb[0].mxu0
    %v243 = vadd.f32 %v155, %v242
    %244 = vmatprep.mubr.f32.mxu0 0.0
    %245 = vmatmul.mubr.f32.gmra.mrb[0].mxu0 %v76
    %v246 = vpop.f32.mrb[0].mxu0
    %v247 = vadd.f32 %v151, %v246
    %v248 = vpop.f32.mrb[0].mxu0
    %v249 = vadd.f32 %v155, %v248
    %250 = vmatprep.mubr.f32.mxu0 0.0
    %251 = vmatmul.mubr.f32.gmra.mrb[0].mxu0 %v77
    %v252 = vpop.f32.mrb[0].mxu0
    %v253 = vadd.f32 %v151, %v252
    %v254 = vpop.f32.mrb[0].mxu0
    %v255 = vadd.f32 %v155, %v254
    %256 = vmatprep.mubr.f32.mxu0 0.0
    %257 = vmatmul.mubr.f32.gmra.mrb[0].mxu0 %v78
    %v258 = vpop.f32.mrb[0].mxu0
    %v259 = vadd.f32 %v151, %v258
    %v260 = vpop.f32.mrb[0].mxu0
    %v261 = vadd.f32 %v155, %v260
    %262 = vmatprep.mubr.f32.mxu0 0.0
    %263 = vmatmul.mubr.f32.gmra.mrb[0].mxu0 %v79
    %v264 = vpop.f32.mrb[0].mxu0
    %v265 = vadd.f32 %v151, %v264
    %v266 = vpop.f32.mrb[0].mxu0
    %v267 = vadd.f32 %v155, %v266
    %268 = vmatprep.mubr.f32.mxu0 0.0
    %269 = vmatmul.mubr.f32.gmra.mrb[0].mxu0 %v80
    %v270 = vpop.f32.mrb[0].mxu0
    %v271 = vadd.f32 %v151, %v270
    %v272 = vpop.f32.mrb[0].mxu0
    %v273 = vadd.f32 %v155, %v272
    %274 = vmatprep.mubr.f32.mxu0 0.0
    %275 = vmatmul.mubr.f32.gmra.mrb[0].mxu0 %v81
    %v276 = vpop.f32.mrb[0].mxu0
    %v277 = vadd.f32 %v151, %v276
    %v278 = vpop.f32.mrb[0].mxu0
    %v279 = vadd.f32 %v155, %v278
    %280 = vdwg.mxu0
    %281 = vmatprep.subr.mxu0 %v85
    %282 = vmatpush1.msra.mxu0 %v84
    %283 = vmatprep.subr.mxu0 %v89
    %284 = vmatpush1.msra.mxu0 %v88
    %285 = vmatprep.subr.mxu0 %v93
    %286 = vmatpush1.msra.mxu0 %v92
    %287 = vmatprep.subr.mxu0 %v97
    %288 = vmatpush1.msra.mxu0 %v96
    %289 = vmatprep.subr.mxu0 %v101
    %290 = vmatpush1.msra.mxu0 %v100
    %291 = vmatprep.subr.mxu0 %v105
    %292 = vmatpush1.msra.mxu0 %v104
    %293 = vmatprep.subr.mxu0 %v109
    %294 = vmatpush1.msra.mxu0 %v108
    %295 = vmatprep.subr.mxu0 %v113
    %296 = vmatpush1.msra.mxu0 %v112
    %297 = vmatprep.subr.mxu0 %v117
    %298 = vmatpush1.msra.mxu0 %v116
    %299 = vmatprep.subr.mxu0 %v121
    %300 = vmatpush1.msra.mxu0 %v120
    %301 = vmatprep.subr.mxu0 %v125
    %302 = vmatpush1.msra.mxu0 %v124
    %303 = vmatprep.subr.mxu0 %v129
    %304 = vmatpush1.msra.mxu0 %v128
    %305 = vmatprep.subr.mxu0 %v133
    %306 = vmatpush1.msra.mxu0 %v132
    %307 = vmatprep.subr.mxu0 %v137
    %308 = vmatpush1.msra.mxu0 %v136
    %309 = vmatprep.subr.mxu0 %v141
    %310 = vmatpush1.msra.mxu0 %v140
    %311 = vmatprep.subr.mxu0 %v145
    %312 = vmatpush1.msra.mxu0 %v144
    %313 = vmatprep.subr.mxu0 0.0
    %314 = vmatpush1.msra.mxu0 0.0
    %315 = vmatprep.subr.mxu0 0.0
    %316 = vmatpush1.msra.mxu0 0.0
    %317 = vmatprep.subr.mxu0 0.0
    %318 = vmatpush1.msra.mxu0 0.0
    %319 = vmatprep.subr.mxu0 0.0
    %320 = vmatpush1.msra.mxu0 0.0
    %321 = vmatprep.subr.mxu0 0.0
    %322 = vmatpush1.msra.mxu0 0.0
    %323 = vmatprep.subr.mxu0 0.0
    %324 = vmatpush1.msra.mxu0 0.0
    %325 = vmatprep.subr.mxu0 0.0
    %326 = vmatpush1.msra.mxu0 0.0
    %327 = vmatprep.subr.mxu0 0.0
    %328 = vmatpush1.msra.mxu0 0.0
    %329 = vmatprep.subr.mxu0 0.0
    %330 = vmatpush1.msra.mxu0 0.0
    %331 = vmatprep.subr.mxu0 0.0
    %332 = vmatpush1.msra.mxu0 0.0
    %333 = vmatprep.subr.mxu0 0.0
    %334 = vmatpush1.msra.mxu0 0.0
    %335 = vmatprep.subr.mxu0 0.0
    %336 = vmatpush1.msra.mxu0 0.0
    %337 = vmatprep.subr.mxu0 0.0
    %338 = vmatpush1.msra.mxu0 0.0
    %339 = vmatprep.subr.mxu0 0.0
    %340 = vmatpush1.msra.mxu0 0.0
    %341 = vmatprep.subr.mxu0 0.0
    %342 = vmatpush1.msra.mxu0 0.0
    %343 = vmatprep.subr.mxu0 0.0
    %344 = vmatpush1.msra.mxu0 0.0
    %345 = vmatprep.mubr.f32.mxu0 0.0
    %346 = vmatmul.mubr.f32.gmra.mrb[0].mxu0 %v74
    %v347 = vpop.f32.mrb[0].mxu0
    %v348 = vadd.f32 %v159, %v347
    %v349 = vpop.f32.mrb[0].mxu0
    %v350 = vadd.f32 %v163, %v349
    %351 = vmatprep.mubr.f32.mxu0 0.0
    %352 = vmatmul.mubr.f32.gmra.mrb[0].mxu0 %v75
    %v353 = vpop.f32.mrb[0].mxu0
    %v354 = vadd.f32 %v159, %v353
    %v355 = vpop.f32.mrb[0].mxu0
    %v356 = vadd.f32 %v163, %v355
    %357 = vmatprep.mubr.f32.mxu0 0.0
    %358 = vmatmul.mubr.f32.gmra.mrb[0].mxu0 %v76
    %v359 = vpop.f32.mrb[0].mxu0
    %v360 = vadd.f32 %v159, %v359
    %v361 = vpop.f32.mrb[0].mxu0
    %v362 = vadd.f32 %v163, %v361
    %363 = vmatprep.mubr.f32.mxu0 0.0
    %364 = vmatmul.mubr.f32.gmra.mrb[0].mxu0 %v77
    %v365 = vpop.f32.mrb[0].mxu0
    %v366 = vadd.f32 %v159, %v365
    %v367 = vpop.f32.mrb[0].mxu0
    %v368 = vadd.f32 %v163, %v367
    %369 = vmatprep.mubr.f32.mxu0 0.0
    %370 = vmatmul.mubr.f32.gmra.mrb[0].mxu0 %v78
    %v371 = vpop.f32.mrb[0].mxu0
    %v372 = vadd.f32 %v159, %v371
    %v373 = vpop.f32.mrb[0].mxu0
    %v374 = vadd.f32 %v163, %v373
    %375 = vmatprep.mubr.f32.mxu0 0.0
    %376 = vmatmul.mubr.f32.gmra.mrb[0].mxu0 %v79
    %v377 = vpop.f32.mrb[0].mxu0
    %v378 = vadd.f32 %v159, %v377
    %v379 = vpop.f32.mrb[0].mxu0
    %v380 = vadd.f32 %v163, %v379
    %381 = vmatprep.mubr.f32.mxu0 0.0
    %382 = vmatmul.mubr.f32.gmra.mrb[0].mxu0 %v80
    %v383 = vpop.f32.mrb[0].mxu0
    %v384 = vadd.f32 %v159, %v383
    %v385 = vpop.f32.mrb[0].mxu0
    %v386 = vadd.f32 %v163, %v385
    %387 = vmatprep.mubr.f32.mxu0 0.0
    %388 = vmatmul.mubr.f32.gmra.mrb[0].mxu0 %v81
    %v389 = vpop.f32.mrb[0].mxu0
    %v390 = vadd.f32 %v159, %v389
    %v391 = vpop.f32.mrb[0].mxu0
    %v392 = vadd.f32 %v163, %v391
    %393 = vdwg.mxu0
    %394 = vst [vmem:[#allocation2] sm:$0xff] %v235
    %395 = vst [vmem:[#allocation2 + $0x8] sm:$0xff] %v237
    %396 = vst [vmem:[#allocation2 + $0x10] sm:$0xff] %v348
    %397 = vst [vmem:[#allocation2 + $0x18] sm:$0xff] %v350
    %398 = vst [vmem:[#allocation2 + $0x20] sm:$0xff] %v241
    %399 = vst [vmem:[#allocation2 + $0x28] sm:$0xff] %v243
    %400 = vst [vmem:[#allocation2 + $0x30] sm:$0xff] %v354
    %401 = vst [vmem:[#allocation2 + $0x38] sm:$0xff] %v356
    %402 = vst [vmem:[#allocation2 + $0x40] sm:$0xff] %v247
    %403 = vst [vmem:[#allocation2 + $0x48] sm:$0xff] %v249
    %404 = vst [vmem:[#allocation2 + $0x50] sm:$0xff] %v360
    %405 = vst [vmem:[#allocation2 + $0x58] sm:$0xff] %v362
    %406 = vst [vmem:[#allocation2 + $0x60] sm:$0xff] %v253
    %407 = vst [vmem:[#allocation2 + $0x68] sm:$0xff] %v255
    %408 = vst [vmem:[#allocation2 + $0x70] sm:$0xff] %v366
    %409 = vst [vmem:[#allocation2 + $0x78] sm:$0xff] %v368
    %410 = vst [vmem:[#allocation2 + $0x80] sm:$0xff] %v259
    %411 = vst [vmem:[#allocation2 + $0x88] sm:$0xff] %v261
    %412 = vst [vmem:[#allocation2 + $0x90] sm:$0xff] %v372
    %413 = vst [vmem:[#allocation2 + $0x98] sm:$0xff] %v374
    %414 = vst [vmem:[#allocation2 + $0xa0] sm:$0xff] %v265
    %415 = vst [vmem:[#allocation2 + $0xa8] sm:$0xff] %v267
    %416 = vst [vmem:[#allocation2 + $0xb0] sm:$0xff] %v378
    %417 = vst [vmem:[#allocation2 + $0xb8] sm:$0xff] %v380
    %418 = vst [vmem:[#allocation2 + $0xc0] sm:$0xff] %v271
    %419 = vst [vmem:[#allocation2 + $0xc8] sm:$0xff] %v273
    %420 = vst [vmem:[#allocation2 + $0xd0] sm:$0xff] %v384
    %421 = vst [vmem:[#allocation2 + $0xd8] sm:$0xff] %v386
    %422 = vst [vmem:[#allocation2 + $0xe0] sm:$0xff] %v277
    %423 = vst [vmem:[#allocation2 + $0xe8] sm:$0xff] %v279
    %424 = vst [vmem:[#allocation2 + $0xf0] sm:$0xff] %v390
    %425 = vst [vmem:[#allocation2 + $0xf8] sm:$0xff] %v392
    %s426 = smul.u32 0, 4
    %s427 = smul.addr %s426, 8
    %s428 = scalar_lea.vmem [#allocation2], %s427
    %v429 = vld [vmem:[%s428] sm:$0xff]
    %v430 = vld [vmem:[%s428 + $0x8] sm:$0xff]
    %v431 = vld [vmem:[%s428 + $0x10] sm:$0xff]
    %v432 = vld [vmem:[%s428 + $0x18] sm:$0xff]
    %v433 = vld [vmem:[#allocation11] sm:$0xff]
    %v434 = vld [vmem:[#allocation11 + $0x8] sm:$0xff]
    %v435 = vld [vmem:[#allocation11 + $0x10] sm:$0xff]
    %v436 = vld [vmem:[#allocation11 + $0x18] sm:$0xff]
    %v437 = vld [vmem:[#allocation11 + $0x20] sm:$0xff]
    %v438 = vld [vmem:[#allocation11 + $0x28] sm:$0xff]
    %v439 = vld [vmem:[#allocation11 + $0x30] sm:$0xff]
    %v440 = vld [vmem:[#allocation11 + $0x38] sm:$0xff]
    %v441 = vld [vmem:[#allocation11 + $0x40] sm:$0xff]
    %v442 = vld [vmem:[#allocation11 + $0x48] sm:$0xff]
    %v443 = vld [vmem:[#allocation11 + $0x50] sm:$0xff]
    %v444 = vld [vmem:[#allocation11 + $0x58] sm:$0xff]
    %v445 = vld [vmem:[#allocation11 + $0x60] sm:$0xff]
    %v446 = vld [vmem:[#allocation11 + $0x68] sm:$0xff]
    %v447 = vld [vmem:[#allocation11 + $0x70] sm:$0xff]
    %v448 = vld [vmem:[#allocation11 + $0x78] sm:$0xff]
    %v449 = vld [vmem:[#allocation11 + $0x80] sm:$0xff]
    %v450 = vld [vmem:[#allocation11 + $0x88] sm:$0xff]
    %v451 = vld [vmem:[#allocation11 + $0x90] sm:$0xff]
    %v452 = vld [vmem:[#allocation11 + $0x98] sm:$0xff]
    %v453 = vld [vmem:[#allocation11 + $0xa0] sm:$0xff]
    %v454 = vld [vmem:[#allocation11 + $0xa8] sm:$0xff]
    %v455 = vld [vmem:[#allocation11 + $0xb0] sm:$0xff]
    %v456 = vld [vmem:[#allocation11 + $0xb8] sm:$0xff]
    %v457 = vld [vmem:[#allocation11 + $0xc0] sm:$0xff]
    %v458 = vld [vmem:[#allocation11 + $0xc8] sm:$0xff]
    %v459 = vld [vmem:[#allocation11 + $0xd0] sm:$0xff]
    %v460 = vld [vmem:[#allocation11 + $0xd8] sm:$0xff]
    %v461 = vld [vmem:[#allocation11 + $0xe0] sm:$0xff]
    %v462 = vld [vmem:[#allocation11 + $0xe8] sm:$0xff]
    %v463 = vld [vmem:[#allocation11 + $0xf0] sm:$0xff]
    %v464 = vld [vmem:[#allocation11 + $0xf8] sm:$0xff]
    %v465 = vld [vmem:[#allocation11 + $0x100] sm:$0xff]
    %v466 = vld [vmem:[#allocation11 + $0x108] sm:$0xff]
    %v467 = vld [vmem:[#allocation11 + $0x110] sm:$0xff]
    %v468 = vld [vmem:[#allocation11 + $0x118] sm:$0xff]
    %v469 = vld [vmem:[#allocation11 + $0x120] sm:$0xff]
    %v470 = vld [vmem:[#allocation11 + $0x128] sm:$0xff]
    %v471 = vld [vmem:[#allocation11 + $0x130] sm:$0xff]
    %v472 = vld [vmem:[#allocation11 + $0x138] sm:$0xff]
    %v473 = vld [vmem:[#allocation11 + $0x140] sm:$0xff]
    %v474 = vld [vmem:[#allocation11 + $0x148] sm:$0xff]
    %v475 = vld [vmem:[#allocation11 + $0x150] sm:$0xff]
    %v476 = vld [vmem:[#allocation11 + $0x158] sm:$0xff]
    %v477 = vld [vmem:[#allocation11 + $0x160] sm:$0xff]
    %v478 = vld [vmem:[#allocation11 + $0x168] sm:$0xff]
    %v479 = vld [vmem:[#allocation11 + $0x170] sm:$0xff]
    %v480 = vld [vmem:[#allocation11 + $0x178] sm:$0xff]
    %v481 = vld [vmem:[#allocation11 + $0x180] sm:$0xff]
    %v482 = vld [vmem:[#allocation11 + $0x188] sm:$0xff]
    %v483 = vld [vmem:[#allocation11 + $0x190] sm:$0xff]
    %v484 = vld [vmem:[#allocation11 + $0x198] sm:$0xff]
    %v485 = vld [vmem:[#allocation11 + $0x1a0] sm:$0xff]
    %v486 = vld [vmem:[#allocation11 + $0x1a8] sm:$0xff]
    %v487 = vld [vmem:[#allocation11 + $0x1b0] sm:$0xff]
    %v488 = vld [vmem:[#allocation11 + $0x1b8] sm:$0xff]
    %v489 = vld [vmem:[#allocation11 + $0x1c0] sm:$0xff]
    %v490 = vld [vmem:[#allocation11 + $0x1c8] sm:$0xff]
    %v491 = vld [vmem:[#allocation11 + $0x1d0] sm:$0xff]
    %v492 = vld [vmem:[#allocation11 + $0x1d8] sm:$0xff]
    %v493 = vld [vmem:[#allocation11 + $0x1e0] sm:$0xff]
    %v494 = vld [vmem:[#allocation11 + $0x1e8] sm:$0xff]
    %v495 = vld [vmem:[#allocation11 + $0x1f0] sm:$0xff]
    %v496 = vld [vmem:[#allocation11 + $0x1f8] sm:$0xff]
    %497 = vmatprep.subr.mxu0 %v434
    %498 = vmatpush1.msra.mxu0 %v433
    %499 = vmatprep.subr.mxu0 %v438
    %500 = vmatpush1.msra.mxu0 %v437
    %501 = vmatprep.subr.mxu0 %v442
    %502 = vmatpush1.msra.mxu0 %v441
    %503 = vmatprep.subr.mxu0 %v446
    %504 = vmatpush1.msra.mxu0 %v445
    %505 = vmatprep.subr.mxu0 %v450
    %506 = vmatpush1.msra.mxu0 %v449
    %507 = vmatprep.subr.mxu0 %v454
    %508 = vmatpush1.msra.mxu0 %v453
    %509 = vmatprep.subr.mxu0 %v458
    %510 = vmatpush1.msra.mxu0 %v457
    %511 = vmatprep.subr.mxu0 %v462
    %512 = vmatpush1.msra.mxu0 %v461
    %513 = vmatprep.subr.mxu0 %v466
    %514 = vmatpush1.msra.mxu0 %v465
    %515 = vmatprep.subr.mxu0 %v470
    %516 = vmatpush1.msra.mxu0 %v469
    %517 = vmatprep.subr.mxu0 %v474
    %518 = vmatpush1.msra.mxu0 %v473
    %519 = vmatprep.subr.mxu0 %v478
    %520 = vmatpush1.msra.mxu0 %v477
    %521 = vmatprep.subr.mxu0 %v482
    %522 = vmatpush1.msra.mxu0 %v481
    %523 = vmatprep.subr.mxu0 %v486
    %524 = vmatpush1.msra.mxu0 %v485
    %525 = vmatprep.subr.mxu0 %v490
    %526 = vmatpush1.msra.mxu0 %v489
    %527 = vmatprep.subr.mxu0 %v494
    %528 = vmatpush1.msra.mxu0 %v493
    %529 = vmatprep.subr.mxu0 0.0
    %530 = vmatpush1.msra.mxu0 0.0
    %531 = vmatprep.subr.mxu0 0.0
    %532 = vmatpush1.msra.mxu0 0.0
    %533 = vmatprep.subr.mxu0 0.0
    %534 = vmatpush1.msra.mxu0 0.0
    %535 = vmatprep.subr.mxu0 0.0
    %536 = vmatpush1.msra.mxu0 0.0
    %537 = vmatprep.subr.mxu0 0.0
    %538 = vmatpush1.msra.mxu0 0.0
    %539 = vmatprep.subr.mxu0 0.0
    %540 = vmatpush1.msra.mxu0 0.0
    %541 = vmatprep.subr.mxu0 0.0
    %542 = vmatpush1.msra.mxu0 0.0
    %543 = vmatprep.subr.mxu0 0.0
    %544 = vmatpush1.msra.mxu0 0.0
    %545 = vmatprep.subr.mxu0 0.0
    %546 = vmatpush1.msra.mxu0 0.0
    %547 = vmatprep.subr.mxu0 0.0
    %548 = vmatpush1.msra.mxu0 0.0
    %549 = vmatprep.subr.mxu0 0.0
    %550 = vmatpush1.msra.mxu0 0.0
    %551 = vmatprep.subr.mxu0 0.0
    %552 = vmatpush1.msra.mxu0 0.0
    %553 = vmatprep.subr.mxu0 0.0
    %554 = vmatpush1.msra.mxu0 0.0
    %555 = vmatprep.subr.mxu0 0.0
    %556 = vmatpush1.msra.mxu0 0.0
    %557 = vmatprep.subr.mxu0 0.0
    %558 = vmatpush1.msra.mxu0 0.0
    %559 = vmatprep.subr.mxu0 0.0
    %560 = vmatpush1.msra.mxu0 0.0
    %561 = vmatprep.mubr.f32.mxu0 0.0
    %562 = vmatmul.mubr.f32.gmra.mrb[0].mxu0 0.0
    %v563 = vpop.f32.mrb[0].mxu0
    %v564 = vadd.f32 0.0, %v563
    %v565 = vpop.f32.mrb[0].mxu0
    %v566 = vadd.f32 0.0, %v565
    %567 = vdwg.mxu0
    %568 = vmatprep.subr.mxu0 %v436
    %569 = vmatpush1.msra.mxu0 %v435
    %570 = vmatprep.subr.mxu0 %v440
    %571 = vmatpush1.msra.mxu0 %v439
    %572 = vmatprep.subr.mxu0 %v444
    %573 = vmatpush1.msra.mxu0 %v443
    %574 = vmatprep.subr.mxu0 %v448
    %575 = vmatpush1.msra.mxu0 %v447
    %576 = vmatprep.subr.mxu0 %v452
    %577 = vmatpush1.msra.mxu0 %v451
    %578 = vmatprep.subr.mxu0 %v456
    %579 = vmatpush1.msra.mxu0 %v455
    %580 = vmatprep.subr.mxu0 %v460
    %581 = vmatpush1.msra.mxu0 %v459
    %582 = vmatprep.subr.mxu0 %v464
    %583 = vmatpush1.msra.mxu0 %v463
    %584 = vmatprep.subr.mxu0 %v468
    %585 = vmatpush1.msra.mxu0 %v467
    %586 = vmatprep.subr.mxu0 %v472
    %587 = vmatpush1.msra.mxu0 %v471
    %588 = vmatprep.subr.mxu0 %v476
    %589 = vmatpush1.msra.mxu0 %v475
    %590 = vmatprep.subr.mxu0 %v480
    %591 = vmatpush1.msra.mxu0 %v479
    %592 = vmatprep.subr.mxu0 %v484
    %593 = vmatpush1.msra.mxu0 %v483
    %594 = vmatprep.subr.mxu0 %v488
    %595 = vmatpush1.msra.mxu0 %v487
    %596 = vmatprep.subr.mxu0 %v492
    %597 = vmatpush1.msra.mxu0 %v491
    %598 = vmatprep.subr.mxu0 %v496
    %599 = vmatpush1.msra.mxu0 %v495
    %600 = vmatprep.subr.mxu0 0.0
    %601 = vmatpush1.msra.mxu0 0.0
    %602 = vmatprep.subr.mxu0 0.0
    %603 = vmatpush1.msra.mxu0 0.0
    %604 = vmatprep.subr.mxu0 0.0
    %605 = vmatpush1.msra.mxu0 0.0
    %606 = vmatprep.subr.mxu0 0.0
    %607 = vmatpush1.msra.mxu0 0.0
    %608 = vmatprep.subr.mxu0 0.0
    %609 = vmatpush1.msra.mxu0 0.0
    %610 = vmatprep.subr.mxu0 0.0
    %611 = vmatpush1.msra.mxu0 0.0
    %612 = vmatprep.subr.mxu0 0.0
    %613 = vmatpush1.msra.mxu0 0.0
    %614 = vmatprep.subr.mxu0 0.0
    %615 = vmatpush1.msra.mxu0 0.0
    %616 = vmatprep.subr.mxu0 0.0
    %617 = vmatpush1.msra.mxu0 0.0
    %618 = vmatprep.subr.mxu0 0.0
    %619 = vmatpush1.msra.mxu0 0.0
    %620 = vmatprep.subr.mxu0 0.0
    %621 = vmatpush1.msra.mxu0 0.0
    %622 = vmatprep.subr.mxu0 0.0
    %623 = vmatpush1.msra.mxu0 0.0
    %624 = vmatprep.subr.mxu0 0.0
    %625 = vmatpush1.msra.mxu0 0.0
    %626 = vmatprep.subr.mxu0 0.0
    %627 = vmatpush1.msra.mxu0 0.0
    %628 = vmatprep.subr.mxu0 0.0
    %629 = vmatpush1.msra.mxu0 0.0
    %630 = vmatprep.subr.mxu0 0.0
    %631 = vmatpush1.msra.mxu0 0.0
    %632 = vmatprep.mubr.f32.mxu0 0.0
    %633 = vmatmul.mubr.f32.gmra.mrb[0].mxu0 0.0
    %v634 = vpop.f32.mrb[0].mxu0
    %v635 = vadd.f32 0.0, %v634
    %v636 = vpop.f32.mrb[0].mxu0
    %v637 = vadd.f32 0.0, %v636
    %638 = vdwg.mxu0
    %v639 = vadd.f32 %v429, %v564
    %v640 = vadd.f32 %v430, %v566
    %v641 = vadd.f32 %v431, %v635
    %v642 = vadd.f32 %v432, %v637
    %v643 = vmul.f32 %v639, 0.5
    %v644 = vtanh.pop %v643
    %v645 = vadd.f32 %v644, 1.0
    %v646 = vmul.f32 %v645, 0.5
    %v647 = vmul.f32 %v640, 0.5
    %v648 = vtanh.pop %v647
    %v649 = vadd.f32 %v648, 1.0
    %v650 = vmul.f32 %v649, 0.5
    %v651 = vtanh.pop %v641
    %v652 = vmul.f32 %v642, 0.5
    %v653 = vtanh.pop %v652
    %v654 = vadd.f32 %v653, 1.0
    %v655 = vmul.f32 %v654, 0.5
    %v656 = vmul.f32 %v650, 0.0
    %v657 = vmul.f32 %v646, %v651
    %v658 = vadd.f32 %v656, %v657
    %v659 = vtanh.pop %v658
    %v660 = vmul.f32 %v655, %v659
    %661 = vst [vmem:[#allocation3] sm:$0xff] %v660
    %s662 = smul.u32 1, 4
    %s663 = smul.addr %s662, 8
    %s664 = scalar_lea.vmem [#allocation2], %s663
    %v665 = vld [vmem:[%s664] sm:$0xff]
    %v666 = vld [vmem:[%s664 + $0x8] sm:$0xff]
    %v667 = vld [vmem:[%s664 + $0x10] sm:$0xff]
    %v668 = vld [vmem:[%s664 + $0x18] sm:$0xff]
    %v669 = vld [vmem:[#allocation11] sm:$0xff]
    %v670 = vld [vmem:[#allocation11 + $0x8] sm:$0xff]
    %v671 = vld [vmem:[#allocation11 + $0x10] sm:$0xff]
    %v672 = vld [vmem:[#allocation11 + $0x18] sm:$0xff]
    %v673 = vld [vmem:[#allocation11 + $0x20] sm:$0xff]
    %v674 = vld [vmem:[#allocation11 + $0x28] sm:$0xff]
    %v675 = vld [vmem:[#allocation11 + $0x30] sm:$0xff]
    %v676 = vld [vmem:[#allocation11 + $0x38] sm:$0xff]
    %v677 = vld [vmem:[#allocation11 + $0x40] sm:$0xff]
    %v678 = vld [vmem:[#allocation11 + $0x48] sm:$0xff]
    %v679 = vld [vmem:[#allocation11 + $0x50] sm:$0xff]
    %v680 = vld [vmem:[#allocation11 + $0x58] sm:$0xff]
    %v681 = vld [vmem:[#allocation11 + $0x60] sm:$0xff]
    %v682 = vld [vmem:[#allocation11 + $0x68] sm:$0xff]
    %v683 = vld [vmem:[#allocation11 + $0x70] sm:$0xff]
    %v684 = vld [vmem:[#allocation11 + $0x78] sm:$0xff]
    %v685 = vld [vmem:[#allocation11 + $0x80] sm:$0xff]
    %v686 = vld [vmem:[#allocation11 + $0x88] sm:$0xff]
    %v687 = vld [vmem:[#allocation11 + $0x90] sm:$0xff]
    %v688 = vld [vmem:[#allocation11 + $0x98] sm:$0xff]
    %v689 = vld [vmem:[#allocation11 + $0xa0] sm:$0xff]
    %v690 = vld [vmem:[#allocation11 + $0xa8] sm:$0xff]
    %v691 = vld [vmem:[#allocation11 + $0xb0] sm:$0xff]
    %v692 = vld [vmem:[#allocation11 + $0xb8] sm:$0xff]
    %v693 = vld [vmem:[#allocation11 + $0xc0] sm:$0xff]
    %v694 = vld [vmem:[#allocation11 + $0xc8] sm:$0xff]
    %v695 = vld [vmem:[#allocation11 + $0xd0] sm:$0xff]
    %v696 = vld [vmem:[#allocation11 + $0xd8] sm:$0xff]
    %v697 = vld [vmem:[#allocation11 + $0xe0] sm:$0xff]
    %v698 = vld [vmem:[#allocation11 + $0xe8] sm:$0xff]
    %v699 = vld [vmem:[#allocation11 + $0xf0] sm:$0xff]
    %v700 = vld [vmem:[#allocation11 + $0xf8] sm:$0xff]
    %v701 = vld [vmem:[#allocation11 + $0x100] sm:$0xff]
    %v702 = vld [vmem:[#allocation11 + $0x108] sm:$0xff]
    %v703 = vld [vmem:[#allocation11 + $0x110] sm:$0xff]
    %v704 = vld [vmem:[#allocation11 + $0x118] sm:$0xff]
    %v705 = vld [vmem:[#allocation11 + $0x120] sm:$0xff]
    %v706 = vld [vmem:[#allocation11 + $0x128] sm:$0xff]
    %v707 = vld [vmem:[#allocation11 + $0x130] sm:$0xff]
    %v708 = vld [vmem:[#allocation11 + $0x138] sm:$0xff]
    %v709 = vld [vmem:[#allocation11 + $0x140] sm:$0xff]
    %v710 = vld [vmem:[#allocation11 + $0x148] sm:$0xff]
    %v711 = vld [vmem:[#allocation11 + $0x150] sm:$0xff]
    %v712 = vld [vmem:[#allocation11 + $0x158] sm:$0xff]
    %v713 = vld [vmem:[#allocation11 + $0x160] sm:$0xff]
    %v714 = vld [vmem:[#allocation11 + $0x168] sm:$0xff]
    %v715 = vld [vmem:[#allocation11 + $0x170] sm:$0xff]
    %v716 = vld [vmem:[#allocation11 + $0x178] sm:$0xff]
    %v717 = vld [vmem:[#allocation11 + $0x180] sm:$0xff]
    %v718 = vld [vmem:[#allocation11 + $0x188] sm:$0xff]
    %v719 = vld [vmem:[#allocation11 + $0x190] sm:$0xff]
    %v720 = vld [vmem:[#allocation11 + $0x198] sm:$0xff]
    %v721 = vld [vmem:[#allocation11 + $0x1a0] sm:$0xff]
    %v722 = vld [vmem:[#allocation11 + $0x1a8] sm:$0xff]
    %v723 = vld [vmem:[#allocation11 + $0x1b0] sm:$0xff]
    %v724 = vld [vmem:[#allocation11 + $0x1b8] sm:$0xff]
    %v725 = vld [vmem:[#allocation11 + $0x1c0] sm:$0xff]
    %v726 = vld [vmem:[#allocation11 + $0x1c8] sm:$0xff]
    %v727 = vld [vmem:[#allocation11 + $0x1d0] sm:$0xff]
    %v728 = vld [vmem:[#allocation11 + $0x1d8] sm:$0xff]
    %v729 = vld [vmem:[#allocation11 + $0x1e0] sm:$0xff]
    %v730 = vld [vmem:[#allocation11 + $0x1e8] sm:$0xff]
    %v731 = vld [vmem:[#allocation11 + $0x1f0] sm:$0xff]
    %v732 = vld [vmem:[#allocation11 + $0x1f8] sm:$0xff]
    %733 = vmatprep.subr.mxu0 %v670
    %734 = vmatpush1.msra.mxu0 %v669
    %735 = vmatprep.subr.mxu0 %v674
    %736 = vmatpush1.msra.mxu0 %v673
    %737 = vmatprep.subr.mxu0 %v678
    %738 = vmatpush1.msra.mxu0 %v677
    %739 = vmatprep.subr.mxu0 %v682
    %740 = vmatpush1.msra.mxu0 %v681
    %741 = vmatprep.subr.mxu0 %v686
    %742 = vmatpush1.msra.mxu0 %v685
    %743 = vmatprep.subr.mxu0 %v690
    %744 = vmatpush1.msra.mxu0 %v689
    %745 = vmatprep.subr.mxu0 %v694
    %746 = vmatpush1.msra.mxu0 %v693
    %747 = vmatprep.subr.mxu0 %v698
    %748 = vmatpush1.msra.mxu0 %v697
    %749 = vmatprep.subr.mxu0 %v702
    %750 = vmatpush1.msra.mxu0 %v701
    %751 = vmatprep.subr.mxu0 %v706
    %752 = vmatpush1.msra.mxu0 %v705
    %753 = vmatprep.subr.mxu0 %v710
    %754 = vmatpush1.msra.mxu0 %v709
    %755 = vmatprep.subr.mxu0 %v714
    %756 = vmatpush1.msra.mxu0 %v713
    %757 = vmatprep.subr.mxu0 %v718
    %758 = vmatpush1.msra.mxu0 %v717
    %759 = vmatprep.subr.mxu0 %v722
    %760 = vmatpush1.msra.mxu0 %v721
    %761 = vmatprep.subr.mxu0 %v726
    %762 = vmatpush1.msra.mxu0 %v725
    %763 = vmatprep.subr.mxu0 %v730
    %764 = vmatpush1.msra.mxu0 %v729
    %765 = vmatprep.subr.mxu0 0.0
    %766 = vmatpush1.msra.mxu0 0.0
    %767 = vmatprep.subr.mxu0 0.0
    %768 = vmatpush1.msra.mxu0 0.0
    %769 = vmatprep.subr.mxu0 0.0
    %770 = vmatpush1.msra.mxu0 0.0
    %771 = vmatprep.subr.mxu0 0.0
    %772 = vmatpush1.msra.mxu0 0.0
    %773 = vmatprep.subr.mxu0 0.0
    %774 = vmatpush1.msra.mxu0 0.0
    %775 = vmatprep.subr.mxu0 0.0
    %776 = vmatpush1.msra.mxu0 0.0
    %777 = vmatprep.subr.mxu0 0.0
    %778 = vmatpush1.msra.mxu0 0.0
    %779 = vmatprep.subr.mxu0 0.0
    %780 = vmatpush1.msra.mxu0 0.0
    %781 = vmatprep.subr.mxu0 0.0
    %782 = vmatpush1.msra.mxu0 0.0
    %783 = vmatprep.subr.mxu0 0.0
    %784 = vmatpush1.msra.mxu0 0.0
    %785 = vmatprep.subr.mxu0 0.0
    %786 = vmatpush1.msra.mxu0 0.0
    %787 = vmatprep.subr.mxu0 0.0
    %788 = vmatpush1.msra.mxu0 0.0
    %789 = vmatprep.subr.mxu0 0.0
    %790 = vmatpush1.msra.mxu0 0.0
    %791 = vmatprep.subr.mxu0 0.0
    %792 = vmatpush1.msra.mxu0 0.0
    %793 = vmatprep.subr.mxu0 0.0
    %794 = vmatpush1.msra.mxu0 0.0
    %795 = vmatprep.subr.mxu0 0.0
    %796 = vmatpush1.msra.mxu0 0.0
    %797 = vmatprep.mubr.f32.mxu0 0.0
    %798 = vmatmul.mubr.f32.gmra.mrb[0].mxu0 %v660
    %v799 = vpop.f32.mrb[0].mxu0
    %v800 = vadd.f32 0.0, %v799
    %v801 = vpop.f32.mrb[0].mxu0
    %v802 = vadd.f32 0.0, %v801
    %803 = vdwg.mxu0
    %804 = vmatprep.subr.mxu0 %v672
    %805 = vmatpush1.msra.mxu0 %v671
    %806 = vmatprep.subr.mxu0 %v676
    %807 = vmatpush1.msra.mxu0 %v675
    %808 = vmatprep.subr.mxu0 %v680
    %809 = vmatpush1.msra.mxu0 %v679
    %810 = vmatprep.subr.mxu0 %v684
    %811 = vmatpush1.msra.mxu0 %v683
    %812 = vmatprep.subr.mxu0 %v688
    %813 = vmatpush1.msra.mxu0 %v687
    %814 = vmatprep.subr.mxu0 %v692
    %815 = vmatpush1.msra.mxu0 %v691
    %816 = vmatprep.subr.mxu0 %v696
    %817 = vmatpush1.msra.mxu0 %v695
    %818 = vmatprep.subr.mxu0 %v700
    %819 = vmatpush1.msra.mxu0 %v699
    %820 = vmatprep.subr.mxu0 %v704
    %821 = vmatpush1.msra.mxu0 %v703
    %822 = vmatprep.subr.mxu0 %v708
    %823 = vmatpush1.msra.mxu0 %v707
    %824 = vmatprep.subr.mxu0 %v712
    %825 = vmatpush1.msra.mxu0 %v711
    %826 = vmatprep.subr.mxu0 %v716
    %827 = vmatpush1.msra.mxu0 %v715
    %828 = vmatprep.subr.mxu0 %v720
    %829 = vmatpush1.msra.mxu0 %v719
    %830 = vmatprep.subr.mxu0 %v724
    %831 = vmatpush1.msra.mxu0 %v723
    %832 = vmatprep.subr.mxu0 %v728
    %833 = vmatpush1.msra.mxu0 %v727
    %834 = vmatprep.subr.mxu0 %v732
    %835 = vmatpush1.msra.mxu0 %v731
    %836 = vmatprep.subr.mxu0 0.0
    %837 = vmatpush1.msra.mxu0 0.0
    %838 = vmatprep.subr.mxu0 0.0
    %839 = vmatpush1.msra.mxu0 0.0
    %840 = vmatprep.subr.mxu0 0.0
    %841 = vmatpush1.msra.mxu0 0.0
    %842 = vmatprep.subr.mxu0 0.0
    %843 = vmatpush1.msra.mxu0 0.0
    %844 = vmatprep.subr.mxu0 0.0
    %845 = vmatpush1.msra.mxu0 0.0
    %846 = vmatprep.subr.mxu0 0.0
    %847 = vmatpush1.msra.mxu0 0.0
    %848 = vmatprep.subr.mxu0 0.0
    %849 = vmatpush1.msra.mxu0 0.0
    %850 = vmatprep.subr.mxu0 0.0
    %851 = vmatpush1.msra.mxu0 0.0
    %852 = vmatprep.subr.mxu0 0.0
    %853 = vmatpush1.msra.mxu0 0.0
    %854 = vmatprep.subr.mxu0 0.0
    %855 = vmatpush1.msra.mxu0 0.0
    %856 = vmatprep.subr.mxu0 0.0
    %857 = vmatpush1.msra.mxu0 0.0
    %858 = vmatprep.subr.mxu0 0.0
    %859 = vmatpush1.msra.mxu0 0.0
    %860 = vmatprep.subr.mxu0 0.0
    %861 = vmatpush1.msra.mxu0 0.0
    %862 = vmatprep.subr.mxu0 0.0
    %863 = vmatpush1.msra.mxu0 0.0
    %864 = vmatprep.subr.mxu0 0.0
    %865 = vmatpush1.msra.mxu0 0.0
    %866 = vmatprep.subr.mxu0 0.0
    %867 = vmatpush1.msra.mxu0 0.0
    %868 = vmatprep.mubr.f32.mxu0 0.0
    %869 = vmatmul.mubr.f32.gmra.mrb[0].mxu0 %v660
    %v870 = vpop.f32.mrb[0].mxu0
    %v871 = vadd.f32 0.0, %v870
    %v872 = vpop.f32.mrb[0].mxu0
    %v873 = vadd.f32 0.0, %v872
    %874 = vdwg.mxu0
    %v875 = vadd.f32 %v665, %v800
    %v876 = vadd.f32 %v666, %v802
    %v877 = vadd.f32 %v667, %v871
    %v878 = vadd.f32 %v668, %v873
    %v879 = vmul.f32 %v875, 0.5
    %v880 = vtanh.pop %v879
    %v881 = vadd.f32 %v880, 1.0
    %v882 = vmul.f32 %v881, 0.5
    %v883 = vmul.f32 %v876, 0.5
    %v884 = vtanh.pop %v883
    %v885 = vadd.f32 %v884, 1.0
    %v886 = vmul.f32 %v885, 0.5
    %v887 = vtanh.pop %v877
    %v888 = vmul.f32 %v878, 0.5
    %v889 = vtanh.pop %v888
    %v890 = vadd.f32 %v889, 1.0
    %v891 = vmul.f32 %v890, 0.5
    %v892 = vmul.f32 %v886, %v658
    %v893 = vmul.f32 %v882, %v887
    %v894 = vadd.f32 %v892, %v893
    %v895 = vtanh.pop %v894
    %v896 = vmul.f32 %v891, %v895
    %s897 = scalar_lea.vmem [#allocation3], 8
    %898 = vst [vmem:[%s897] sm:$0xff] %v896
    %s899 = smul.u32 2, 4
    %s900 = smul.addr %s899, 8
    %s901 = scalar_lea.vmem [#allocation2], %s900
    %v902 = vld [vmem:[%s901] sm:$0xff]
    %v903 = vld [vmem:[%s901 + $0x8] sm:$0xff]
    %v904 = vld [vmem:[%s901 + $0x10] sm:$0xff]
    %v905 = vld [vmem:[%s901 + $0x18] sm:$0xff]
    %v906 = vld [vmem:[#allocation11] sm:$0xff]
    %v907 = vld [vmem:[#allocation11 + $0x8] sm:$0xff]
    %v908 = vld [vmem:[#allocation11 + $0x10] sm:$0xff]
    %v909 = vld [vmem:[#allocation11 + $0x18] sm:$0xff]
    %v910 = vld [vmem:[#allocation11 + $0x20] sm:$0xff]
    %v911 = vld [vmem:[#allocation11 + $0x28] sm:$0xff]
    %v912 = vld [vmem:[#allocation11 + $0x30] sm:$0xff]
    %v913 = vld [vmem:[#allocation11 + $0x38] sm:$0xff]
    %v914 = vld [vmem:[#allocation11 + $0x40] sm:$0xff]
    %v915 = vld [vmem:[#allocation11 + $0x48] sm:$0xff]
    %v916 = vld [vmem:[#allocation11 + $0x50] sm:$0xff]
    %v917 = vld [vmem:[#allocation11 + $0x58] sm:$0xff]
    %v918 = vld [vmem:[#allocation11 + $0x60] sm:$0xff]
    %v919 = vld [vmem:[#allocation11 + $0x68] sm:$0xff]
    %v920 = vld [vmem:[#allocation11 + $0x70] sm:$0xff]
    %v921 = vld [vmem:[#allocation11 + $0x78] sm:$0xff]
    %v922 = vld [vmem:[#allocation11 + $0x80] sm:$0xff]
    %v923 = vld [vmem:[#allocation11 + $0x88] sm:$0xff]
    %v924 = vld [vmem:[#allocation11 + $0x90] sm:$0xff]
    %v925 = vld [vmem:[#allocation11 + $0x98] sm:$0xff]
    %v926 = vld [vmem:[#allocation11 + $0xa0] sm:$0xff]
    %v927 = vld [vmem:[#allocation11 + $0xa8] sm:$0xff]
    %v928 = vld [vmem:[#allocation11 + $0xb0] sm:$0xff]
    %v929 = vld [vmem:[#allocation11 + $0xb8] sm:$0xff]
    %v930 = vld [vmem:[#allocation11 + $0xc0] sm:$0xff]
    %v931 = vld [vmem:[#allocation11 + $0xc8] sm:$0xff]
    %v932 = vld [vmem:[#allocation11 + $0xd0] sm:$0xff]
    %v933 = vld [vmem:[#allocation11 + $0xd8] sm:$0xff]
    %v934 = vld [vmem:[#allocation11 + $0xe0] sm:$0xff]
    %v935 = vld [vmem:[#allocation11 + $0xe8] sm:$0xff]
    %v936 = vld [vmem:[#allocation11 + $0xf0] sm:$0xff]
    %v937 = vld [vmem:[#allocation11 + $0xf8] sm:$0xff]
    %v938 = vld [vmem:[#allocation11 + $0x100] sm:$0xff]
    %v939 = vld [vmem:[#allocation11 + $0x108] sm:$0xff]
    %v940 = vld [vmem:[#allocation11 + $0x110] sm:$0xff]
    %v941 = vld [vmem:[#allocation11 + $0x118] sm:$0xff]
    %v942 = vld [vmem:[#allocation11 + $0x120] sm:$0xff]
    %v943 = vld [vmem:[#allocation11 + $0x128] sm:$0xff]
    %v944 = vld [vmem:[#allocation11 + $0x130] sm:$0xff]
    %v945 = vld [vmem:[#allocation11 + $0x138] sm:$0xff]
    %v946 = vld [vmem:[#allocation11 + $0x140] sm:$0xff]
    %v947 = vld [vmem:[#allocation11 + $0x148] sm:$0xff]
    %v948 = vld [vmem:[#allocation11 + $0x150] sm:$0xff]
    %v949 = vld [vmem:[#allocation11 + $0x158] sm:$0xff]
    %v950 = vld [vmem:[#allocation11 + $0x160] sm:$0xff]
    %v951 = vld [vmem:[#allocation11 + $0x168] sm:$0xff]
    %v952 = vld [vmem:[#allocation11 + $0x170] sm:$0xff]
    %v953 = vld [vmem:[#allocation11 + $0x178] sm:$0xff]
    %v954 = vld [vmem:[#allocation11 + $0x180] sm:$0xff]
    %v955 = vld [vmem:[#allocation11 + $0x188] sm:$0xff]
    %v956 = vld [vmem:[#allocation11 + $0x190] sm:$0xff]
    %v957 = vld [vmem:[#allocation11 + $0x198] sm:$0xff]
    %v958 = vld [vmem:[#allocation11 + $0x1a0] sm:$0xff]
    %v959 = vld [vmem:[#allocation11 + $0x1a8] sm:$0xff]
    %v960 = vld [vmem:[#allocation11 + $0x1b0] sm:$0xff]
    %v961 = vld [vmem:[#allocation11 + $0x1b8] sm:$0xff]
    %v962 = vld [vmem:[#allocation11 + $0x1c0] sm:$0xff]
    %v963 = vld [vmem:[#allocation11 + $0x1c8] sm:$0xff]
    %v964 = vld [vmem:[#allocation11 + $0x1d0] sm:$0xff]
    %v965 = vld [vmem:[#allocation11 + $0x1d8] sm:$0xff]
    %v966 = vld [vmem:[#allocation11 + $0x1e0] sm:$0xff]
    %v967 = vld [vmem:[#allocation11 + $0x1e8] sm:$0xff]
    %v968 = vld [vmem:[#allocation11 + $0x1f0] sm:$0xff]
    %v969 = vld [vmem:[#allocation11 + $0x1f8] sm:$0xff]
    %970 = vmatprep.subr.mxu0 %v907
    %971 = vmatpush1.msra.mxu0 %v906
    %972 = vmatprep.subr.mxu0 %v911
    %973 = vmatpush1.msra.mxu0 %v910
    %974 = vmatprep.subr.mxu0 %v915
    %975 = vmatpush1.msra.mxu0 %v914
    %976 = vmatprep.subr.mxu0 %v919
    %977 = vmatpush1.msra.mxu0 %v918
    %978 = vmatprep.subr.mxu0 %v923
    %979 = vmatpush1.msra.mxu0 %v922
    %980 = vmatprep.subr.mxu0 %v927
    %981 = vmatpush1.msra.mxu0 %v926
    %982 = vmatprep.subr.mxu0 %v931
    %983 = vmatpush1.msra.mxu0 %v930
    %984 = vmatprep.subr.mxu0 %v935
    %985 = vmatpush1.msra.mxu0 %v934
    %986 = vmatprep.subr.mxu0 %v939
    %987 = vmatpush1.msra.mxu0 %v938
    %988 = vmatprep.subr.mxu0 %v943
    %989 = vmatpush1.msra.mxu0 %v942
    %990 = vmatprep.subr.mxu0 %v947
    %991 = vmatpush1.msra.mxu0 %v946
    %992 = vmatprep.subr.mxu0 %v951
    %993 = vmatpush1.msra.mxu0 %v950
    %994 = vmatprep.subr.mxu0 %v955
    %995 = vmatpush1.msra.mxu0 %v954
    %996 = vmatprep.subr.mxu0 %v959
    %997 = vmatpush1.msra.mxu0 %v958
    %998 = vmatprep.subr.mxu0 %v963
    %999 = vmatpush1.msra.mxu0 %v962
    %1000 = vmatprep.subr.mxu0 %v967
    %1001 = vmatpush1.msra.mxu0 %v966
    %1002 = vmatprep.subr.mxu0 0.0
    %1003 = vmatpush1.msra.mxu0 0.0
    %1004 = vmatprep.subr.mxu0 0.0
    %1005 = vmatpush1.msra.mxu0 0.0
    %1006 = vmatprep.subr.mxu0 0.0
    %1007 = vmatpush1.msra.mxu0 0.0
    %1008 = vmatprep.subr.mxu0 0.0
    %1009 = vmatpush1.msra.mxu0 0.0
    %1010 = vmatprep.subr.mxu0 0.0
    %1011 = vmatpush1.msra.mxu0 0.0
    %1012 = vmatprep.subr.mxu0 0.0
    %1013 = vmatpush1.msra.mxu0 0.0
    %1014 = vmatprep.subr.mxu0 0.0
    %1015 = vmatpush1.msra.mxu0 0.0
    %1016 = vmatprep.subr.mxu0 0.0
    %1017 = vmatpush1.msra.mxu0 0.0
    %1018 = vmatprep.subr.mxu0 0.0
    %1019 = vmatpush1.msra.mxu0 0.0
    %1020 = vmatprep.subr.mxu0 0.0
    %1021 = vmatpush1.msra.mxu0 0.0
    %1022 = vmatprep.subr.mxu0 0.0
    %1023 = vmatpush1.msra.mxu0 0.0
    %1024 = vmatprep.subr.mxu0 0.0
    %1025 = vmatpush1.msra.mxu0 0.0
    %1026 = vmatprep.subr.mxu0 0.0
    %1027 = vmatpush1.msra.mxu0 0.0
    %1028 = vmatprep.subr.mxu0 0.0
    %1029 = vmatpush1.msra.mxu0 0.0
    %1030 = vmatprep.subr.mxu0 0.0
    %1031 = vmatpush1.msra.mxu0 0.0
    %1032 = vmatprep.subr.mxu0 0.0
    %1033 = vmatpush1.msra.mxu0 0.0
    %1034 = vmatprep.mubr.f32.mxu0 0.0
    %1035 = vmatmul.mubr.f32.gmra.mrb[0].mxu0 %v896
    %v1036 = vpop.f32.mrb[0].mxu0
    %v1037 = vadd.f32 0.0, %v1036
    %v1038 = vpop.f32.mrb[0].mxu0
    %v1039 = vadd.f32 0.0, %v1038
    %1040 = vdwg.mxu0
    %1041 = vmatprep.subr.mxu0 %v909
    %1042 = vmatpush1.msra.mxu0 %v908
    %1043 = vmatprep.subr.mxu0 %v913
    %1044 = vmatpush1.msra.mxu0 %v912
    %1045 = vmatprep.subr.mxu0 %v917
    %1046 = vmatpush1.msra.mxu0 %v916
    %1047 = vmatprep.subr.mxu0 %v921
    %1048 = vmatpush1.msra.mxu0 %v920
    %1049 = vmatprep.subr.mxu0 %v925
    %1050 = vmatpush1.msra.mxu0 %v924
    %1051 = vmatprep.subr.mxu0 %v929
    %1052 = vmatpush1.msra.mxu0 %v928
    %1053 = vmatprep.subr.mxu0 %v933
    %1054 = vmatpush1.msra.mxu0 %v932
    %1055 = vmatprep.subr.mxu0 %v937
    %1056 = vmatpush1.msra.mxu0 %v936
    %1057 = vmatprep.subr.mxu0 %v941
    %1058 = vmatpush1.msra.mxu0 %v940
    %1059 = vmatprep.subr.mxu0 %v945
    %1060 = vmatpush1.msra.mxu0 %v944
    %1061 = vmatprep.subr.mxu0 %v949
    %1062 = vmatpush1.msra.mxu0 %v948
    %1063 = vmatprep.subr.mxu0 %v953
    %1064 = vmatpush1.msra.mxu0 %v952
    %1065 = vmatprep.subr.mxu0 %v957
    %1066 = vmatpush1.msra.mxu0 %v956
    %1067 = vmatprep.subr.mxu0 %v961
    %1068 = vmatpush1.msra.mxu0 %v960
    %1069 = vmatprep.subr.mxu0 %v965
    %1070 = vmatpush1.msra.mxu0 %v964
    %1071 = vmatprep.subr.mxu0 %v969
    %1072 = vmatpush1.msra.mxu0 %v968
    %1073 = vmatprep.subr.mxu0 0.0
    %1074 = vmatpush1.msra.mxu0 0.0
    %1075 = vmatprep.subr.mxu0 0.0
    %1076 = vmatpush1.msra.mxu0 0.0
    %1077 = vmatprep.subr.mxu0 0.0
    %1078 = vmatpush1.msra.mxu0 0.0
    %1079 = vmatprep.subr.mxu0 0.0
    %1080 = vmatpush1.msra.mxu0 0.0
    %1081 = vmatprep.subr.mxu0 0.0
    %1082 = vmatpush1.msra.mxu0 0.0
    %1083 = vmatprep.subr.mxu0 0.0
    %1084 = vmatpush1.msra.mxu0 0.0
    %1085 = vmatprep.subr.mxu0 0.0
    %1086 = vmatpush1.msra.mxu0 0.0
    %1087 = vmatprep.subr.mxu0 0.0
    %1088 = vmatpush1.msra.mxu0 0.0
    %1089 = vmatprep.subr.mxu0 0.0
    %1090 = vmatpush1.msra.mxu0 0.0
    %1091 = vmatprep.subr.mxu0 0.0
    %1092 = vmatpush1.msra.mxu0 0.0
    %1093 = vmatprep.subr.mxu0 0.0
    %1094 = vmatpush1.msra.mxu0 0.0
    %1095 = vmatprep.subr.mxu0 0.0
    %1096 = vmatpush1.msra.mxu0 0.0
    %1097 = vmatprep.subr.mxu0 0.0
    %1098 = vmatpush1.msra.mxu0 0.0
    %1099 = vmatprep.subr.mxu0 0.0
    %1100 = vmatpush1.msra.mxu0 0.0
    %1101 = vmatprep.subr.mxu0 0.0
    %1102 = vmatpush1.msra.mxu0 0.0
    %1103 = vmatprep.subr.mxu0 0.0
    %1104 = vmatpush1.msra.mxu0 0.0
    %1105 = vmatprep.mubr.f32.mxu0 0.0
    %1106 = vmatmul.mubr.f32.gmra.mrb[0].mxu0 %v896
    %v1107 = vpop.f32.mrb[0].mxu0
    %v1108 = vadd.f32 0.0, %v1107
    %v1109 = vpop.f32.mrb[0].mxu0
    %v1110 = vadd.f32 0.0, %v1109
    %1111 = vdwg.mxu0
    %v1112 = vadd.f32 %v902, %v1037
    %v1113 = vadd.f32 %v903, %v1039
    %v1114 = vadd.f32 %v904, %v1108
    %v1115 = vadd.f32 %v905, %v1110
    %v1116 = vmul.f32 %v1112, 0.5
    %v1117 = vtanh.pop %v1116
    %v1118 = vadd.f32 %v1117, 1.0
    %v1119 = vmul.f32 %v1118, 0.5
    %v1120 = vmul.f32 %v1113, 0.5
    %v1121 = vtanh.pop %v1120
    %v1122 = vadd.f32 %v1121, 1.0
    %v1123 = vmul.f32 %v1122, 0.5
    %v1124 = vtanh.pop %v1114
    %v1125 = vmul.f32 %v1115, 0.5
    %v1126 = vtanh.pop %v1125
    %v1127 = vadd.f32 %v1126, 1.0
    %v1128 = vmul.f32 %v1127, 0.5
    %v1129 = vmul.f32 %v1123, %v894
    %v1130 = vmul.f32 %v1119, %v1124
    %v1131 = vadd.f32 %v1129, %v1130
    %v1132 = vtanh.pop %v1131
    %v1133 = vmul.f32 %v1128, %v1132
    %s1134 = scalar_lea.vmem [#allocation3], 16
    %1135 = vst [vmem:[%s1134] sm:$0xff] %v1133
    %s1136 = smul.u32 3, 4
    %s1137 = smul.addr %s1136, 8
    %s1138 = scalar_lea.vmem [#allocation2], %s1137
    %v1139 = vld [vmem:[%s1138] sm:$0xff]
    %v1140 = vld [vmem:[%s1138 + $0x8] sm:$0xff]
    %v1141 = vld [vmem:[%s1138 + $0x10] sm:$0xff]
    %v1142 = vld [vmem:[%s1138 + $0x18] sm:$0xff]
    %v1143 = vld [vmem:[#allocation11] sm:$0xff]
    %v1144 = vld [vmem:[#allocation11 + $0x8] sm:$0xff]
    %v1145 = vld [vmem:[#allocation11 + $0x10] sm:$0xff]
    %v1146 = vld [vmem:[#allocation11 + $0x18] sm:$0xff]
    %v1147 = vld [vmem:[#allocation11 + $0x20] sm:$0xff]
    %v1148 = vld [vmem:[#allocation11 + $0x28] sm:$0xff]
    %v1149 = vld [vmem:[#allocation11 + $0x30] sm:$0xff]
    %v1150 = vld [vmem:[#allocation11 + $0x38] sm:$0xff]
    %v1151 = vld [vmem:[#allocation11 + $0x40] sm:$0xff]
    %v1152 = vld [vmem:[#allocation11 + $0x48] sm:$0xff]
    %v1153 = vld [vmem:[#allocation11 + $0x50] sm:$0xff]
    %v1154 = vld [vmem:[#allocation11 + $0x58] sm:$0xff]
    %v1155 = vld [vmem:[#allocation11 + $0x60] sm:$0xff]
    %v1156 = vld [vmem:[#allocation11 + $0x68] sm:$0xff]
    %v1157 = vld [vmem:[#allocation11 + $0x70] sm:$0xff]
    %v1158 = vld [vmem:[#allocation11 + $0x78] sm:$0xff]
    %v1159 = vld [vmem:[#allocation11 + $0x80] sm:$0xff]
    %v1160 = vld [vmem:[#allocation11 + $0x88] sm:$0xff]
    %v1161 = vld [vmem:[#allocation11 + $0x90] sm:$0xff]
    %v1162 = vld [vmem:[#allocation11 + $0x98] sm:$0xff]
    %v1163 = vld [vmem:[#allocation11 + $0xa0] sm:$0xff]
    %v1164 = vld [vmem:[#allocation11 + $0xa8] sm:$0xff]
    %v1165 = vld [vmem:[#allocation11 + $0xb0] sm:$0xff]
    %v1166 = vld [vmem:[#allocation11 + $0xb8] sm:$0xff]
    %v1167 = vld [vmem:[#allocation11 + $0xc0] sm:$0xff]
    %v1168 = vld [vmem:[#allocation11 + $0xc8] sm:$0xff]
    %v1169 = vld [vmem:[#allocation11 + $0xd0] sm:$0xff]
    %v1170 = vld [vmem:[#allocation11 + $0xd8] sm:$0xff]
    %v1171 = vld [vmem:[#allocation11 + $0xe0] sm:$0xff]
    %v1172 = vld [vmem:[#allocation11 + $0xe8] sm:$0xff]
    %v1173 = vld [vmem:[#allocation11 + $0xf0] sm:$0xff]
    %v1174 = vld [vmem:[#allocation11 + $0xf8] sm:$0xff]
    %v1175 = vld [vmem:[#allocation11 + $0x100] sm:$0xff]
    %v1176 = vld [vmem:[#allocation11 + $0x108] sm:$0xff]
    %v1177 = vld [vmem:[#allocation11 + $0x110] sm:$0xff]
    %v1178 = vld [vmem:[#allocation11 + $0x118] sm:$0xff]
    %v1179 = vld [vmem:[#allocation11 + $0x120] sm:$0xff]
    %v1180 = vld [vmem:[#allocation11 + $0x128] sm:$0xff]
    %v1181 = vld [vmem:[#allocation11 + $0x130] sm:$0xff]
    %v1182 = vld [vmem:[#allocation11 + $0x138] sm:$0xff]
    %v1183 = vld [vmem:[#allocation11 + $0x140] sm:$0xff]
    %v1184 = vld [vmem:[#allocation11 + $0x148] sm:$0xff]
    %v1185 = vld [vmem:[#allocation11 + $0x150] sm:$0xff]
    %v1186 = vld [vmem:[#allocation11 + $0x158] sm:$0xff]
    %v1187 = vld [vmem:[#allocation11 + $0x160] sm:$0xff]
    %v1188 = vld [vmem:[#allocation11 + $0x168] sm:$0xff]
    %v1189 = vld [vmem:[#allocation11 + $0x170] sm:$0xff]
    %v1190 = vld [vmem:[#allocation11 + $0x178] sm:$0xff]
    %v1191 = vld [vmem:[#allocation11 + $0x180] sm:$0xff]
    %v1192 = vld [vmem:[#allocation11 + $0x188] sm:$0xff]
    %v1193 = vld [vmem:[#allocation11 + $0x190] sm:$0xff]
    %v1194 = vld [vmem:[#allocation11 + $0x198] sm:$0xff]
    %v1195 = vld [vmem:[#allocation11 + $0x1a0] sm:$0xff]
    %v1196 = vld [vmem:[#allocation11 + $0x1a8] sm:$0xff]
    %v1197 = vld [vmem:[#allocation11 + $0x1b0] sm:$0xff]
    %v1198 = vld [vmem:[#allocation11 + $0x1b8] sm:$0xff]
    %v1199 = vld [vmem:[#allocation11 + $0x1c0] sm:$0xff]
    %v1200 = vld [vmem:[#allocation11 + $0x1c8] sm:$0xff]
    %v1201 = vld [vmem:[#allocation11 + $0x1d0] sm:$0xff]
    %v1202 = vld [vmem:[#allocation11 + $0x1d8] sm:$0xff]
    %v1203 = vld [vmem:[#allocation11 + $0x1e0] sm:$0xff]
    %v1204 = vld [vmem:[#allocation11 + $0x1e8] sm:$0xff]
    %v1205 = vld [vmem:[#allocation11 + $0x1f0] sm:$0xff]
    %v1206 = vld [vmem:[#allocation11 + $0x1f8] sm:$0xff]
    %1207 = vmatprep.subr.mxu0 %v1144
    %1208 = vmatpush1.msra.mxu0 %v1143
    %1209 = vmatprep.subr.mxu0 %v1148
    %1210 = vmatpush1.msra.mxu0 %v1147
    %1211 = vmatprep.subr.mxu0 %v1152
    %1212 = vmatpush1.msra.mxu0 %v1151
    %1213 = vmatprep.subr.mxu0 %v1156
    %1214 = vmatpush1.msra.mxu0 %v1155
    %1215 = vmatprep.subr.mxu0 %v1160
    %1216 = vmatpush1.msra.mxu0 %v1159
    %1217 = vmatprep.subr.mxu0 %v1164
    %1218 = vmatpush1.msra.mxu0 %v1163
    %1219 = vmatprep.subr.mxu0 %v1168
    %1220 = vmatpush1.msra.mxu0 %v1167
    %1221 = vmatprep.subr.mxu0 %v1172
    %1222 = vmatpush1.msra.mxu0 %v1171
    %1223 = vmatprep.subr.mxu0 %v1176
    %1224 = vmatpush1.msra.mxu0 %v1175
    %1225 = vmatprep.subr.mxu0 %v1180
    %1226 = vmatpush1.msra.mxu0 %v1179
    %1227 = vmatprep.subr.mxu0 %v1184
    %1228 = vmatpush1.msra.mxu0 %v1183
    %1229 = vmatprep.subr.mxu0 %v1188
    %1230 = vmatpush1.msra.mxu0 %v1187
    %1231 = vmatprep.subr.mxu0 %v1192
    %1232 = vmatpush1.msra.mxu0 %v1191
    %1233 = vmatprep.subr.mxu0 %v1196
    %1234 = vmatpush1.msra.mxu0 %v1195
    %1235 = vmatprep.subr.mxu0 %v1200
    %1236 = vmatpush1.msra.mxu0 %v1199
    %1237 = vmatprep.subr.mxu0 %v1204
    %1238 = vmatpush1.msra.mxu0 %v1203
    %1239 = vmatprep.subr.mxu0 0.0
    %1240 = vmatpush1.msra.mxu0 0.0
    %1241 = vmatprep.subr.mxu0 0.0
    %1242 = vmatpush1.msra.mxu0 0.0
    %1243 = vmatprep.subr.mxu0 0.0
    %1244 = vmatpush1.msra.mxu0 0.0
    %1245 = vmatprep.subr.mxu0 0.0
    %1246 = vmatpush1.msra.mxu0 0.0
    %1247 = vmatprep.subr.mxu0 0.0
    %1248 = vmatpush1.msra.mxu0 0.0
    %1249 = vmatprep.subr.mxu0 0.0
    %1250 = vmatpush1.msra.mxu0 0.0
    %1251 = vmatprep.subr.mxu0 0.0
    %1252 = vmatpush1.msra.mxu0 0.0
    %1253 = vmatprep.subr.mxu0 0.0
    %1254 = vmatpush1.msra.mxu0 0.0
    %1255 = vmatprep.subr.mxu0 0.0
    %1256 = vmatpush1.msra.mxu0 0.0
    %1257 = vmatprep.subr.mxu0 0.0
    %1258 = vmatpush1.msra.mxu0 0.0
    %1259 = vmatprep.subr.mxu0 0.0
    %1260 = vmatpush1.msra.mxu0 0.0
    %1261 = vmatprep.subr.mxu0 0.0
    %1262 = vmatpush1.msra.mxu0 0.0
    %1263 = vmatprep.subr.mxu0 0.0
    %1264 = vmatpush1.msra.mxu0 0.0
    %1265 = vmatprep.subr.mxu0 0.0
    %1266 = vmatpush1.msra.mxu0 0.0
    %1267 = vmatprep.subr.mxu0 0.0
    %1268 = vmatpush1.msra.mxu0 0.0
    %1269 = vmatprep.subr.mxu0 0.0
    %1270 = vmatpush1.msra.mxu0 0.0
    %1271 = vmatprep.mubr.f32.mxu0 0.0
    %1272 = vmatmul.mubr.f32.gmra.mrb[0].mxu0 %v1133
    %v1273 = vpop.f32.mrb[0].mxu0
    %v1274 = vadd.f32 0.0, %v1273
    %v1275 = vpop.f32.mrb[0].mxu0
    %v1276 = vadd.f32 0.0, %v1275
    %1277 = vdwg.mxu0
    %1278 = vmatprep.subr.mxu0 %v1146
    %1279 = vmatpush1.msra.mxu0 %v1145
    %1280 = vmatprep.subr.mxu0 %v1150
    %1281 = vmatpush1.msra.mxu0 %v1149
    %1282 = vmatprep.subr.mxu0 %v1154
    %1283 = vmatpush1.msra.mxu0 %v1153
    %1284 = vmatprep.subr.mxu0 %v1158
    %1285 = vmatpush1.msra.mxu0 %v1157
    %1286 = vmatprep.subr.mxu0 %v1162
    %1287 = vmatpush1.msra.mxu0 %v1161
    %1288 = vmatprep.subr.mxu0 %v1166
    %1289 = vmatpush1.msra.mxu0 %v1165
    %1290 = vmatprep.subr.mxu0 %v1170
    %1291 = vmatpush1.msra.mxu0 %v1169
    %1292 = vmatprep.subr.mxu0 %v1174
    %1293 = vmatpush1.msra.mxu0 %v1173
    %1294 = vmatprep.subr.mxu0 %v1178
    %1295 = vmatpush1.msra.mxu0 %v1177
    %1296 = vmatprep.subr.mxu0 %v1182
    %1297 = vmatpush1.msra.mxu0 %v1181
    %1298 = vmatprep.subr.mxu0 %v1186
    %1299 = vmatpush1.msra.mxu0 %v1185
    %1300 = vmatprep.subr.mxu0 %v1190
    %1301 = vmatpush1.msra.mxu0 %v1189
    %1302 = vmatprep.subr.mxu0 %v1194
    %1303 = vmatpush1.msra.mxu0 %v1193
    %1304 = vmatprep.subr.mxu0 %v1198
    %1305 = vmatpush1.msra.mxu0 %v1197
    %1306 = vmatprep.subr.mxu0 %v1202
    %1307 = vmatpush1.msra.mxu0 %v1201
    %1308 = vmatprep.subr.mxu0 %v1206
    %1309 = vmatpush1.msra.mxu0 %v1205
    %1310 = vmatprep.subr.mxu0 0.0
    %1311 = vmatpush1.msra.mxu0 0.0
    %1312 = vmatprep.subr.mxu0 0.0
    %1313 = vmatpush1.msra.mxu0 0.0
    %1314 = vmatprep.subr.mxu0 0.0
    %1315 = vmatpush1.msra.mxu0 0.0
    %1316 = vmatprep.subr.mxu0 0.0
    %1317 = vmatpush1.msra.mxu0 0.0
    %1318 = vmatprep.subr.mxu0 0.0
    %1319 = vmatpush1.msra.mxu0 0.0
    %1320 = vmatprep.subr.mxu0 0.0
    %1321 = vmatpush1.msra.mxu0 0.0
    %1322 = vmatprep.subr.mxu0 0.0
    %1323 = vmatpush1.msra.mxu0 0.0
    %1324 = vmatprep.subr.mxu0 0.0
    %1325 = vmatpush1.msra.mxu0 0.0
    %1326 = vmatprep.subr.mxu0 0.0
    %1327 = vmatpush1.msra.mxu0 0.0
    %1328 = vmatprep.subr.mxu0 0.0
    %1329 = vmatpush1.msra.mxu0 0.0
    %1330 = vmatprep.subr.mxu0 0.0
    %1331 = vmatpush1.msra.mxu0 0.0
    %1332 = vmatprep.subr.mxu0 0.0
    %1333 = vmatpush1.msra.mxu0 0.0
    %1334 = vmatprep.subr.mxu0 0.0
    %1335 = vmatpush1.msra.mxu0 0.0
    %1336 = vmatprep.subr.mxu0 0.0
    %1337 = vmatpush1.msra.mxu0 0.0
    %1338 = vmatprep.subr.mxu0 0.0
    %1339 = vmatpush1.msra.mxu0 0.0
    %1340 = vmatprep.subr.mxu0 0.0
    %1341 = vmatpush1.msra.mxu0 0.0
    %1342 = vmatprep.mubr.f32.mxu0 0.0
    %1343 = vmatmul.mubr.f32.gmra.mrb[0].mxu0 %v1133
    %v1344 = vpop.f32.mrb[0].mxu0
    %v1345 = vadd.f32 0.0, %v1344
    %v1346 = vpop.f32.mrb[0].mxu0
    %v1347 = vadd.f32 0.0, %v1346
    %1348 = vdwg.mxu0
    %v1349 = vadd.f32 %v1139, %v1274
    %v1350 = vadd.f32 %v1140, %v1276
    %v1351 = vadd.f32 %v1141, %v1345
    %v1352 = vadd.f32 %v1142, %v1347
    %v1353 = vmul.f32 %v1349, 0.5
    %v1354 = vtanh.pop %v1353
    %v1355 = vadd.f32 %v1354, 1.0
    %v1356 = vmul.f32 %v1355, 0.5
    %v1357 = vmul.f32 %v1350, 0.5
    %v1358 = vtanh.pop %v1357
    %v1359 = vadd.f32 %v1358, 1.0
    %v1360 = vmul.f32 %v1359, 0.5
    %v1361 = vtanh.pop %v1351
    %v1362 = vmul.f32 %v1352, 0.5
    %v1363 = vtanh.pop %v1362
    %v1364 = vadd.f32 %v1363, 1.0
    %v1365 = vmul.f32 %v1364, 0.5
    %v1366 = vmul.f32 %v1360, %v1131
    %v1367 = vmul.f32 %v1356, %v1361
    %v1368 = vadd.f32 %v1366, %v1367
    %v1369 = vtanh.pop %v1368
    %v1370 = vmul.f32 %v1365, %v1369
    %s1371 = scalar_lea.vmem [#allocation3], 24
    %1372 = vst [vmem:[%s1371] sm:$0xff] %v1370
    %s1373 = smul.u32 4, 4
    %s1374 = smul.addr %s1373, 8
    %s1375 = scalar_lea.vmem [#allocation2], %s1374
    %v1376 = vld [vmem:[%s1375] sm:$0xff]
    %v1377 = vld [vmem:[%s1375 + $0x8] sm:$0xff]
    %v1378 = vld [vmem:[%s1375 + $0x10] sm:$0xff]
    %v1379 = vld [vmem:[%s1375 + $0x18] sm:$0xff]
    %v1380 = vld [vmem:[#allocation11] sm:$0xff]
    %v1381 = vld [vmem:[#allocation11 + $0x8] sm:$0xff]
    %v1382 = vld [vmem:[#allocation11 + $0x10] sm:$0xff]
    %v1383 = vld [vmem:[#allocation11 + $0x18] sm:$0xff]
    %v1384 = vld [vmem:[#allocation11 + $0x20] sm:$0xff]
    %v1385 = vld [vmem:[#allocation11 + $0x28] sm:$0xff]
    %v1386 = vld [vmem:[#allocation11 + $0x30] sm:$0xff]
    %v1387 = vld [vmem:[#allocation11 + $0x38] sm:$0xff]
    %v1388 = vld [vmem:[#allocation11 + $0x40] sm:$0xff]
    %v1389 = vld [vmem:[#allocation11 + $0x48] sm:$0xff]
    %v1390 = vld [vmem:[#allocation11 + $0x50] sm:$0xff]
    %v1391 = vld [vmem:[#allocation11 + $0x58] sm:$0xff]
    %v1392 = vld [vmem:[#allocation11 + $0x60] sm:$0xff]
    %v1393 = vld [vmem:[#allocation11 + $0x68] sm:$0xff]
    %v1394 = vld [vmem:[#allocation11 + $0x70] sm:$0xff]
    %v1395 = vld [vmem:[#allocation11 + $0x78] sm:$0xff]
    %v1396 = vld [vmem:[#allocation11 + $0x80] sm:$0xff]
    %v1397 = vld [vmem:[#allocation11 + $0x88] sm:$0xff]
    %v1398 = vld [vmem:[#allocation11 + $0x90] sm:$0xff]
    %v1399 = vld [vmem:[#allocation11 + $0x98] sm:$0xff]
    %v1400 = vld [vmem:[#allocation11 + $0xa0] sm:$0xff]
    %v1401 = vld [vmem:[#allocation11 + $0xa8] sm:$0xff]
    %v1402 = vld [vmem:[#allocation11 + $0xb0] sm:$0xff]
    %v1403 = vld [vmem:[#allocation11 + $0xb8] sm:$0xff]
    %v1404 = vld [vmem:[#allocation11 + $0xc0] sm:$0xff]
    %v1405 = vld [vmem:[#allocation11 + $0xc8] sm:$0xff]
    %v1406 = vld [vmem:[#allocation11 + $0xd0] sm:$0xff]
    %v1407 = vld [vmem:[#allocation11 + $0xd8] sm:$0xff]
    %v1408 = vld [vmem:[#allocation11 + $0xe0] sm:$0xff]
    %v1409 = vld [vmem:[#allocation11 + $0xe8] sm:$0xff]
    %v1410 = vld [vmem:[#allocation11 + $0xf0] sm:$0xff]
    %v1411 = vld [vmem:[#allocation11 + $0xf8] sm:$0xff]
    %v1412 = vld [vmem:[#allocation11 + $0x100] sm:$0xff]
    %v1413 = vld [vmem:[#allocation11 + $0x108] sm:$0xff]
    %v1414 = vld [vmem:[#allocation11 + $0x110] sm:$0xff]
    %v1415 = vld [vmem:[#allocation11 + $0x118] sm:$0xff]
    %v1416 = vld [vmem:[#allocation11 + $0x120] sm:$0xff]
    %v1417 = vld [vmem:[#allocation11 + $0x128] sm:$0xff]
    %v1418 = vld [vmem:[#allocation11 + $0x130] sm:$0xff]
    %v1419 = vld [vmem:[#allocation11 + $0x138] sm:$0xff]
    %v1420 = vld [vmem:[#allocation11 + $0x140] sm:$0xff]
    %v1421 = vld [vmem:[#allocation11 + $0x148] sm:$0xff]
    %v1422 = vld [vmem:[#allocation11 + $0x150] sm:$0xff]
    %v1423 = vld [vmem:[#allocation11 + $0x158] sm:$0xff]
    %v1424 = vld [vmem:[#allocation11 + $0x160] sm:$0xff]
    %v1425 = vld [vmem:[#allocation11 + $0x168] sm:$0xff]
    %v1426 = vld [vmem:[#allocation11 + $0x170] sm:$0xff]
    %v1427 = vld [vmem:[#allocation11 + $0x178] sm:$0xff]
    %v1428 = vld [vmem:[#allocation11 + $0x180] sm:$0xff]
    %v1429 = vld [vmem:[#allocation11 + $0x188] sm:$0xff]
    %v1430 = vld [vmem:[#allocation11 + $0x190] sm:$0xff]
    %v1431 = vld [vmem:[#allocation11 + $0x198] sm:$0xff]
    %v1432 = vld [vmem:[#allocation11 + $0x1a0] sm:$0xff]
    %v1433 = vld [vmem:[#allocation11 + $0x1a8] sm:$0xff]
    %v1434 = vld [vmem:[#allocation11 + $0x1b0] sm:$0xff]
    %v1435 = vld [vmem:[#allocation11 + $0x1b8] sm:$0xff]
    %v1436 = vld [vmem:[#allocation11 + $0x1c0] sm:$0xff]
    %v1437 = vld [vmem:[#allocation11 + $0x1c8] sm:$0xff]
    %v1438 = vld [vmem:[#allocation11 + $0x1d0] sm:$0xff]
    %v1439 = vld [vmem:[#allocation11 + $0x1d8] sm:$0xff]
    %v1440 = vld [vmem:[#allocation11 + $0x1e0] sm:$0xff]
    %v1441 = vld [vmem:[#allocation11 + $0x1e8] sm:$0xff]
    %v1442 = vld [vmem:[#allocation11 + $0x1f0] sm:$0xff]
    %v1443 = vld [vmem:[#allocation11 + $0x1f8] sm:$0xff]
    %1444 = vmatprep.subr.mxu0 %v1381
    %1445 = vmatpush1.msra.mxu0 %v1380
    %1446 = vmatprep.subr.mxu0 %v1385
    %1447 = vmatpush1.msra.mxu0 %v1384
    %1448 = vmatprep.subr.mxu0 %v1389
    %1449 = vmatpush1.msra.mxu0 %v1388
    %1450 = vmatprep.subr.mxu0 %v1393
    %1451 = vmatpush1.msra.mxu0 %v1392
    %1452 = vmatprep.subr.mxu0 %v1397
    %1453 = vmatpush1.msra.mxu0 %v1396
    %1454 = vmatprep.subr.mxu0 %v1401
    %1455 = vmatpush1.msra.mxu0 %v1400
    %1456 = vmatprep.subr.mxu0 %v1405
    %1457 = vmatpush1.msra.mxu0 %v1404
    %1458 = vmatprep.subr.mxu0 %v1409
    %1459 = vmatpush1.msra.mxu0 %v1408
    %1460 = vmatprep.subr.mxu0 %v1413
    %1461 = vmatpush1.msra.mxu0 %v1412
    %1462 = vmatprep.subr.mxu0 %v1417
    %1463 = vmatpush1.msra.mxu0 %v1416
    %1464 = vmatprep.subr.mxu0 %v1421
    %1465 = vmatpush1.msra.mxu0 %v1420
    %1466 = vmatprep.subr.mxu0 %v1425
    %1467 = vmatpush1.msra.mxu0 %v1424
    %1468 = vmatprep.subr.mxu0 %v1429
    %1469 = vmatpush1.msra.mxu0 %v1428
    %1470 = vmatprep.subr.mxu0 %v1433
    %1471 = vmatpush1.msra.mxu0 %v1432
    %1472 = vmatprep.subr.mxu0 %v1437
    %1473 = vmatpush1.msra.mxu0 %v1436
    %1474 = vmatprep.subr.mxu0 %v1441
    %1475 = vmatpush1.msra.mxu0 %v1440
    %1476 = vmatprep.subr.mxu0 0.0
    %1477 = vmatpush1.msra.mxu0 0.0
    %1478 = vmatprep.subr.mxu0 0.0
    %1479 = vmatpush1.msra.mxu0 0.0
    %1480 = vmatprep.subr.mxu0 0.0
    %1481 = vmatpush1.msra.mxu0 0.0
    %1482 = vmatprep.subr.mxu0 0.0
    %1483 = vmatpush1.msra.mxu0 0.0
    %1484 = vmatprep.subr.mxu0 0.0
    %1485 = vmatpush1.msra.mxu0 0.0
    %1486 = vmatprep.subr.mxu0 0.0
    %1487 = vmatpush1.msra.mxu0 0.0
    %1488 = vmatprep.subr.mxu0 0.0
    %1489 = vmatpush1.msra.mxu0 0.0
    %1490 = vmatprep.subr.mxu0 0.0
    %1491 = vmatpush1.msra.mxu0 0.0
    %1492 = vmatprep.subr.mxu0 0.0
    %1493 = vmatpush1.msra.mxu0 0.0
    %1494 = vmatprep.subr.mxu0 0.0
    %1495 = vmatpush1.msra.mxu0 0.0
    %1496 = vmatprep.subr.mxu0 0.0
    %1497 = vmatpush1.msra.mxu0 0.0
    %1498 = vmatprep.subr.mxu0 0.0
    %1499 = vmatpush1.msra.mxu0 0.0
    %1500 = vmatprep.subr.mxu0 0.0
    %1501 = vmatpush1.msra.mxu0 0.0
    %1502 = vmatprep.subr.mxu0 0.0
    %1503 = vmatpush1.msra.mxu0 0.0
    %1504 = vmatprep.subr.mxu0 0.0
    %1505 = vmatpush1.msra.mxu0 0.0
    %1506 = vmatprep.subr.mxu0 0.0
    %1507 = vmatpush1.msra.mxu0 0.0
    %1508 = vmatprep.mubr.f32.mxu0 0.0
    %1509 = vmatmul.mubr.f32.gmra.mrb[0].mxu0 %v1370
    %v1510 = vpop.f32.mrb[0].mxu0
    %v1511 = vadd.f32 0.0, %v1510
    %v1512 = vpop.f32.mrb[0].mxu0
    %v1513 = vadd.f32 0.0, %v1512
    %1514 = vdwg.mxu0
    %1515 = vmatprep.subr.mxu0 %v1383
    %1516 = vmatpush1.msra.mxu0 %v1382
    %1517 = vmatprep.subr.mxu0 %v1387
    %1518 = vmatpush1.msra.mxu0 %v1386
    %1519 = vmatprep.subr.mxu0 %v1391
    %1520 = vmatpush1.msra.mxu0 %v1390
    %1521 = vmatprep.subr.mxu0 %v1395
    %1522 = vmatpush1.msra.mxu0 %v1394
    %1523 = vmatprep.subr.mxu0 %v1399
    %1524 = vmatpush1.msra.mxu0 %v1398
    %1525 = vmatprep.subr.mxu0 %v1403
    %1526 = vmatpush1.msra.mxu0 %v1402
    %1527 = vmatprep.subr.mxu0 %v1407
    %1528 = vmatpush1.msra.mxu0 %v1406
    %1529 = vmatprep.subr.mxu0 %v1411
    %1530 = vmatpush1.msra.mxu0 %v1410
    %1531 = vmatprep.subr.mxu0 %v1415
    %1532 = vmatpush1.msra.mxu0 %v1414
    %1533 = vmatprep.subr.mxu0 %v1419
    %1534 = vmatpush1.msra.mxu0 %v1418
    %1535 = vmatprep.subr.mxu0 %v1423
    %1536 = vmatpush1.msra.mxu0 %v1422
    %1537 = vmatprep.subr.mxu0 %v1427
    %1538 = vmatpush1.msra.mxu0 %v1426
    %1539 = vmatprep.subr.mxu0 %v1431
    %1540 = vmatpush1.msra.mxu0 %v1430
    %1541 = vmatprep.subr.mxu0 %v1435
    %1542 = vmatpush1.msra.mxu0 %v1434
    %1543 = vmatprep.subr.mxu0 %v1439
    %1544 = vmatpush1.msra.mxu0 %v1438
    %1545 = vmatprep.subr.mxu0 %v1443
    %1546 = vmatpush1.msra.mxu0 %v1442
    %1547 = vmatprep.subr.mxu0 0.0
    %1548 = vmatpush1.msra.mxu0 0.0
    %1549 = vmatprep.subr.mxu0 0.0
    %1550 = vmatpush1.msra.mxu0 0.0
    %1551 = vmatprep.subr.mxu0 0.0
    %1552 = vmatpush1.msra.mxu0 0.0
    %1553 = vmatprep.subr.mxu0 0.0
    %1554 = vmatpush1.msra.mxu0 0.0
    %1555 = vmatprep.subr.mxu0 0.0
    %1556 = vmatpush1.msra.mxu0 0.0
    %1557 = vmatprep.subr.mxu0 0.0
    %1558 = vmatpush1.msra.mxu0 0.0
    %1559 = vmatprep.subr.mxu0 0.0
    %1560 = vmatpush1.msra.mxu0 0.0
    %1561 = vmatprep.subr.mxu0 0.0
    %1562 = vmatpush1.msra.mxu0 0.0
    %1563 = vmatprep.subr.mxu0 0.0
    %1564 = vmatpush1.msra.mxu0 0.0
    %1565 = vmatprep.subr.mxu0 0.0
    %1566 = vmatpush1.msra.mxu0 0.0
    %1567 = vmatprep.subr.mxu0 0.0
    %1568 = vmatpush1.msra.mxu0 0.0
    %1569 = vmatprep.subr.mxu0 0.0
    %1570 = vmatpush1.msra.mxu0 0.0
    %1571 = vmatprep.subr.mxu0 0.0
    %1572 = vmatpush1.msra.mxu0 0.0
    %1573 = vmatprep.subr.mxu0 0.0
    %1574 = vmatpush1.msra.mxu0 0.0
    %1575 = vmatprep.subr.mxu0 0.0
    %1576 = vmatpush1.msra.mxu0 0.0
    %1577 = vmatprep.subr.mxu0 0.0
    %1578 = vmatpush1.msra.mxu0 0.0
    %1579 = vmatprep.mubr.f32.mxu0 0.0
    %1580 = vmatmul.mubr.f32.gmra.mrb[0].mxu0 %v1370
    %v1581 = vpop.f32.mrb[0].mxu0
    %v1582 = vadd.f32 0.0, %v1581
    %v1583 = vpop.f32.mrb[0].mxu0
    %v1584 = vadd.f32 0.0, %v1583
    %1585 = vdwg.mxu0
    %v1586 = vadd.f32 %v1376, %v1511
    %v1587 = vadd.f32 %v1377, %v1513
    %v1588 = vadd.f32 %v1378, %v1582
    %v1589 = vadd.f32 %v1379, %v1584
    %v1590 = vmul.f32 %v1586, 0.5
    %v1591 = vtanh.pop %v1590
    %v1592 = vadd.f32 %v1591, 1.0
    %v1593 = vmul.f32 %v1592, 0.5
    %v1594 = vmul.f32 %v1587, 0.5
    %v1595 = vtanh.pop %v1594
    %v1596 = vadd.f32 %v1595, 1.0
    %v1597 = vmul.f32 %v1596, 0.5
    %v1598 = vtanh.pop %v1588
    %v1599 = vmul.f32 %v1589, 0.5
    %v1600 = vtanh.pop %v1599
    %v1601 = vadd.f32 %v1600, 1.0
    %v1602 = vmul.f32 %v1601, 0.5
    %v1603 = vmul.f32 %v1597, %v1368
    %v1604 = vmul.f32 %v1593, %v1598
    %v1605 = vadd.f32 %v1603, %v1604
    %v1606 = vtanh.pop %v1605
    %v1607 = vmul.f32 %v1602, %v1606
    %s1608 = scalar_lea.vmem [#allocation3], 32
    %1609 = vst [vmem:[%s1608] sm:$0xff] %v1607
    %s1610 = smul.u32 5, 4
    %s1611 = smul.addr %s1610, 8
    %s1612 = scalar_lea.vmem [#allocation2], %s1611
    %v1613 = vld [vmem:[%s1612] sm:$0xff]
    %v1614 = vld [vmem:[%s1612 + $0x8] sm:$0xff]
    %v1615 = vld [vmem:[%s1612 + $0x10] sm:$0xff]
    %v1616 = vld [vmem:[%s1612 + $0x18] sm:$0xff]
    %v1617 = vld [vmem:[#allocation11] sm:$0xff]
    %v1618 = vld [vmem:[#allocation11 + $0x8] sm:$0xff]
    %v1619 = vld [vmem:[#allocation11 + $0x10] sm:$0xff]
    %v1620 = vld [vmem:[#allocation11 + $0x18] sm:$0xff]
    %v1621 = vld [vmem:[#allocation11 + $0x20] sm:$0xff]
    %v1622 = vld [vmem:[#allocation11 + $0x28] sm:$0xff]
    %v1623 = vld [vmem:[#allocation11 + $0x30] sm:$0xff]
    %v1624 = vld [vmem:[#allocation11 + $0x38] sm:$0xff]
    %v1625 = vld [vmem:[#allocation11 + $0x40] sm:$0xff]
    %v1626 = vld [vmem:[#allocation11 + $0x48] sm:$0xff]
    %v1627 = vld [vmem:[#allocation11 + $0x50] sm:$0xff]
    %v1628 = vld [vmem:[#allocation11 + $0x58] sm:$0xff]
    %v1629 = vld [vmem:[#allocation11 + $0x60] sm:$0xff]
    %v1630 = vld [vmem:[#allocation11 + $0x68] sm:$0xff]
    %v1631 = vld [vmem:[#allocation11 + $0x70] sm:$0xff]
    %v1632 = vld [vmem:[#allocation11 + $0x78] sm:$0xff]
    %v1633 = vld [vmem:[#allocation11 + $0x80] sm:$0xff]
    %v1634 = vld [vmem:[#allocation11 + $0x88] sm:$0xff]
    %v1635 = vld [vmem:[#allocation11 + $0x90] sm:$0xff]
    %v1636 = vld [vmem:[#allocation11 + $0x98] sm:$0xff]
    %v1637 = vld [vmem:[#allocation11 + $0xa0] sm:$0xff]
    %v1638 = vld [vmem:[#allocation11 + $0xa8] sm:$0xff]
    %v1639 = vld [vmem:[#allocation11 + $0xb0] sm:$0xff]
    %v1640 = vld [vmem:[#allocation11 + $0xb8] sm:$0xff]
    %v1641 = vld [vmem:[#allocation11 + $0xc0] sm:$0xff]
    %v1642 = vld [vmem:[#allocation11 + $0xc8] sm:$0xff]
    %v1643 = vld [vmem:[#allocation11 + $0xd0] sm:$0xff]
    %v1644 = vld [vmem:[#allocation11 + $0xd8] sm:$0xff]
    %v1645 = vld [vmem:[#allocation11 + $0xe0] sm:$0xff]
    %v1646 = vld [vmem:[#allocation11 + $0xe8] sm:$0xff]
    %v1647 = vld [vmem:[#allocation11 + $0xf0] sm:$0xff]
    %v1648 = vld [vmem:[#allocation11 + $0xf8] sm:$0xff]
    %v1649 = vld [vmem:[#allocation11 + $0x100] sm:$0xff]
    %v1650 = vld [vmem:[#allocation11 + $0x108] sm:$0xff]
    %v1651 = vld [vmem:[#allocation11 + $0x110] sm:$0xff]
    %v1652 = vld [vmem:[#allocation11 + $0x118] sm:$0xff]
    %v1653 = vld [vmem:[#allocation11 + $0x120] sm:$0xff]
    %v1654 = vld [vmem:[#allocation11 + $0x128] sm:$0xff]
    %v1655 = vld [vmem:[#allocation11 + $0x130] sm:$0xff]
    %v1656 = vld [vmem:[#allocation11 + $0x138] sm:$0xff]
    %v1657 = vld [vmem:[#allocation11 + $0x140] sm:$0xff]
    %v1658 = vld [vmem:[#allocation11 + $0x148] sm:$0xff]
    %v1659 = vld [vmem:[#allocation11 + $0x150] sm:$0xff]
    %v1660 = vld [vmem:[#allocation11 + $0x158] sm:$0xff]
    %v1661 = vld [vmem:[#allocation11 + $0x160] sm:$0xff]
    %v1662 = vld [vmem:[#allocation11 + $0x168] sm:$0xff]
    %v1663 = vld [vmem:[#allocation11 + $0x170] sm:$0xff]
    %v1664 = vld [vmem:[#allocation11 + $0x178] sm:$0xff]
    %v1665 = vld [vmem:[#allocation11 + $0x180] sm:$0xff]
    %v1666 = vld [vmem:[#allocation11 + $0x188] sm:$0xff]
    %v1667 = vld [vmem:[#allocation11 + $0x190] sm:$0xff]
    %v1668 = vld [vmem:[#allocation11 + $0x198] sm:$0xff]
    %v1669 = vld [vmem:[#allocation11 + $0x1a0] sm:$0xff]
    %v1670 = vld [vmem:[#allocation11 + $0x1a8] sm:$0xff]
    %v1671 = vld [vmem:[#allocation11 + $0x1b0] sm:$0xff]
    %v1672 = vld [vmem:[#allocation11 + $0x1b8] sm:$0xff]
    %v1673 = vld [vmem:[#allocation11 + $0x1c0] sm:$0xff]
    %v1674 = vld [vmem:[#allocation11 + $0x1c8] sm:$0xff]
    %v1675 = vld [vmem:[#allocation11 + $0x1d0] sm:$0xff]
    %v1676 = vld [vmem:[#allocation11 + $0x1d8] sm:$0xff]
    %v1677 = vld [vmem:[#allocation11 + $0x1e0] sm:$0xff]
    %v1678 = vld [vmem:[#allocation11 + $0x1e8] sm:$0xff]
    %v1679 = vld [vmem:[#allocation11 + $0x1f0] sm:$0xff]
    %v1680 = vld [vmem:[#allocation11 + $0x1f8] sm:$0xff]
    %1681 = vmatprep.subr.mxu0 %v1618
    %1682 = vmatpush1.msra.mxu0 %v1617
    %1683 = vmatprep.subr.mxu0 %v1622
    %1684 = vmatpush1.msra.mxu0 %v1621
    %1685 = vmatprep.subr.mxu0 %v1626
    %1686 = vmatpush1.msra.mxu0 %v1625
    %1687 = vmatprep.subr.mxu0 %v1630
    %1688 = vmatpush1.msra.mxu0 %v1629
    %1689 = vmatprep.subr.mxu0 %v1634
    %1690 = vmatpush1.msra.mxu0 %v1633
    %1691 = vmatprep.subr.mxu0 %v1638
    %1692 = vmatpush1.msra.mxu0 %v1637
    %1693 = vmatprep.subr.mxu0 %v1642
    %1694 = vmatpush1.msra.mxu0 %v1641
    %1695 = vmatprep.subr.mxu0 %v1646
    %1696 = vmatpush1.msra.mxu0 %v1645
    %1697 = vmatprep.subr.mxu0 %v1650
    %1698 = vmatpush1.msra.mxu0 %v1649
    %1699 = vmatprep.subr.mxu0 %v1654
    %1700 = vmatpush1.msra.mxu0 %v1653
    %1701 = vmatprep.subr.mxu0 %v1658
    %1702 = vmatpush1.msra.mxu0 %v1657
    %1703 = vmatprep.subr.mxu0 %v1662
    %1704 = vmatpush1.msra.mxu0 %v1661
    %1705 = vmatprep.subr.mxu0 %v1666
    %1706 = vmatpush1.msra.mxu0 %v1665
    %1707 = vmatprep.subr.mxu0 %v1670
    %1708 = vmatpush1.msra.mxu0 %v1669
    %1709 = vmatprep.subr.mxu0 %v1674
    %1710 = vmatpush1.msra.mxu0 %v1673
    %1711 = vmatprep.subr.mxu0 %v1678
    %1712 = vmatpush1.msra.mxu0 %v1677
    %1713 = vmatprep.subr.mxu0 0.0
    %1714 = vmatpush1.msra.mxu0 0.0
    %1715 = vmatprep.subr.mxu0 0.0
    %1716 = vmatpush1.msra.mxu0 0.0
    %1717 = vmatprep.subr.mxu0 0.0
    %1718 = vmatpush1.msra.mxu0 0.0
    %1719 = vmatprep.subr.mxu0 0.0
    %1720 = vmatpush1.msra.mxu0 0.0
    %1721 = vmatprep.subr.mxu0 0.0
    %1722 = vmatpush1.msra.mxu0 0.0
    %1723 = vmatprep.subr.mxu0 0.0
    %1724 = vmatpush1.msra.mxu0 0.0
    %1725 = vmatprep.subr.mxu0 0.0
    %1726 = vmatpush1.msra.mxu0 0.0
    %1727 = vmatprep.subr.mxu0 0.0
    %1728 = vmatpush1.msra.mxu0 0.0
    %1729 = vmatprep.subr.mxu0 0.0
    %1730 = vmatpush1.msra.mxu0 0.0
    %1731 = vmatprep.subr.mxu0 0.0
    %1732 = vmatpush1.msra.mxu0 0.0
    %1733 = vmatprep.subr.mxu0 0.0
    %1734 = vmatpush1.msra.mxu0 0.0
    %1735 = vmatprep.subr.mxu0 0.0
    %1736 = vmatpush1.msra.mxu0 0.0
    %1737 = vmatprep.subr.mxu0 0.0
    %1738 = vmatpush1.msra.mxu0 0.0
    %1739 = vmatprep.subr.mxu0 0.0
    %1740 = vmatpush1.msra.mxu0 0.0
    %1741 = vmatprep.subr.mxu0 0.0
    %1742 = vmatpush1.msra.mxu0 0.0
    %1743 = vmatprep.subr.mxu0 0.0
    %1744 = vmatpush1.msra.mxu0 0.0
    %1745 = vmatprep.mubr.f32.mxu0 0.0
    %1746 = vmatmul.mubr.f32.gmra.mrb[0].mxu0 %v1607
    %v1747 = vpop.f32.mrb[0].mxu0
    %v1748 = vadd.f32 0.0, %v1747
    %v1749 = vpop.f32.mrb[0].mxu0
    %v1750 = vadd.f32 0.0, %v1749
    %1751 = vdwg.mxu0
    %1752 = vmatprep.subr.mxu0 %v1620
    %1753 = vmatpush1.msra.mxu0 %v1619
    %1754 = vmatprep.subr.mxu0 %v1624
    %1755 = vmatpush1.msra.mxu0 %v1623
    %1756 = vmatprep.subr.mxu0 %v1628
    %1757 = vmatpush1.msra.mxu0 %v1627
    %1758 = vmatprep.subr.mxu0 %v1632
    %1759 = vmatpush1.msra.mxu0 %v1631
    %1760 = vmatprep.subr.mxu0 %v1636
    %1761 = vmatpush1.msra.mxu0 %v1635
    %1762 = vmatprep.subr.mxu0 %v1640
    %1763 = vmatpush1.msra.mxu0 %v1639
    %1764 = vmatprep.subr.mxu0 %v1644
    %1765 = vmatpush1.msra.mxu0 %v1643
    %1766 = vmatprep.subr.mxu0 %v1648
    %1767 = vmatpush1.msra.mxu0 %v1647
    %1768 = vmatprep.subr.mxu0 %v1652
    %1769 = vmatpush1.msra.mxu0 %v1651
    %1770 = vmatprep.subr.mxu0 %v1656
    %1771 = vmatpush1.msra.mxu0 %v1655
    %1772 = vmatprep.subr.mxu0 %v1660
    %1773 = vmatpush1.msra.mxu0 %v1659
    %1774 = vmatprep.subr.mxu0 %v1664
    %1775 = vmatpush1.msra.mxu0 %v1663
    %1776 = vmatprep.subr.mxu0 %v1668
    %1777 = vmatpush1.msra.mxu0 %v1667
    %1778 = vmatprep.subr.mxu0 %v1672
    %1779 = vmatpush1.msra.mxu0 %v1671
    %1780 = vmatprep.subr.mxu0 %v1676
    %1781 = vmatpush1.msra.mxu0 %v1675
    %1782 = vmatprep.subr.mxu0 %v1680
    %1783 = vmatpush1.msra.mxu0 %v1679
    %1784 = vmatprep.subr.mxu0 0.0
    %1785 = vmatpush1.msra.mxu0 0.0
    %1786 = vmatprep.subr.mxu0 0.0
    %1787 = vmatpush1.msra.mxu0 0.0
    %1788 = vmatprep.subr.mxu0 0.0
    %1789 = vmatpush1.msra.mxu0 0.0
    %1790 = vmatprep.subr.mxu0 0.0
    %1791 = vmatpush1.msra.mxu0 0.0
    %1792 = vmatprep.subr.mxu0 0.0
    %1793 = vmatpush1.msra.mxu0 0.0
    %1794 = vmatprep.subr.mxu0 0.0
    %1795 = vmatpush1.msra.mxu0 0.0
    %1796 = vmatprep.subr.mxu0 0.0
    %1797 = vmatpush1.msra.mxu0 0.0
    %1798 = vmatprep.subr.mxu0 0.0
    %1799 = vmatpush1.msra.mxu0 0.0
    %1800 = vmatprep.subr.mxu0 0.0
    %1801 = vmatpush1.msra.mxu0 0.0
    %1802 = vmatprep.subr.mxu0 0.0
    %1803 = vmatpush1.msra.mxu0 0.0
    %1804 = vmatprep.subr.mxu0 0.0
    %1805 = vmatpush1.msra.mxu0 0.0
    %1806 = vmatprep.subr.mxu0 0.0
    %1807 = vmatpush1.msra.mxu0 0.0
    %1808 = vmatprep.subr.mxu0 0.0
    %1809 = vmatpush1.msra.mxu0 0.0
    %1810 = vmatprep.subr.mxu0 0.0
    %1811 = vmatpush1.msra.mxu0 0.0
    %1812 = vmatprep.subr.mxu0 0.0
    %1813 = vmatpush1.msra.mxu0 0.0
    %1814 = vmatprep.subr.mxu0 0.0
    %1815 = vmatpush1.msra.mxu0 0.0
    %1816 = vmatprep.mubr.f32.mxu0 0.0
    %1817 = vmatmul.mubr.f32.gmra.mrb[0].mxu0 %v1607
    %v1818 = vpop.f32.mrb[0].mxu0
    %v1819 = vadd.f32 0.0, %v1818
    %v1820 = vpop.f32.mrb[0].mxu0
    %v1821 = vadd.f32 0.0, %v1820
    %1822 = vdwg.mxu0
    %v1823 = vadd.f32 %v1613, %v1748
    %v1824 = vadd.f32 %v1614, %v1750
    %v1825 = vadd.f32 %v1615, %v1819
    %v1826 = vadd.f32 %v1616, %v1821
    %v1827 = vmul.f32 %v1823, 0.5
    %v1828 = vtanh.pop %v1827
    %v1829 = vadd.f32 %v1828, 1.0
    %v1830 = vmul.f32 %v1829, 0.5
    %v1831 = vmul.f32 %v1824, 0.5
    %v1832 = vtanh.pop %v1831
    %v1833 = vadd.f32 %v1832, 1.0
    %v1834 = vmul.f32 %v1833, 0.5
    %v1835 = vtanh.pop %v1825
    %v1836 = vmul.f32 %v1826, 0.5
    %v1837 = vtanh.pop %v1836
    %v1838 = vadd.f32 %v1837, 1.0
    %v1839 = vmul.f32 %v1838, 0.5
    %v1840 = vmul.f32 %v1834, %v1605
    %v1841 = vmul.f32 %v1830, %v1835
    %v1842 = vadd.f32 %v1840, %v1841
    %v1843 = vtanh.pop %v1842
    %v1844 = vmul.f32 %v1839, %v1843
    %s1845 = scalar_lea.vmem [#allocation3], 40
    %1846 = vst [vmem:[%s1845] sm:$0xff] %v1844
    %s1847 = smul.u32 6, 4
    %s1848 = smul.addr %s1847, 8
    %s1849 = scalar_lea.vmem [#allocation2], %s1848
    %v1850 = vld [vmem:[%s1849] sm:$0xff]
    %v1851 = vld [vmem:[%s1849 + $0x8] sm:$0xff]
    %v1852 = vld [vmem:[%s1849 + $0x10] sm:$0xff]
    %v1853 = vld [vmem:[%s1849 + $0x18] sm:$0xff]
    %v1854 = vld [vmem:[#allocation11] sm:$0xff]
    %v1855 = vld [vmem:[#allocation11 + $0x8] sm:$0xff]
    %v1856 = vld [vmem:[#allocation11 + $0x10] sm:$0xff]
    %v1857 = vld [vmem:[#allocation11 + $0x18] sm:$0xff]
    %v1858 = vld [vmem:[#allocation11 + $0x20] sm:$0xff]
    %v1859 = vld [vmem:[#allocation11 + $0x28] sm:$0xff]
    %v1860 = vld [vmem:[#allocation11 + $0x30] sm:$0xff]
    %v1861 = vld [vmem:[#allocation11 + $0x38] sm:$0xff]
    %v1862 = vld [vmem:[#allocation11 + $0x40] sm:$0xff]
    %v1863 = vld [vmem:[#allocation11 + $0x48] sm:$0xff]
    %v1864 = vld [vmem:[#allocation11 + $0x50] sm:$0xff]
    %v1865 = vld [vmem:[#allocation11 + $0x58] sm:$0xff]
    %v1866 = vld [vmem:[#allocation11 + $0x60] sm:$0xff]
    %v1867 = vld [vmem:[#allocation11 + $0x68] sm:$0xff]
    %v1868 = vld [vmem:[#allocation11 + $0x70] sm:$0xff]
    %v1869 = vld [vmem:[#allocation11 + $0x78] sm:$0xff]
    %v1870 = vld [vmem:[#allocation11 + $0x80] sm:$0xff]
    %v1871 = vld [vmem:[#allocation11 + $0x88] sm:$0xff]
    %v1872 = vld [vmem:[#allocation11 + $0x90] sm:$0xff]
    %v1873 = vld [vmem:[#allocation11 + $0x98] sm:$0xff]
    %v1874 = vld [vmem:[#allocation11 + $0xa0] sm:$0xff]
    %v1875 = vld [vmem:[#allocation11 + $0xa8] sm:$0xff]
    %v1876 = vld [vmem:[#allocation11 + $0xb0] sm:$0xff]
    %v1877 = vld [vmem:[#allocation11 + $0xb8] sm:$0xff]
    %v1878 = vld [vmem:[#allocation11 + $0xc0] sm:$0xff]
    %v1879 = vld [vmem:[#allocation11 + $0xc8] sm:$0xff]
    %v1880 = vld [vmem:[#allocation11 + $0xd0] sm:$0xff]
    %v1881 = vld [vmem:[#allocation11 + $0xd8] sm:$0xff]
    %v1882 = vld [vmem:[#allocation11 + $0xe0] sm:$0xff]
    %v1883 = vld [vmem:[#allocation11 + $0xe8] sm:$0xff]
    %v1884 = vld [vmem:[#allocation11 + $0xf0] sm:$0xff]
    %v1885 = vld [vmem:[#allocation11 + $0xf8] sm:$0xff]
    %v1886 = vld [vmem:[#allocation11 + $0x100] sm:$0xff]
    %v1887 = vld [vmem:[#allocation11 + $0x108] sm:$0xff]
    %v1888 = vld [vmem:[#allocation11 + $0x110] sm:$0xff]
    %v1889 = vld [vmem:[#allocation11 + $0x118] sm:$0xff]
    %v1890 = vld [vmem:[#allocation11 + $0x120] sm:$0xff]
    %v1891 = vld [vmem:[#allocation11 + $0x128] sm:$0xff]
    %v1892 = vld [vmem:[#allocation11 + $0x130] sm:$0xff]
    %v1893 = vld [vmem:[#allocation11 + $0x138] sm:$0xff]
    %v1894 = vld [vmem:[#allocation11 + $0x140] sm:$0xff]
    %v1895 = vld [vmem:[#allocation11 + $0x148] sm:$0xff]
    %v1896 = vld [vmem:[#allocation11 + $0x150] sm:$0xff]
    %v1897 = vld [vmem:[#allocation11 + $0x158] sm:$0xff]
    %v1898 = vld [vmem:[#allocation11 + $0x160] sm:$0xff]
    %v1899 = vld [vmem:[#allocation11 + $0x168] sm:$0xff]
    %v1900 = vld [vmem:[#allocation11 + $0x170] sm:$0xff]
    %v1901 = vld [vmem:[#allocation11 + $0x178] sm:$0xff]
    %v1902 = vld [vmem:[#allocation11 + $0x180] sm:$0xff]
    %v1903 = vld [vmem:[#allocation11 + $0x188] sm:$0xff]
    %v1904 = vld [vmem:[#allocation11 + $0x190] sm:$0xff]
    %v1905 = vld [vmem:[#allocation11 + $0x198] sm:$0xff]
    %v1906 = vld [vmem:[#allocation11 + $0x1a0] sm:$0xff]
    %v1907 = vld [vmem:[#allocation11 + $0x1a8] sm:$0xff]
    %v1908 = vld [vmem:[#allocation11 + $0x1b0] sm:$0xff]
    %v1909 = vld [vmem:[#allocation11 + $0x1b8] sm:$0xff]
    %v1910 = vld [vmem:[#allocation11 + $0x1c0] sm:$0xff]
    %v1911 = vld [vmem:[#allocation11 + $0x1c8] sm:$0xff]
    %v1912 = vld [vmem:[#allocation11 + $0x1d0] sm:$0xff]
    %v1913 = vld [vmem:[#allocation11 + $0x1d8] sm:$0xff]
    %v1914 = vld [vmem:[#allocation11 + $0x1e0] sm:$0xff]
    %v1915 = vld [vmem:[#allocation11 + $0x1e8] sm:$0xff]
    %v1916 = vld [vmem:[#allocation11 + $0x1f0] sm:$0xff]
    %v1917 = vld [vmem:[#allocation11 + $0x1f8] sm:$0xff]
    %1918 = vmatprep.subr.mxu0 %v1855
    %1919 = vmatpush1.msra.mxu0 %v1854
    %1920 = vmatprep.subr.mxu0 %v1859
    %1921 = vmatpush1.msra.mxu0 %v1858
    %1922 = vmatprep.subr.mxu0 %v1863
    %1923 = vmatpush1.msra.mxu0 %v1862
    %1924 = vmatprep.subr.mxu0 %v1867
    %1925 = vmatpush1.msra.mxu0 %v1866
    %1926 = vmatprep.subr.mxu0 %v1871
    %1927 = vmatpush1.msra.mxu0 %v1870
    %1928 = vmatprep.subr.mxu0 %v1875
    %1929 = vmatpush1.msra.mxu0 %v1874
    %1930 = vmatprep.subr.mxu0 %v1879
    %1931 = vmatpush1.msra.mxu0 %v1878
    %1932 = vmatprep.subr.mxu0 %v1883
    %1933 = vmatpush1.msra.mxu0 %v1882
    %1934 = vmatprep.subr.mxu0 %v1887
    %1935 = vmatpush1.msra.mxu0 %v1886
    %1936 = vmatprep.subr.mxu0 %v1891
    %1937 = vmatpush1.msra.mxu0 %v1890
    %1938 = vmatprep.subr.mxu0 %v1895
    %1939 = vmatpush1.msra.mxu0 %v1894
    %1940 = vmatprep.subr.mxu0 %v1899
    %1941 = vmatpush1.msra.mxu0 %v1898
    %1942 = vmatprep.subr.mxu0 %v1903
    %1943 = vmatpush1.msra.mxu0 %v1902
    %1944 = vmatprep.subr.mxu0 %v1907
    %1945 = vmatpush1.msra.mxu0 %v1906
    %1946 = vmatprep.subr.mxu0 %v1911
    %1947 = vmatpush1.msra.mxu0 %v1910
    %1948 = vmatprep.subr.mxu0 %v1915
    %1949 = vmatpush1.msra.mxu0 %v1914
    %1950 = vmatprep.subr.mxu0 0.0
    %1951 = vmatpush1.msra.mxu0 0.0
    %1952 = vmatprep.subr.mxu0 0.0
    %1953 = vmatpush1.msra.mxu0 0.0
    %1954 = vmatprep.subr.mxu0 0.0
    %1955 = vmatpush1.msra.mxu0 0.0
    %1956 = vmatprep.subr.mxu0 0.0
    %1957 = vmatpush1.msra.mxu0 0.0
    %1958 = vmatprep.subr.mxu0 0.0
    %1959 = vmatpush1.msra.mxu0 0.0
    %1960 = vmatprep.subr.mxu0 0.0
    %1961 = vmatpush1.msra.mxu0 0.0
    %1962 = vmatprep.subr.mxu0 0.0
    %1963 = vmatpush1.msra.mxu0 0.0
    %1964 = vmatprep.subr.mxu0 0.0
    %1965 = vmatpush1.msra.mxu0 0.0
    %1966 = vmatprep.subr.mxu0 0.0
    %1967 = vmatpush1.msra.mxu0 0.0
    %1968 = vmatprep.subr.mxu0 0.0
    %1969 = vmatpush1.msra.mxu0 0.0
    %1970 = vmatprep.subr.mxu0 0.0
    %1971 = vmatpush1.msra.mxu0 0.0
    %1972 = vmatprep.subr.mxu0 0.0
    %1973 = vmatpush1.msra.mxu0 0.0
    %1974 = vmatprep.subr.mxu0 0.0
    %1975 = vmatpush1.msra.mxu0 0.0
    %1976 = vmatprep.subr.mxu0 0.0
    %1977 = vmatpush1.msra.mxu0 0.0
    %1978 = vmatprep.subr.mxu0 0.0
    %1979 = vmatpush1.msra.mxu0 0.0
    %1980 = vmatprep.subr.mxu0 0.0
    %1981 = vmatpush1.msra.mxu0 0.0
    %1982 = vmatprep.mubr.f32.mxu0 0.0
    %1983 = vmatmul.mubr.f32.gmra.mrb[0].mxu0 %v1844
    %v1984 = vpop.f32.mrb[0].mxu0
    %v1985 = vadd.f32 0.0, %v1984
    %v1986 = vpop.f32.mrb[0].mxu0
    %v1987 = vadd.f32 0.0, %v1986
    %1988 = vdwg.mxu0
    %1989 = vmatprep.subr.mxu0 %v1857
    %1990 = vmatpush1.msra.mxu0 %v1856
    %1991 = vmatprep.subr.mxu0 %v1861
    %1992 = vmatpush1.msra.mxu0 %v1860
    %1993 = vmatprep.subr.mxu0 %v1865
    %1994 = vmatpush1.msra.mxu0 %v1864
    %1995 = vmatprep.subr.mxu0 %v1869
    %1996 = vmatpush1.msra.mxu0 %v1868
    %1997 = vmatprep.subr.mxu0 %v1873
    %1998 = vmatpush1.msra.mxu0 %v1872
    %1999 = vmatprep.subr.mxu0 %v1877
    %2000 = vmatpush1.msra.mxu0 %v1876
    %2001 = vmatprep.subr.mxu0 %v1881
    %2002 = vmatpush1.msra.mxu0 %v1880
    %2003 = vmatprep.subr.mxu0 %v1885
    %2004 = vmatpush1.msra.mxu0 %v1884
    %2005 = vmatprep.subr.mxu0 %v1889
    %2006 = vmatpush1.msra.mxu0 %v1888
    %2007 = vmatprep.subr.mxu0 %v1893
    %2008 = vmatpush1.msra.mxu0 %v1892
    %2009 = vmatprep.subr.mxu0 %v1897
    %2010 = vmatpush1.msra.mxu0 %v1896
    %2011 = vmatprep.subr.mxu0 %v1901
    %2012 = vmatpush1.msra.mxu0 %v1900
    %2013 = vmatprep.subr.mxu0 %v1905
    %2014 = vmatpush1.msra.mxu0 %v1904
    %2015 = vmatprep.subr.mxu0 %v1909
    %2016 = vmatpush1.msra.mxu0 %v1908
    %2017 = vmatprep.subr.mxu0 %v1913
    %2018 = vmatpush1.msra.mxu0 %v1912
    %2019 = vmatprep.subr.mxu0 %v1917
    %2020 = vmatpush1.msra.mxu0 %v1916
    %2021 = vmatprep.subr.mxu0 0.0
    %2022 = vmatpush1.msra.mxu0 0.0
    %2023 = vmatprep.subr.mxu0 0.0
    %2024 = vmatpush1.msra.mxu0 0.0
    %2025 = vmatprep.subr.mxu0 0.0
    %2026 = vmatpush1.msra.mxu0 0.0
    %2027 = vmatprep.subr.mxu0 0.0
    %2028 = vmatpush1.msra.mxu0 0.0
    %2029 = vmatprep.subr.mxu0 0.0
    %2030 = vmatpush1.msra.mxu0 0.0
    %2031 = vmatprep.subr.mxu0 0.0
    %2032 = vmatpush1.msra.mxu0 0.0
    %2033 = vmatprep.subr.mxu0 0.0
    %2034 = vmatpush1.msra.mxu0 0.0
    %2035 = vmatprep.subr.mxu0 0.0
    %2036 = vmatpush1.msra.mxu0 0.0
    %2037 = vmatprep.subr.mxu0 0.0
    %2038 = vmatpush1.msra.mxu0 0.0
    %2039 = vmatprep.subr.mxu0 0.0
    %2040 = vmatpush1.msra.mxu0 0.0
    %2041 = vmatprep.subr.mxu0 0.0
    %2042 = vmatpush1.msra.mxu0 0.0
    %2043 = vmatprep.subr.mxu0 0.0
    %2044 = vmatpush1.msra.mxu0 0.0
    %2045 = vmatprep.subr.mxu0 0.0
    %2046 = vmatpush1.msra.mxu0 0.0
    %2047 = vmatprep.subr.mxu0 0.0
    %2048 = vmatpush1.msra.mxu0 0.0
    %2049 = vmatprep.subr.mxu0 0.0
    %2050 = vmatpush1.msra.mxu0 0.0
    %2051 = vmatprep.subr.mxu0 0.0
    %2052 = vmatpush1.msra.mxu0 0.0
    %2053 = vmatprep.mubr.f32.mxu0 0.0
    %2054 = vmatmul.mubr.f32.gmra.mrb[0].mxu0 %v1844
    %v2055 = vpop.f32.mrb[0].mxu0
    %v2056 = vadd.f32 0.0, %v2055
    %v2057 = vpop.f32.mrb[0].mxu0
    %v2058 = vadd.f32 0.0, %v2057
    %2059 = vdwg.mxu0
    %v2060 = vadd.f32 %v1850, %v1985
    %v2061 = vadd.f32 %v1851, %v1987
    %v2062 = vadd.f32 %v1852, %v2056
    %v2063 = vadd.f32 %v1853, %v2058
    %v2064 = vmul.f32 %v2060, 0.5
    %v2065 = vtanh.pop %v2064
    %v2066 = vadd.f32 %v2065, 1.0
    %v2067 = vmul.f32 %v2066, 0.5
    %v2068 = vmul.f32 %v2061, 0.5
    %v2069 = vtanh.pop %v2068
    %v2070 = vadd.f32 %v2069, 1.0
    %v2071 = vmul.f32 %v2070, 0.5
    %v2072 = vtanh.pop %v2062
    %v2073 = vmul.f32 %v2063, 0.5
    %v2074 = vtanh.pop %v2073
    %v2075 = vadd.f32 %v2074, 1.0
    %v2076 = vmul.f32 %v2075, 0.5
    %v2077 = vmul.f32 %v2071, %v1842
    %v2078 = vmul.f32 %v2067, %v2072
    %v2079 = vadd.f32 %v2077, %v2078
    %v2080 = vtanh.pop %v2079
    %v2081 = vmul.f32 %v2076, %v2080
    %s2082 = scalar_lea.vmem [#allocation3], 48
    %2083 = vst [vmem:[%s2082] sm:$0xff] %v2081
    %s2084 = smul.u32 7, 4
    %s2085 = smul.addr %s2084, 8
    %s2086 = scalar_lea.vmem [#allocation2], %s2085
    %v2087 = vld [vmem:[%s2086] sm:$0xff]
    %v2088 = vld [vmem:[%s2086 + $0x8] sm:$0xff]
    %v2089 = vld [vmem:[%s2086 + $0x10] sm:$0xff]
    %v2090 = vld [vmem:[%s2086 + $0x18] sm:$0xff]
    %v2091 = vld [vmem:[#allocation11] sm:$0xff]
    %v2092 = vld [vmem:[#allocation11 + $0x8] sm:$0xff]
    %v2093 = vld [vmem:[#allocation11 + $0x10] sm:$0xff]
    %v2094 = vld [vmem:[#allocation11 + $0x18] sm:$0xff]
    %v2095 = vld [vmem:[#allocation11 + $0x20] sm:$0xff]
    %v2096 = vld [vmem:[#allocation11 + $0x28] sm:$0xff]
    %v2097 = vld [vmem:[#allocation11 + $0x30] sm:$0xff]
    %v2098 = vld [vmem:[#allocation11 + $0x38] sm:$0xff]
    %v2099 = vld [vmem:[#allocation11 + $0x40] sm:$0xff]
    %v2100 = vld [vmem:[#allocation11 + $0x48] sm:$0xff]
    %v2101 = vld [vmem:[#allocation11 + $0x50] sm:$0xff]
    %v2102 = vld [vmem:[#allocation11 + $0x58] sm:$0xff]
    %v2103 = vld [vmem:[#allocation11 + $0x60] sm:$0xff]
    %v2104 = vld [vmem:[#allocation11 + $0x68] sm:$0xff]
    %v2105 = vld [vmem:[#allocation11 + $0x70] sm:$0xff]
    %v2106 = vld [vmem:[#allocation11 + $0x78] sm:$0xff]
    %v2107 = vld [vmem:[#allocation11 + $0x80] sm:$0xff]
    %v2108 = vld [vmem:[#allocation11 + $0x88] sm:$0xff]
    %v2109 = vld [vmem:[#allocation11 + $0x90] sm:$0xff]
    %v2110 = vld [vmem:[#allocation11 + $0x98] sm:$0xff]
    %v2111 = vld [vmem:[#allocation11 + $0xa0] sm:$0xff]
    %v2112 = vld [vmem:[#allocation11 + $0xa8] sm:$0xff]
    %v2113 = vld [vmem:[#allocation11 + $0xb0] sm:$0xff]
    %v2114 = vld [vmem:[#allocation11 + $0xb8] sm:$0xff]
    %v2115 = vld [vmem:[#allocation11 + $0xc0] sm:$0xff]
    %v2116 = vld [vmem:[#allocation11 + $0xc8] sm:$0xff]
    %v2117 = vld [vmem:[#allocation11 + $0xd0] sm:$0xff]
    %v2118 = vld [vmem:[#allocation11 + $0xd8] sm:$0xff]
    %v2119 = vld [vmem:[#allocation11 + $0xe0] sm:$0xff]
    %v2120 = vld [vmem:[#allocation11 + $0xe8] sm:$0xff]
    %v2121 = vld [vmem:[#allocation11 + $0xf0] sm:$0xff]
    %v2122 = vld [vmem:[#allocation11 + $0xf8] sm:$0xff]
    %v2123 = vld [vmem:[#allocation11 + $0x100] sm:$0xff]
    %v2124 = vld [vmem:[#allocation11 + $0x108] sm:$0xff]
    %v2125 = vld [vmem:[#allocation11 + $0x110] sm:$0xff]
    %v2126 = vld [vmem:[#allocation11 + $0x118] sm:$0xff]
    %v2127 = vld [vmem:[#allocation11 + $0x120] sm:$0xff]
    %v2128 = vld [vmem:[#allocation11 + $0x128] sm:$0xff]
    %v2129 = vld [vmem:[#allocation11 + $0x130] sm:$0xff]
    %v2130 = vld [vmem:[#allocation11 + $0x138] sm:$0xff]
    %v2131 = vld [vmem:[#allocation11 + $0x140] sm:$0xff]
    %v2132 = vld [vmem:[#allocation11 + $0x148] sm:$0xff]
    %v2133 = vld [vmem:[#allocation11 + $0x150] sm:$0xff]
    %v2134 = vld [vmem:[#allocation11 + $0x158] sm:$0xff]
    %v2135 = vld [vmem:[#allocation11 + $0x160] sm:$0xff]
    %v2136 = vld [vmem:[#allocation11 + $0x168] sm:$0xff]
    %v2137 = vld [vmem:[#allocation11 + $0x170] sm:$0xff]
    %v2138 = vld [vmem:[#allocation11 + $0x178] sm:$0xff]
    %v2139 = vld [vmem:[#allocation11 + $0x180] sm:$0xff]
    %v2140 = vld [vmem:[#allocation11 + $0x188] sm:$0xff]
    %v2141 = vld [vmem:[#allocation11 + $0x190] sm:$0xff]
    %v2142 = vld [vmem:[#allocation11 + $0x198] sm:$0xff]
    %v2143 = vld [vmem:[#allocation11 + $0x1a0] sm:$0xff]
    %v2144 = vld [vmem:[#allocation11 + $0x1a8] sm:$0xff]
    %v2145 = vld [vmem:[#allocation11 + $0x1b0] sm:$0xff]
    %v2146 = vld [vmem:[#allocation11 + $0x1b8] sm:$0xff]
    %v2147 = vld [vmem:[#allocation11 + $0x1c0] sm:$0xff]
    %v2148 = vld [vmem:[#allocation11 + $0x1c8] sm:$0xff]
    %v2149 = vld [vmem:[#allocation11 + $0x1d0] sm:$0xff]
    %v2150 = vld [vmem:[#allocation11 + $0x1d8] sm:$0xff]
    %v2151 = vld [vmem:[#allocation11 + $0x1e0] sm:$0xff]
    %v2152 = vld [vmem:[#allocation11 + $0x1e8] sm:$0xff]
    %v2153 = vld [vmem:[#allocation11 + $0x1f0] sm:$0xff]
    %v2154 = vld [vmem:[#allocation11 + $0x1f8] sm:$0xff]
    %2155 = vmatprep.subr.mxu0 %v2092
    %2156 = vmatpush1.msra.mxu0 %v2091
    %2157 = vmatprep.subr.mxu0 %v2096
    %2158 = vmatpush1.msra.mxu0 %v2095
    %2159 = vmatprep.subr.mxu0 %v2100
    %2160 = vmatpush1.msra.mxu0 %v2099
    %2161 = vmatprep.subr.mxu0 %v2104
    %2162 = vmatpush1.msra.mxu0 %v2103
    %2163 = vmatprep.subr.mxu0 %v2108
    %2164 = vmatpush1.msra.mxu0 %v2107
    %2165 = vmatprep.subr.mxu0 %v2112
    %2166 = vmatpush1.msra.mxu0 %v2111
    %2167 = vmatprep.subr.mxu0 %v2116
    %2168 = vmatpush1.msra.mxu0 %v2115
    %2169 = vmatprep.subr.mxu0 %v2120
    %2170 = vmatpush1.msra.mxu0 %v2119
    %2171 = vmatprep.subr.mxu0 %v2124
    %2172 = vmatpush1.msra.mxu0 %v2123
    %2173 = vmatprep.subr.mxu0 %v2128
    %2174 = vmatpush1.msra.mxu0 %v2127
    %2175 = vmatprep.subr.mxu0 %v2132
    %2176 = vmatpush1.msra.mxu0 %v2131
    %2177 = vmatprep.subr.mxu0 %v2136
    %2178 = vmatpush1.msra.mxu0 %v2135
    %2179 = vmatprep.subr.mxu0 %v2140
    %2180 = vmatpush1.msra.mxu0 %v2139
    %2181 = vmatprep.subr.mxu0 %v2144
    %2182 = vmatpush1.msra.mxu0 %v2143
    %2183 = vmatprep.subr.mxu0 %v2148
    %2184 = vmatpush1.msra.mxu0 %v2147
    %2185 = vmatprep.subr.mxu0 %v2152
    %2186 = vmatpush1.msra.mxu0 %v2151
    %2187 = vmatprep.subr.mxu0 0.0
    %2188 = vmatpush1.msra.mxu0 0.0
    %2189 = vmatprep.subr.mxu0 0.0
    %2190 = vmatpush1.msra.mxu0 0.0
    %2191 = vmatprep.subr.mxu0 0.0
    %2192 = vmatpush1.msra.mxu0 0.0
    %2193 = vmatprep.subr.mxu0 0.0
    %2194 = vmatpush1.msra.mxu0 0.0
    %2195 = vmatprep.subr.mxu0 0.0
    %2196 = vmatpush1.msra.mxu0 0.0
    %2197 = vmatprep.subr.mxu0 0.0
    %2198 = vmatpush1.msra.mxu0 0.0
    %2199 = vmatprep.subr.mxu0 0.0
    %2200 = vmatpush1.msra.mxu0 0.0
    %2201 = vmatprep.subr.mxu0 0.0
    %2202 = vmatpush1.msra.mxu0 0.0
    %2203 = vmatprep.subr.mxu0 0.0
    %2204 = vmatpush1.msra.mxu0 0.0
    %2205 = vmatprep.subr.mxu0 0.0
    %2206 = vmatpush1.msra.mxu0 0.0
    %2207 = vmatprep.subr.mxu0 0.0
    %2208 = vmatpush1.msra.mxu0 0.0
    %2209 = vmatprep.subr.mxu0 0.0
    %2210 = vmatpush1.msra.mxu0 0.0
    %2211 = vmatprep.subr.mxu0 0.0
    %2212 = vmatpush1.msra.mxu0 0.0
    %2213 = vmatprep.subr.mxu0 0.0
    %2214 = vmatpush1.msra.mxu0 0.0
    %2215 = vmatprep.subr.mxu0 0.0
    %2216 = vmatpush1.msra.mxu0 0.0
    %2217 = vmatprep.subr.mxu0 0.0
    %2218 = vmatpush1.msra.mxu0 0.0
    %2219 = vmatprep.mubr.f32.mxu0 0.0
    %2220 = vmatmul.mubr.f32.gmra.mrb[0].mxu0 %v2081
    %v2221 = vpop.f32.mrb[0].mxu0
    %v2222 = vadd.f32 0.0, %v2221
    %v2223 = vpop.f32.mrb[0].mxu0
    %v2224 = vadd.f32 0.0, %v2223
    %2225 = vdwg.mxu0
    %2226 = vmatprep.subr.mxu0 %v2094
    %2227 = vmatpush1.msra.mxu0 %v2093
    %2228 = vmatprep.subr.mxu0 %v2098
    %2229 = vmatpush1.msra.mxu0 %v2097
    %2230 = vmatprep.subr.mxu0 %v2102
    %2231 = vmatpush1.msra.mxu0 %v2101
    %2232 = vmatprep.subr.mxu0 %v2106
    %2233 = vmatpush1.msra.mxu0 %v2105
    %2234 = vmatprep.subr.mxu0 %v2110
    %2235 = vmatpush1.msra.mxu0 %v2109
    %2236 = vmatprep.subr.mxu0 %v2114
    %2237 = vmatpush1.msra.mxu0 %v2113
    %2238 = vmatprep.subr.mxu0 %v2118
    %2239 = vmatpush1.msra.mxu0 %v2117
    %2240 = vmatprep.subr.mxu0 %v2122
    %2241 = vmatpush1.msra.mxu0 %v2121
    %2242 = vmatprep.subr.mxu0 %v2126
    %2243 = vmatpush1.msra.mxu0 %v2125
    %2244 = vmatprep.subr.mxu0 %v2130
    %2245 = vmatpush1.msra.mxu0 %v2129
    %2246 = vmatprep.subr.mxu0 %v2134
    %2247 = vmatpush1.msra.mxu0 %v2133
    %2248 = vmatprep.subr.mxu0 %v2138
    %2249 = vmatpush1.msra.mxu0 %v2137
    %2250 = vmatprep.subr.mxu0 %v2142
    %2251 = vmatpush1.msra.mxu0 %v2141
    %2252 = vmatprep.subr.mxu0 %v2146
    %2253 = vmatpush1.msra.mxu0 %v2145
    %2254 = vmatprep.subr.mxu0 %v2150
    %2255 = vmatpush1.msra.mxu0 %v2149
    %2256 = vmatprep.subr.mxu0 %v2154
    %2257 = vmatpush1.msra.mxu0 %v2153
    %2258 = vmatprep.subr.mxu0 0.0
    %2259 = vmatpush1.msra.mxu0 0.0
    %2260 = vmatprep.subr.mxu0 0.0
    %2261 = vmatpush1.msra.mxu0 0.0
    %2262 = vmatprep.subr.mxu0 0.0
    %2263 = vmatpush1.msra.mxu0 0.0
    %2264 = vmatprep.subr.mxu0 0.0
    %2265 = vmatpush1.msra.mxu0 0.0
    %2266 = vmatprep.subr.mxu0 0.0
    %2267 = vmatpush1.msra.mxu0 0.0
    %2268 = vmatprep.subr.mxu0 0.0
    %2269 = vmatpush1.msra.mxu0 0.0
    %2270 = vmatprep.subr.mxu0 0.0
    %2271 = vmatpush1.msra.mxu0 0.0
    %2272 = vmatprep.subr.mxu0 0.0
    %2273 = vmatpush1.msra.mxu0 0.0
    %2274 = vmatprep.subr.mxu0 0.0
    %2275 = vmatpush1.msra.mxu0 0.0
    %2276 = vmatprep.subr.mxu0 0.0
    %2277 = vmatpush1.msra.mxu0 0.0
    %2278 = vmatprep.subr.mxu0 0.0
    %2279 = vmatpush1.msra.mxu0 0.0
    %2280 = vmatprep.subr.mxu0 0.0
    %2281 = vmatpush1.msra.mxu0 0.0
    %2282 = vmatprep.subr.mxu0 0.0
    %2283 = vmatpush1.msra.mxu0 0.0
    %2284 = vmatprep.subr.mxu0 0.0
    %2285 = vmatpush1.msra.mxu0 0.0
    %2286 = vmatprep.subr.mxu0 0.0
    %2287 = vmatpush1.msra.mxu0 0.0
    %2288 = vmatprep.subr.mxu0 0.0
    %2289 = vmatpush1.msra.mxu0 0.0
    %2290 = vmatprep.mubr.f32.mxu0 0.0
    %2291 = vmatmul.mubr.f32.gmra.mrb[0].mxu0 %v2081
    %v2292 = vpop.f32.mrb[0].mxu0
    %v2293 = vadd.f32 0.0, %v2292
    %v2294 = vpop.f32.mrb[0].mxu0
    %v2295 = vadd.f32 0.0, %v2294
    %2296 = vdwg.mxu0
    %v2297 = vadd.f32 %v2087, %v2222
    %v2298 = vadd.f32 %v2088, %v2224
    %v2299 = vadd.f32 %v2089, %v2293
    %v2300 = vadd.f32 %v2090, %v2295
    %v2301 = vmul.f32 %v2297, 0.5
    %v2302 = vtanh.pop %v2301
    %v2303 = vadd.f32 %v2302, 1.0
    %v2304 = vmul.f32 %v2303, 0.5
    %v2305 = vmul.f32 %v2298, 0.5
    %v2306 = vtanh.pop %v2305
    %v2307 = vadd.f32 %v2306, 1.0
    %v2308 = vmul.f32 %v2307, 0.5
    %v2309 = vtanh.pop %v2299
    %v2310 = vmul.f32 %v2300, 0.5
    %v2311 = vtanh.pop %v2310
    %v2312 = vadd.f32 %v2311, 1.0
    %v2313 = vmul.f32 %v2312, 0.5
    %v2314 = vmul.f32 %v2308, %v2079
    %v2315 = vmul.f32 %v2304, %v2309
    %v2316 = vadd.f32 %v2314, %v2315
    %v2317 = vtanh.pop %v2316
    %v2318 = vmul.f32 %v2313, %v2317
    %s2319 = scalar_lea.vmem [#allocation3], 56
    %2320 = vst [vmem:[%s2319] sm:$0xff] %v2318
    %s2321 = smul.u32 8, 16
    %s2322 = smul.u32 %s2321, 2
    %s2323 = sshll.u32 %s2322, 4
    %2324 = dma.done [#allocation5], %s2323
    %v2325 = vld [vmem:[#allocation3] sm:$0xff]
    %v2326 = vld [vmem:[#allocation3 + $0x8] sm:$0xff]
    %v2327 = vld [vmem:[#allocation3 + $0x10] sm:$0xff]
    %v2328 = vld [vmem:[#allocation3 + $0x18] sm:$0xff]
    %v2329 = vld [vmem:[#allocation3 + $0x20] sm:$0xff]
    %v2330 = vld [vmem:[#allocation3 + $0x28] sm:$0xff]
    %v2331 = vld [vmem:[#allocation3 + $0x30] sm:$0xff]
    %v2332 = vld [vmem:[#allocation3 + $0x38] sm:$0xff]
    %v2333 = vld [vmem:[#allocation4] sm:$0xff]
    %v2334 = vld [vmem:[#allocation4 + $0x8] sm:$0xff]
    %v2335 = vld [vmem:[#allocation4 + $0x10] sm:$0xff]
    %v2336 = vld [vmem:[#allocation4 + $0x18] sm:$0xff]
    %v2337 = vld [vmem:[#allocation4 + $0x20] sm:$0xff]
    %v2338 = vld [vmem:[#allocation4 + $0x28] sm:$0xff]
    %v2339 = vld [vmem:[#allocation4 + $0x30] sm:$0xff]
    %v2340 = vld [vmem:[#allocation4 + $0x38] sm:$0xff]
    %v2341 = vld [vmem:[#allocation4 + $0x40] sm:$0xff]
    %v2342 = vld [vmem:[#allocation4 + $0x48] sm:$0xff]
    %v2343 = vld [vmem:[#allocation4 + $0x50] sm:$0xff]
    %v2344 = vld [vmem:[#allocation4 + $0x58] sm:$0xff]
    %v2345 = vld [vmem:[#allocation4 + $0x60] sm:$0xff]
    %v2346 = vld [vmem:[#allocation4 + $0x68] sm:$0xff]
    %v2347 = vld [vmem:[#allocation4 + $0x70] sm:$0xff]
    %v2348 = vld [vmem:[#allocation4 + $0x78] sm:$0xff]
    %v2349 = vld [vmem:[#allocation4 + $0x80] sm:$0xff]
    %v2350 = vld [vmem:[#allocation4 + $0x88] sm:$0xff]
    %v2351 = vld [vmem:[#allocation4 + $0x90] sm:$0xff]
    %v2352 = vld [vmem:[#allocation4 + $0x98] sm:$0xff]
    %v2353 = vld [vmem:[#allocation4 + $0xa0] sm:$0xff]
    %v2354 = vld [vmem:[#allocation4 + $0xa8] sm:$0xff]
    %v2355 = vld [vmem:[#allocation4 + $0xb0] sm:$0xff]
    %v2356 = vld [vmem:[#allocation4 + $0xb8] sm:$0xff]
    %v2357 = vld [vmem:[#allocation4 + $0xc0] sm:$0xff]
    %v2358 = vld [vmem:[#allocation4 + $0xc8] sm:$0xff]
    %v2359 = vld [vmem:[#allocation4 + $0xd0] sm:$0xff]
    %v2360 = vld [vmem:[#allocation4 + $0xd8] sm:$0xff]
    %v2361 = vld [vmem:[#allocation4 + $0xe0] sm:$0xff]
    %v2362 = vld [vmem:[#allocation4 + $0xe8] sm:$0xff]
    %v2363 = vld [vmem:[#allocation4 + $0xf0] sm:$0xff]
    %v2364 = vld [vmem:[#allocation4 + $0xf8] sm:$0xff]
    %v2365 = vld [vmem:[%s5] sm:$0x3]
    %v2367 = vlaneseq
    %v2368 = vshrl.u32 %v2367, 7
    %v2369 = vsub.s32 0, %v2368
    %v2370 = vrot.slane %v2365, %v2369
    %v2371 = vlaneseq
    %v2372 = vshrl.u32 %v2371, 7
    %v2373 = vsub.s32 1, %v2372
    %v2374 = vrot.slane %v2365, %v2373
    %2377 = vmatprep.subr.mxu0 %v2334
    %2378 = vmatpush1.msra.mxu0 %v2333
    %2379 = vmatprep.subr.mxu0 %v2336
    %2380 = vmatpush1.msra.mxu0 %v2335
    %2381 = vmatprep.subr.mxu0 %v2338
    %2382 = vmatpush1.msra.mxu0 %v2337
    %2383 = vmatprep.subr.mxu0 %v2340
    %2384 = vmatpush1.msra.mxu0 %v2339
    %2385 = vmatprep.subr.mxu0 %v2342
    %2386 = vmatpush1.msra.mxu0 %v2341
    %2387 = vmatprep.subr.mxu0 %v2344
    %2388 = vmatpush1.msra.mxu0 %v2343
    %2389 = vmatprep.subr.mxu0 %v2346
    %2390 = vmatpush1.msra.mxu0 %v2345
    %2391 = vmatprep.subr.mxu0 %v2348
    %2392 = vmatpush1.msra.mxu0 %v2347
    %2393 = vmatprep.subr.mxu0 %v2350
    %2394 = vmatpush1.msra.mxu0 %v2349
    %2395 = vmatprep.subr.mxu0 %v2352
    %2396 = vmatpush1.msra.mxu0 %v2351
    %2397 = vmatprep.subr.mxu0 %v2354
    %2398 = vmatpush1.msra.mxu0 %v2353
    %2399 = vmatprep.subr.mxu0 %v2356
    %2400 = vmatpush1.msra.mxu0 %v2355
    %2401 = vmatprep.subr.mxu0 %v2358
    %2402 = vmatpush1.msra.mxu0 %v2357
    %2403 = vmatprep.subr.mxu0 %v2360
    %2404 = vmatpush1.msra.mxu0 %v2359
    %2405 = vmatprep.subr.mxu0 %v2362
    %2406 = vmatpush1.msra.mxu0 %v2361
    %2407 = vmatprep.subr.mxu0 %v2364
    %2408 = vmatpush1.msra.mxu0 %v2363
    %2409 = vmatprep.subr.mxu0 0.0
    %2410 = vmatpush1.msra.mxu0 0.0
    %2411 = vmatprep.subr.mxu0 0.0
    %2412 = vmatpush1.msra.mxu0 0.0
    %2413 = vmatprep.subr.mxu0 0.0
    %2414 = vmatpush1.msra.mxu0 0.0
    %2415 = vmatprep.subr.mxu0 0.0
    %2416 = vmatpush1.msra.mxu0 0.0
    %2417 = vmatprep.subr.mxu0 0.0
    %2418 = vmatpush1.msra.mxu0 0.0
    %2419 = vmatprep.subr.mxu0 0.0
    %2420 = vmatpush1.msra.mxu0 0.0
    %2421 = vmatprep.subr.mxu0 0.0
    %2422 = vmatpush1.msra.mxu0 0.0
    %2423 = vmatprep.subr.mxu0 0.0
    %2424 = vmatpush1.msra.mxu0 0.0
    %2425 = vmatprep.subr.mxu0 0.0
    %2426 = vmatpush1.msra.mxu0 0.0
    %2427 = vmatprep.subr.mxu0 0.0
    %2428 = vmatpush1.msra.mxu0 0.0
    %2429 = vmatprep.subr.mxu0 0.0
    %2430 = vmatpush1.msra.mxu0 0.0
    %2431 = vmatprep.subr.mxu0 0.0
    %2432 = vmatpush1.msra.mxu0 0.0
    %2433 = vmatprep.subr.mxu0 0.0
    %2434 = vmatpush1.msra.mxu0 0.0
    %2435 = vmatprep.subr.mxu0 0.0
    %2436 = vmatpush1.msra.mxu0 0.0
    %2437 = vmatprep.subr.mxu0 0.0
    %2438 = vmatpush1.msra.mxu0 0.0
    %2439 = vmatprep.subr.mxu0 0.0
    %2440 = vmatpush1.msra.mxu0 0.0
    %2441 = vmatprep.mubr.f32.mxu0 0.0
    %2442 = vmatmul.mubr.f32.gmra.mrb[0].mxu0 %v2325
    %v2443 = vpop.f32.mrb[0].mxu0
    %v2444 = vadd.f32 %v2370, %v2443
    %v2445 = vpop.f32.mrb[0].mxu0
    %v2446 = vadd.f32 %v2374, %v2445
    %2447 = vmatprep.mubr.f32.mxu0 0.0
    %2448 = vmatmul.mubr.f32.gmra.mrb[0].mxu0 %v2326
    %v2449 = vpop.f32.mrb[0].mxu0
    %v2450 = vadd.f32 %v2370, %v2449
    %v2451 = vpop.f32.mrb[0].mxu0
    %v2452 = vadd.f32 %v2374, %v2451
    %2453 = vmatprep.mubr.f32.mxu0 0.0
    %2454 = vmatmul.mubr.f32.gmra.mrb[0].mxu0 %v2327
    %v2455 = vpop.f32.mrb[0].mxu0
    %v2456 = vadd.f32 %v2370, %v2455
    %v2457 = vpop.f32.mrb[0].mxu0
    %v2458 = vadd.f32 %v2374, %v2457
    %2459 = vmatprep.mubr.f32.mxu0 0.0
    %2460 = vmatmul.mubr.f32.gmra.mrb[0].mxu0 %v2328
    %v2461 = vpop.f32.mrb[0].mxu0
    %v2462 = vadd.f32 %v2370, %v2461
    %v2463 = vpop.f32.mrb[0].mxu0
    %v2464 = vadd.f32 %v2374, %v2463
    %2465 = vmatprep.mubr.f32.mxu0 0.0
    %2466 = vmatmul.mubr.f32.gmra.mrb[0].mxu0 %v2329
    %v2467 = vpop.f32.mrb[0].mxu0
    %v2468 = vadd.f32 %v2370, %v2467
    %v2469 = vpop.f32.mrb[0].mxu0
    %v2470 = vadd.f32 %v2374, %v2469
    %2471 = vmatprep.mubr.f32.mxu0 0.0
    %2472 = vmatmul.mubr.f32.gmra.mrb[0].mxu0 %v2330
    %v2473 = vpop.f32.mrb[0].mxu0
    %v2474 = vadd.f32 %v2370, %v2473
    %v2475 = vpop.f32.mrb[0].mxu0
    %v2476 = vadd.f32 %v2374, %v2475
    %2477 = vmatprep.mubr.f32.mxu0 0.0
    %2478 = vmatmul.mubr.f32.gmra.mrb[0].mxu0 %v2331
    %v2479 = vpop.f32.mrb[0].mxu0
    %v2480 = vadd.f32 %v2370, %v2479
    %v2481 = vpop.f32.mrb[0].mxu0
    %v2482 = vadd.f32 %v2374, %v2481
    %2483 = vmatprep.mubr.f32.mxu0 0.0
    %2484 = vmatmul.mubr.f32.gmra.mrb[0].mxu0 %v2332
    %v2485 = vpop.f32.mrb[0].mxu0
    %v2486 = vadd.f32 %v2370, %v2485
    %v2487 = vpop.f32.mrb[0].mxu0
    %v2488 = vadd.f32 %v2374, %v2487
    %2489 = vdwg.mxu0
    %2490 = vst [vmem:[#allocation12] sm:$0xff] %v2444
    %2491 = vst [vmem:[#allocation12 + $0x8] sm:$0xff] %v2446
    %2492 = vst [vmem:[#allocation12 + $0x10] sm:$0xff] %v2450
    %2493 = vst [vmem:[#allocation12 + $0x18] sm:$0xff] %v2452
    %2494 = vst [vmem:[#allocation12 + $0x20] sm:$0xff] %v2456
    %2495 = vst [vmem:[#allocation12 + $0x28] sm:$0xff] %v2458
    %2496 = vst [vmem:[#allocation12 + $0x30] sm:$0xff] %v2462
    %2497 = vst [vmem:[#allocation12 + $0x38] sm:$0xff] %v2464
    %2498 = vst [vmem:[#allocation12 + $0x40] sm:$0xff] %v2468
    %2499 = vst [vmem:[#allocation12 + $0x48] sm:$0xff] %v2470
    %2500 = vst [vmem:[#allocation12 + $0x50] sm:$0xff] %v2474
    %2501 = vst [vmem:[#allocation12 + $0x58] sm:$0xff] %v2476
    %2502 = vst [vmem:[#allocation12 + $0x60] sm:$0xff] %v2480
    %2503 = vst [vmem:[#allocation12 + $0x68] sm:$0xff] %v2482
    %2504 = vst [vmem:[#allocation12 + $0x70] sm:$0xff] %v2486
    %2505 = vst [vmem:[#allocation12 + $0x78] sm:$0xff] %v2488
    // Predicated region
    $region38: #{tpu_custom_call.1} parent=1 // pred_check
      _
    $region39: #{tpu_custom_call.1} parent=1 // pred_check_branch
      %2507 = sbr.rel (0) target = $region41
    $region40: #{tpu_custom_call.1} parent=1 // pred_region
      %s2509 = ssub.s32 2048, 2048
      %2510 = vsyncadd [#allocation8], %s2509
      %s2511 = sshll.u32 [#allocation12], 4
      %s2512 = int_to_ptr.vmem [resolvable:$true] %s2511
      %2517 = dma.vmem_to_hbm [thread:$0]  %s2512, 2048, %s6, [#allocation8], 256, 256, 16
    $region41: #{tpu_custom_call.1} parent=1 // pred_fallthru
      _
    // Predicated region
    $region42: #{tpu_custom_call.1} parent=1 // pred_check
      _
    $region43: #{tpu_custom_call.1} parent=1 // pred_check_branch
      %2519 = sbr.rel (0) target = $region45
    $region44: #{tpu_custom_call.1} parent=1 // pred_region
      %2520 = dma.done [#allocation8], 2048
    $region45: #{tpu_custom_call.1} parent=1 // pred_fallthru
      _
    %2521 = vsyncpa [#allocation7], 1
    %2522 = vsyncpa [#allocation10], 1
    %2523 = vsyncpa [#allocation8], 1
  %2524 = vsyncmov [#allocation5]
  %s2525 = vpop.sfrf %2524
  %p2526 = scmp.eq.s32.totalorder %s2525, 0
  %p2527 = pneg %p2526
  %2529 = shalt.err (%p2527)

</llo_original>
